<compile_context>
chip_gen: v5e
topology: v5e:2x2
jax: 0.10.0
libtpu: 0.0.40
codegen_flags: <defaults>
</compile_context>

<pallas_src>
import functools

import jax
import jax.numpy as jnp
from jax.experimental import pallas as pl
from jax.experimental.pallas import tpu as pltpu

_VMEM_LIMIT = 32 * 1024 * 1024  # safe scoped-VMEM request on v5e/v6e/v7x


def _ceil_to(n, m):
    return -(-n // m) * m


def _sigmoid(x):
    # exp and approx reciprocal both run on the EUP slot -> frees VALU slots.
    return pl.reciprocal(1.0 + jnp.exp(-x), approx=True)


# ---------------------------------------------------------------- tile selection
def _pick_tm(M, cap=512):
    """Prefer a divisor of M that is a multiple of 16 (bf16 sublane packing)."""
    if M % 16 == 0:
        t = min(cap, M)
        while t >= 16:
            if M % t == 0:
                return t, M
            t -= 16
    tm = min(cap, _ceil_to(M, 16))
    return tm, _ceil_to(M, tm)


def _pick_tk(K):
    """Single K step when small; else a 128-multiple divisor of K (K % 128 == 0)."""
    if K % 128 == 0 and K > 768:
        for t in (512, 384, 256, 128):
            if K % t == 0:
                return t
    return K


# ----------------------------------------------------- tiled fused matmul + affine
def _mm_affine_kernel(a_ref, b_ref, s_ref, t_ref, o_ref, acc_ref, *, relu):
    k = pl.program_id(2)

    @pl.when(k == 0)
    def _():
        acc_ref[...] = jnp.zeros_like(acc_ref)

    acc_ref[...] += jnp.dot(a_ref[...], b_ref[...],
                            preferred_element_type=jnp.float32)

    @pl.when(k == pl.num_programs(2) - 1)
    def _():
        y = acc_ref[...] * s_ref[...] + t_ref[...]
        if relu:
            y = jnp.maximum(y, 0.0)
        o_ref[...] = y.astype(o_ref.dtype)


def matmul_affine(a, b, scale, shift, *, relu=False, out_dtype=jnp.bfloat16):
    """((a @ b) * scale + shift) (+ReLU).  a:[M,K] bf16, b:[K,N] bf16 (N % 128 == 0),
    scale/shift:[1,N] f32.  f32 VMEM accumulator, bf16 output."""
    M, K = a.shape
    Kb, N = b.shape
    assert K == Kb and N % 128 == 0

    tm, Mp = _pick_tm(M)
    tn = 256 if N % 256 == 0 else 128
    tk = _pick_tk(K)

    if Mp != M:
        a = jnp.pad(a, ((0, Mp - M), (0, 0)))

    out = pl.pallas_call(
        functools.partial(_mm_affine_kernel, relu=relu),
        grid=(Mp // tm, N // tn, K // tk),
        in_specs=[
            pl.BlockSpec((tm, tk), lambda i, j, k: (i, k)),
            pl.BlockSpec((tk, tn), lambda i, j, k: (k, j)),
            pl.BlockSpec((1, tn), lambda i, j, k: (0, j)),
            pl.BlockSpec((1, tn), lambda i, j, k: (0, j)),
        ],
        out_specs=pl.BlockSpec((tm, tn), lambda i, j, k: (i, j)),
        out_shape=jax.ShapeDtypeStruct((Mp, N), out_dtype),
        scratch_shapes=[pltpu.VMEM((tm, tn), jnp.float32)],
        compiler_params=pltpu.CompilerParams(
            dimension_semantics=("parallel", "parallel", "arbitrary"),
            vmem_limit_bytes=_VMEM_LIMIT),
    )(a, b, scale, shift)
    return out[:M] if Mp != M else out


# --------------------------------------------------------------- conv = im2col + MXU
def _im2col(x, kh, kw, stride, padding, dilation, pad_k_to=None):
    """NHWC -> [B,Ho,Wo,Kp] patches ordered (kh,kw,Cin).  The K zero-pad (to a
    128 multiple) is baked into the concatenation -> no extra pad pass."""
    B, H, W, C = x.shape
    xp = jnp.pad(x, ((0, 0), (padding, padding), (padding, padding), (0, 0)))
    Ho = (H + 2 * padding - dilation * (kh - 1) - 1) // stride + 1
    Wo = (W + 2 * padding - dilation * (kw - 1) - 1) // stride + 1
    cols = []
    for i in range(kh):
        for j in range(kw):
            r0, c0 = i * dilation, j * dilation
            cols.append(xp[:, r0:r0 + stride * (Ho - 1) + 1:stride,
                              c0:c0 + stride * (Wo - 1) + 1:stride, :])
    K = kh * kw * C
    if pad_k_to is not None and pad_k_to > K:
        cols.append(jnp.zeros((B, Ho, Wo, pad_k_to - K), x.dtype))
    return jnp.concatenate(cols, axis=-1), Ho, Wo


def conv_bn(x, pw, *, kh, kw, cout, stride, padding, dilation=1, relu=False):
    """NHWC conv (packed bf16 weights) with BN affine / ReLU fused in the epilogue."""
    B, H, W, cin = x.shape
    Kp, Np = pw["wmat"].shape
    if kh == 1 and kw == 1:                       # 1x1 downsample: no im2col needed
        Ho = (H - 1) // stride + 1
        Wo = (W - 1) // stride + 1
        a = x[:, ::stride, ::stride, :].reshape(B * Ho * Wo, cin)
    else:
        cols, Ho, Wo = _im2col(x, kh, kw, stride, padding, dilation, pad_k_to=Kp)
        a = cols.reshape(B * Ho * Wo, Kp)
    y = matmul_affine(a, pw["wmat"], pw["scale"], pw["shift"], relu=relu)
    y = y.reshape(B, Ho, Wo, Np)
    return y[..., :cout] if Np != cout else y


# --------------------------------------------- CBAM channel attention (fused, grid=B)
def _cbam_channel_kernel(x_ref, w1_ref, w2_ref, xo_ref, sp_ref):
    x = x_ref[...].astype(jnp.float32)                      # [1, HW, C]
    mean_c = jnp.mean(x, axis=1)                            # [1, C]
    max_c = jnp.max(x, axis=1)                              # [1, C]

    def mlp(v):
        h = jnp.maximum(
            jnp.dot(v, w1_ref[...], preferred_element_type=jnp.float32), 0.0)
        return jnp.dot(h, w2_ref[...], preferred_element_type=jnp.float32)

    gate = _sigmoid(mlp(mean_c) + mlp(max_c))               # [1, C]
    xa = x * gate[:, None, :]                               # broadcast over HW in-kernel
    xo_ref[...] = xa.astype(xo_ref.dtype)
    sp_mean = jnp.mean(xa, axis=-1, keepdims=True)          # [1, HW, 1]
    sp_max = jnp.max(xa, axis=-1, keepdims=True)            # [1, HW, 1]
    sp_ref[...] = jnp.concatenate([sp_mean, sp_max], axis=-1).astype(sp_ref.dtype)


def cbam_channel(x, w1, w2):
    """x:[B,H,W,C] bf16 -> (gated x [B,HW,C] bf16, [mean,max] spatial map [B,HW,2] bf16)."""
    B, H, W, C = x.shape
    HW = H * W
    crp = w1.shape[1]
    xa, sp = pl.pallas_call(
        _cbam_channel_kernel,
        grid=(B,),
        in_specs=[
            pl.BlockSpec((1, HW, C), lambda b: (b, 0, 0)),
            pl.BlockSpec((C, crp), lambda b: (0, 0)),
            pl.BlockSpec((crp, C), lambda b: (0, 0)),
        ],
        out_specs=(
            pl.BlockSpec((1, HW, C), lambda b: (b, 0, 0)),
            pl.BlockSpec((1, HW, 2), lambda b: (b, 0, 0)),
        ),
        out_shape=(
            jax.ShapeDtypeStruct((B, HW, C), jnp.bfloat16),
            jax.ShapeDtypeStruct((B, HW, 2), jnp.bfloat16),
        ),
        compiler_params=pltpu.CompilerParams(
            dimension_semantics=("parallel",),
            vmem_limit_bytes=_VMEM_LIMIT),
    )(x.reshape(B, HW, C), w1, w2)
    return xa, sp


# -------------- spatial 7x7 conv + sigmoid gate + apply + residual + ReLU (one kernel)
def _spatial_fused_kernel(a_ref, w_ref, xa_ref, idn_ref, o_ref):
    # w columns are the same 7x7x2 filter replicated across C lanes, so every lane
    # of `logits` already holds this row's spatial-attention logit (lane-dense gate).
    logits = jnp.dot(a_ref[...], w_ref[...], preferred_element_type=jnp.float32)
    gate = _sigmoid(logits)
    y = xa_ref[...].astype(jnp.float32) * gate + idn_ref[...].astype(jnp.float32)
    o_ref[...] = jnp.maximum(y, 0.0).astype(o_ref.dtype)


def spatial_fused(a_sp, w_rep, xa, idn):
    """relu(xa * sigmoid(spconv) + idn).  a_sp:[M,Kp] bf16, w_rep:[Kp,C] bf16,
    xa/idn:[M,C] bf16."""
    M, Kp = a_sp.shape
    C = xa.shape[1]
    tm, Mp = _pick_tm(M)
    if Mp != M:
        pad = ((0, Mp - M), (0, 0))
        a_sp, xa, idn = (jnp.pad(t, pad) for t in (a_sp, xa, idn))
    out = pl.pallas_call(
        _spatial_fused_kernel,
        grid=(Mp // tm,),
        in_specs=[
            pl.BlockSpec((tm, Kp), lambda i: (i, 0)),
            pl.BlockSpec((Kp, C), lambda i: (0, 0)),
            pl.BlockSpec((tm, C), lambda i: (i, 0)),
            pl.BlockSpec((tm, C), lambda i: (i, 0)),
        ],
        out_specs=pl.BlockSpec((tm, C), lambda i: (i, 0)),
        out_shape=jax.ShapeDtypeStruct((Mp, C), jnp.bfloat16),
        compiler_params=pltpu.CompilerParams(
            dimension_semantics=("parallel",),
            vmem_limit_bytes=_VMEM_LIMIT),
    )(a_sp, w_rep, xa, idn)
    return out[:M] if Mp != M else out


# ------------------------------------------------ global average pool + Linear (fused)
def _pool_proj_kernel(x_ref, w_ref, b_ref, o_ref):
    pooled = jnp.mean(x_ref[...].astype(jnp.float32), axis=1)        # [1, C]
    y = jnp.dot(pooled, w_ref[...], preferred_element_type=jnp.float32) + b_ref[...]
    o_ref[...] = y[None]


def pool_proj(x, pw, emb_dim):
    B, H, W, C = x.shape
    HW = H * W
    Ep = pw["w"].shape[1]
    out = pl.pallas_call(
        _pool_proj_kernel,
        grid=(B,),
        in_specs=[
            pl.BlockSpec((1, HW, C), lambda i: (i, 0, 0)),
            pl.BlockSpec((C, Ep), lambda i: (0, 0)),
            pl.BlockSpec((1, Ep), lambda i: (0, 0)),
        ],
        out_specs=pl.BlockSpec((1, 1, Ep), lambda i: (i, 0, 0)),
        out_shape=jax.ShapeDtypeStruct((B, 1, Ep), jnp.float32),
        compiler_params=pltpu.CompilerParams(
            dimension_semantics=("parallel",),
            vmem_limit_bytes=_VMEM_LIMIT),
    )(x.reshape(B, HW, C), pw["w"], pw["b"])
    return out.reshape(B, Ep)[:, :emb_dim]


# --------------------------------------------------------------------------- modules
def block_fwd(x, p, *, cout, stride, dil):
    if "down" in p:
        idn = conv_bn(x, p["down"], kh=1, kw=1, cout=cout, stride=stride, padding=0)
    else:
        idn = x
    y = conv_bn(x, p["conv1"], kh=3, kw=3, cout=cout, stride=stride,
                padding=dil, dilation=dil, relu=True)
    y = conv_bn(y, p["conv2"], kh=3, kw=3, cout=cout, stride=1,
                padding=dil, dilation=dil, relu=False)
    B, H, W, C = y.shape
    xa, sp = cbam_channel(y, p["cbam"]["w1"], p["cbam"]["w2"])
    Kp = p["cbam"]["wsp_rep"].shape[0]
    sp_cols, _, _ = _im2col(sp.reshape(B, H, W, 2), 7, 7, 1, 3, 1, pad_k_to=Kp)
    out = spatial_fused(sp_cols.reshape(B * H * W, Kp),
                        p["cbam"]["wsp_rep"],
                        xa.reshape(B * H * W, C),
                        idn.reshape(B * H * W, C))
    return out.reshape(B, H, W, C)


def frame_encoder_forward(x_nchw, params, emb_dim):
    x = jnp.transpose(x_nchw, (0, 2, 3, 1)).astype(jnp.bfloat16)     # NCHW -> NHWC, bf16
    x = conv_bn(x, params["stem"], kh=3, kw=3, cout=32, stride=2, padding=1, relu=True)
    x = block_fwd(x, params["block1"], cout=64, stride=2, dil=1)
    x = block_fwd(x, params["block2"], cout=128, stride=2, dil=1)
    x = block_fwd(x, params["block3"], cout=128, stride=1, dil=2)
    return pool_proj(x, params["proj"], emb_dim)


# ------------------------------------------------------------- params: init + packing
def init_params(key, in_ch, emb_dim):
    keys = iter(jax.random.split(key, 64))

    def conv_w(cout, cin, kh, kw):
        fan = cin * kh * kw
        return jax.random.normal(next(keys), (cout, cin, kh, kw), jnp.float32) / fan ** 0.5

    def bn(c):
        return dict(
            gamma=1.0 + 0.1 * jax.random.normal(next(keys), (c,), jnp.float32),
            beta=0.1 * jax.random.normal(next(keys), (c,), jnp.float32),
            mean=0.1 * jax.random.normal(next(keys), (c,), jnp.float32),
            var=1.0 + 0.1 * jnp.abs(jax.random.normal(next(keys), (c,), jnp.float32)),
        )

    def cbam(c, r=16):
        cr = max(c // r, 1)
        return dict(
            w1=jax.random.normal(next(keys), (cr, c), jnp.float32) / c ** 0.5,
            w2=jax.random.normal(next(keys), (c, cr), jnp.float32) / cr ** 0.5,
            spw=conv_w(1, 2, 7, 7),
        )

    def block(cin, cout, stride):
        p = dict(conv1=conv_w(cout, cin, 3, 3), bn1=bn(cout),
                 conv2=conv_w(cout, cout, 3, 3), bn2=bn(cout),
                 cbam=cbam(cout))
        if not (stride == 1 and cin == cout):
            p["down_w"] = conv_w(cout, cin, 1, 1)
            p["down_bn"] = bn(cout)
        return p

    return dict(
        stem_w=conv_w(32, in_ch, 3, 3), stem_bn=bn(32),
        block1=block(32, 64, 2),
        block2=block(64, 128, 2),
        block3=block(128, 128, 1),
        proj_w=jax.random.normal(next(keys), (emb_dim, 128), jnp.float32) / 128 ** 0.5,
        proj_b=0.1 * jax.random.normal(next(keys), (emb_dim,), jnp.float32),
    )


def _fold_bn(bn, eps=1e-5):
    scale = bn["gamma"] / jnp.sqrt(bn["var"] + eps)
    shift = bn["beta"] - bn["mean"] * scale
    return scale, shift


def _pack_conv(w, bn):
    cout, cin, kh, kw = w.shape
    K = kh * kw * cin
    Kp = _ceil_to(K, 128) if kh * kw > 1 else K        # K pad is baked into im2col
    Np = _ceil_to(cout, 128)
    wmat = jnp.transpose(w, (2, 3, 1, 0)).reshape(K, cout)
    wmat = jnp.pad(wmat, ((0, Kp - K), (0, Np - cout))).astype(jnp.bfloat16)
    if bn is not None:
        scale, shift = _fold_bn(bn)
    else:
        scale = jnp.ones((cout,), jnp.float32)
        shift = jnp.zeros((cout,), jnp.float32)
    scale = jnp.pad(scale, (0, Np - cout)).reshape(1, Np).astype(jnp.float32)
    shift = jnp.pad(shift, (0, Np - cout)).reshape(1, Np).astype(jnp.float32)
    return dict(wmat=wmat, scale=scale, shift=shift)


def _pack_cbam(p, c):
    cr = p["w1"].shape[0]
    crp = _ceil_to(cr, 128)
    w1 = jnp.pad(p["w1"].T, ((0, 0), (0, crp - cr))).astype(jnp.float32)   # [c, crp]
    w2 = jnp.pad(p["w2"].T, ((0, crp - cr), (0, 0))).astype(jnp.float32)   # [crp, c]
    K = 2 * 7 * 7
    Kp = _ceil_to(K, 128)
    wsp = jnp.transpose(p["spw"], (2, 3, 1, 0)).reshape(K, 1)
    wsp = jnp.pad(wsp, ((0, Kp - K), (0, 0)))
    wsp_rep = jnp.tile(wsp, (1, c)).astype(jnp.bfloat16)   # replicate -> lane-dense gate
    return dict(w1=w1, w2=w2, wsp_rep=wsp_rep)


def pack_params(raw, emb_dim):
    def pack_block(p, cout):
        out = dict(conv1=_pack_conv(p["conv1"], p["bn1"]),
                   conv2=_pack_conv(p["conv2"], p["bn2"]),
                   cbam=_pack_cbam(p["cbam"], cout))
        if "down_w" in p:
            out["down"] = _pack_conv(p["down_w"], p["down_bn"])
        return out

    Ep = _ceil_to(emb_dim, 128)
    return dict(
        stem=_pack_conv(raw["stem_w"], raw["stem_bn"]),
        block1=pack_block(raw["block1"], 64),
        block2=pack_block(raw["block2"], 128),
        block3=pack_block(raw["block3"], 128),
        proj=dict(
            w=jnp.pad(raw["proj_w"].T, ((0, 0), (0, Ep - emb_dim))).astype(jnp.float32),
            b=jnp.pad(raw["proj_b"], (0, Ep - emb_dim)).reshape(1, Ep).astype(jnp.float32),
        ),
    )


# ------------------------------------------------------------------------------ main
if __name__ == "__main__":
    B, IN_CH, H, W = 2, 4, 16, 16
    EMB_DIM = 32

    k_params, k_x = jax.random.split(jax.random.PRNGKey(0))
    raw = init_params(k_params, IN_CH, EMB_DIM)
    params = pack_params(raw, EMB_DIM)        # one-time weight packing, outside jit
    x = jax.random.normal(k_x, (B, IN_CH, H, W), jnp.float32)

    fwd = jax.jit(functools.partial(frame_encoder_forward, emb_dim=EMB_DIM))
    out = jax.block_until_ready(fwd(x, params))

    assert out.shape == (B, EMB_DIM), out.shape
    assert bool(jnp.all(jnp.isfinite(out)))
    print("KERNEL_OK")
</pallas_src>

<mosaic_0001>
module attributes {stable_mosaic.version = 11 : i64} {
  func.func @_mm_affine_kernel(%arg0: i32, %arg1: i32, %arg2: i32, %arg3: memref<128x128xbf16, #tpu.memory_space<vmem>>, %arg4: memref<128x128xbf16, #tpu.memory_space<vmem>>, %arg5: memref<1x128xf32, #tpu.memory_space<vmem>>, %arg6: memref<1x128xf32, #tpu.memory_space<vmem>>, %arg7: memref<128x128xbf16, #tpu.memory_space<vmem>>, %arg8: memref<128x128xf32, #tpu.memory_space<vmem>>) attributes {dimension_semantics = [#tpu.dimension_semantics<parallel>, #tpu.dimension_semantics<parallel>, #tpu.dimension_semantics<arbitrary>], iteration_bounds = array<i64: 1, 1, 1>, scalar_prefetch = 0 : i64, scratch_operands = 1 : i64, tpu.core_type = #tpu.core_type<tc>, window_params = [{transform_indices = @transform_0, window_bounds = array<i64: 128, 128>}, {transform_indices = @transform_1, window_bounds = array<i64: 128, 128>}, {transform_indices = @transform_2, window_bounds = array<i64: 1, 128>}, {transform_indices = @transform_3, window_bounds = array<i64: 1, 128>}, {transform_indices = @transform_4, window_bounds = array<i64: 128, 128>}]} {
    %c0_i32 = arith.constant 0 : i32
    %0 = arith.cmpi eq, %arg2, %c0_i32 : i32
    %1 = arith.extui %0 : i1 to i32
    %c0_i32_0 = arith.constant 0 : i32
    %2 = arith.cmpi ne, %1, %c0_i32_0 : i32
    scf.if %2 {
      %cst_10 = arith.constant 0.000000e+00 : f32
      %12 = vector.broadcast %cst_10 : f32 to vector<128x128xf32>
      %c0_11 = arith.constant 0 : index
      %c0_12 = arith.constant 0 : index
      %13 = vector.load %arg8[%c0_11, %c0_12] : memref<128x128xf32, #tpu.memory_space<vmem>>, vector<128x128xf32>
      tpu.vector_store %arg8[%c0_11, %c0_12], %12 {strides = array<i32>} : memref<128x128xf32, #tpu.memory_space<vmem>>, vector<128x128xf32>,
    } else {
    }
    %c0 = arith.constant 0 : index
    %c0_1 = arith.constant 0 : index
    %3 = vector.load %arg8[%c0, %c0_1] : memref<128x128xf32, #tpu.memory_space<vmem>>, vector<128x128xf32>
    %c0_2 = arith.constant 0 : index
    %c0_3 = arith.constant 0 : index
    %4 = vector.load %arg3[%c0_2, %c0_3] : memref<128x128xbf16, #tpu.memory_space<vmem>>, vector<128x128xbf16>
    %c0_4 = arith.constant 0 : index
    %c0_5 = arith.constant 0 : index
    %5 = vector.load %arg4[%c0_4, %c0_5] : memref<128x128xbf16, #tpu.memory_space<vmem>>, vector<128x128xbf16>
    %cst = arith.constant dense<0.000000e+00> : vector<128x128xf32>
    %6 = tpu.matmul %4, %5, %cst {dimension_numbers = #tpu.dot_dimension_numbers<[1], [0], [0], [1], [0, 0, 1, 1], [], []>} : vector<128x128xbf16>, vector<128x128xbf16>, vector<128x128xf32> -> vector<128x128xf32>
    %7 = arith.addf %3, %6 : vector<128x128xf32>
    %c0_6 = arith.constant 0 : index
    %c0_7 = arith.constant 0 : index
    %8 = vector.load %arg8[%c0_6, %c0_7] : memref<128x128xf32, #tpu.memory_space<vmem>>, vector<128x128xf32>
    tpu.vector_store %arg8[%c0_6, %c0_7], %7 {strides = array<i32>} : memref<128x128xf32, #tpu.memory_space<vmem>>, vector<128x128xf32>,
    %c0_i32_8 = arith.constant 0 : i32
    %9 = arith.cmpi eq, %arg2, %c0_i32_8 : i32
    %10 = arith.extui %9 : i1 to i32
    %c0_i32_9 = arith.constant 0 : i32
    %11 = arith.cmpi ne, %10, %c0_i32_9 : i32
    scf.if %11 {
      %c0_10 = arith.constant 0 : index
      %c0_11 = arith.constant 0 : index
      %12 = vector.load %arg8[%c0_10, %c0_11] : memref<128x128xf32, #tpu.memory_space<vmem>>, vector<128x128xf32>
      %c0_12 = arith.constant 0 : index
      %c0_13 = arith.constant 0 : index
      %13 = vector.load %arg5[%c0_12, %c0_13] : memref<1x128xf32, #tpu.memory_space<vmem>>, vector<1x128xf32>
      %14 = vector.broadcast %13 : vector<1x128xf32> to vector<128x128xf32>
      %15 = arith.mulf %12, %14 : vector<128x128xf32>
      %c0_14 = arith.constant 0 : index
      %c0_15 = arith.constant 0 : index
      %16 = vector.load %arg6[%c0_14, %c0_15] : memref<1x128xf32, #tpu.memory_space<vmem>>, vector<1x128xf32>
      %17 = vector.broadcast %16 : vector<1x128xf32> to vector<128x128xf32>
      %18 = arith.addf %15, %17 : vector<128x128xf32>
      %cst_16 = arith.constant 0.000000e+00 : f32
      %19 = vector.broadcast %cst_16 : f32 to vector<128x128xf32>
      %20 = arith.maximumf %18, %19 : vector<128x128xf32>
      %21 = arith.truncf %20 : vector<128x128xf32> to vector<128x128xbf16>
      %c0_17 = arith.constant 0 : index
      %c0_18 = arith.constant 0 : index
      %22 = vector.load %arg7[%c0_17, %c0_18] : memref<128x128xbf16, #tpu.memory_space<vmem>>, vector<128x128xbf16>
      tpu.vector_store %arg7[%c0_17, %c0_18], %21 {strides = array<i32>} : memref<128x128xbf16, #tpu.memory_space<vmem>>, vector<128x128xbf16>,
    } else {
    }
    return
  }
  func.func @transform_0(%arg0: i32, %arg1: i32, %arg2: i32) -> (i32, i32) {
    %c0_i32 = arith.constant 0 : i32
    return %arg0, %arg2 : i32, i32
  }
  func.func @transform_1(%arg0: i32, %arg1: i32, %arg2: i32) -> (i32, i32) {
    %c0_i32 = arith.constant 0 : i32
    return %arg2, %arg1 : i32, i32
  }
  func.func @transform_2(%arg0: i32, %arg1: i32, %arg2: i32) -> (i32, i32) {
    %c0_i32 = arith.constant 0 : i32
    %c0_i32_0 = arith.constant 0 : i32
    return %c0_i32, %arg1 : i32, i32
  }
  func.func @transform_3(%arg0: i32, %arg1: i32, %arg2: i32) -> (i32, i32) {
    %c0_i32 = arith.constant 0 : i32
    %c0_i32_0 = arith.constant 0 : i32
    return %c0_i32, %arg1 : i32, i32
  }
  func.func @transform_4(%arg0: i32, %arg1: i32, %arg2: i32) -> (i32, i32) {
    %c0_i32 = arith.constant 0 : i32
    return %arg0, %arg1 : i32, i32
  }
}

module attributes {stable_mosaic.version = 11 : i64} {
  func.func @_mm_affine_kernel(%arg0: i32, %arg1: i32, %arg2: i32, %arg3: memref<32x384xbf16, #tpu.memory_space<vmem>>, %arg4: memref<384x128xbf16, #tpu.memory_space<vmem>>, %arg5: memref<1x128xf32, #tpu.memory_space<vmem>>, %arg6: memref<1x128xf32, #tpu.memory_space<vmem>>, %arg7: memref<32x128xbf16, #tpu.memory_space<vmem>>, %arg8: memref<32x128xf32, #tpu.memory_space<vmem>>) attributes {dimension_semantics = [#tpu.dimension_semantics<parallel>, #tpu.dimension_semantics<parallel>, #tpu.dimension_semantics<arbitrary>], iteration_bounds = array<i64: 1, 1, 1>, scalar_prefetch = 0 : i64, scratch_operands = 1 : i64, tpu.core_type = #tpu.core_type<tc>, window_params = [{transform_indices = @transform_0, window_bounds = array<i64: 32, 384>}, {transform_indices = @transform_1, window_bounds = array<i64: 384, 128>}, {transform_indices = @transform_2, window_bounds = array<i64: 1, 128>}, {transform_indices = @transform_3, window_bounds = array<i64: 1, 128>}, {transform_indices = @transform_4, window_bounds = array<i64: 32, 128>}]} {
    %c0_i32 = arith.constant 0 : i32
    %0 = arith.cmpi eq, %arg2, %c0_i32 : i32
    %1 = arith.extui %0 : i1 to i32
    %c0_i32_0 = arith.constant 0 : i32
    %2 = arith.cmpi ne, %1, %c0_i32_0 : i32
    scf.if %2 {
      %cst_10 = arith.constant 0.000000e+00 : f32
      %12 = vector.broadcast %cst_10 : f32 to vector<32x128xf32>
      %c0_11 = arith.constant 0 : index
      %c0_12 = arith.constant 0 : index
      %13 = vector.load %arg8[%c0_11, %c0_12] : memref<32x128xf32, #tpu.memory_space<vmem>>, vector<32x128xf32>
      tpu.vector_store %arg8[%c0_11, %c0_12], %12 {strides = array<i32>} : memref<32x128xf32, #tpu.memory_space<vmem>>, vector<32x128xf32>,
    } else {
    }
    %c0 = arith.constant 0 : index
    %c0_1 = arith.constant 0 : index
    %3 = vector.load %arg8[%c0, %c0_1] : memref<32x128xf32, #tpu.memory_space<vmem>>, vector<32x128xf32>
    %c0_2 = arith.constant 0 : index
    %c0_3 = arith.constant 0 : index
    %4 = vector.load %arg3[%c0_2, %c0_3] : memref<32x384xbf16, #tpu.memory_space<vmem>>, vector<32x384xbf16>
    %c0_4 = arith.constant 0 : index
    %c0_5 = arith.constant 0 : index
    %5 = vector.load %arg4[%c0_4, %c0_5] : memref<384x128xbf16, #tpu.memory_space<vmem>>, vector<384x128xbf16>
    %cst = arith.constant dense<0.000000e+00> : vector<32x128xf32>
    %6 = tpu.matmul %4, %5, %cst {dimension_numbers = #tpu.dot_dimension_numbers<[1], [0], [0], [1], [0, 0, 1, 1], [], []>} : vector<32x384xbf16>, vector<384x128xbf16>, vector<32x128xf32> -> vector<32x128xf32>
    %7 = arith.addf %3, %6 : vector<32x128xf32>
    %c0_6 = arith.constant 0 : index
    %c0_7 = arith.constant 0 : index
    %8 = vector.load %arg8[%c0_6, %c0_7] : memref<32x128xf32, #tpu.memory_space<vmem>>, vector<32x128xf32>
    tpu.vector_store %arg8[%c0_6, %c0_7], %7 {strides = array<i32>} : memref<32x128xf32, #tpu.memory_space<vmem>>, vector<32x128xf32>,
    %c0_i32_8 = arith.constant 0 : i32
    %9 = arith.cmpi eq, %arg2, %c0_i32_8 : i32
    %10 = arith.extui %9 : i1 to i32
    %c0_i32_9 = arith.constant 0 : i32
    %11 = arith.cmpi ne, %10, %c0_i32_9 : i32
    scf.if %11 {
      %c0_10 = arith.constant 0 : index
      %c0_11 = arith.constant 0 : index
      %12 = vector.load %arg8[%c0_10, %c0_11] : memref<32x128xf32, #tpu.memory_space<vmem>>, vector<32x128xf32>
      %c0_12 = arith.constant 0 : index
      %c0_13 = arith.constant 0 : index
      %13 = vector.load %arg5[%c0_12, %c0_13] : memref<1x128xf32, #tpu.memory_space<vmem>>, vector<1x128xf32>
      %14 = vector.broadcast %13 : vector<1x128xf32> to vector<32x128xf32>
      %15 = arith.mulf %12, %14 : vector<32x128xf32>
      %c0_14 = arith.constant 0 : index
      %c0_15 = arith.constant 0 : index
      %16 = vector.load %arg6[%c0_14, %c0_15] : memref<1x128xf32, #tpu.memory_space<vmem>>, vector<1x128xf32>
      %17 = vector.broadcast %16 : vector<1x128xf32> to vector<32x128xf32>
      %18 = arith.addf %15, %17 : vector<32x128xf32>
      %cst_16 = arith.constant 0.000000e+00 : f32
      %19 = vector.broadcast %cst_16 : f32 to vector<32x128xf32>
      %20 = arith.maximumf %18, %19 : vector<32x128xf32>
      %21 = arith.truncf %20 : vector<32x128xf32> to vector<32x128xbf16>
      %c0_17 = arith.constant 0 : index
      %c0_18 = arith.constant 0 : index
      %22 = vector.load %arg7[%c0_17, %c0_18] : memref<32x128xbf16, #tpu.memory_space<vmem>>, vector<32x128xbf16>
      tpu.vector_store %arg7[%c0_17, %c0_18], %21 {strides = array<i32>} : memref<32x128xbf16, #tpu.memory_space<vmem>>, vector<32x128xbf16>,
    } else {
    }
    return
  }
  func.func @transform_0(%arg0: i32, %arg1: i32, %arg2: i32) -> (i32, i32) {
    %c0_i32 = arith.constant 0 : i32
    return %arg0, %arg2 : i32, i32
  }
  func.func @transform_1(%arg0: i32, %arg1: i32, %arg2: i32) -> (i32, i32) {
    %c0_i32 = arith.constant 0 : i32
    return %arg2, %arg1 : i32, i32
  }
  func.func @transform_2(%arg0: i32, %arg1: i32, %arg2: i32) -> (i32, i32) {
    %c0_i32 = arith.constant 0 : i32
    %c0_i32_0 = arith.constant 0 : i32
    return %c0_i32, %arg1 : i32, i32
  }
  func.func @transform_3(%arg0: i32, %arg1: i32, %arg2: i32) -> (i32, i32) {
    %c0_i32 = arith.constant 0 : i32
    %c0_i32_0 = arith.constant 0 : i32
    return %c0_i32, %arg1 : i32, i32
  }
  func.func @transform_4(%arg0: i32, %arg1: i32, %arg2: i32) -> (i32, i32) {
    %c0_i32 = arith.constant 0 : i32
    return %arg0, %arg1 : i32, i32
  }
}

module attributes {stable_mosaic.version = 11 : i64} {
  func.func @_cbam_channel_kernel(%arg0: i32, %arg1: memref<1x16x64xbf16, #tpu.memory_space<vmem>>, %arg2: memref<64x128xf32, #tpu.memory_space<vmem>>, %arg3: memref<128x64xf32, #tpu.memory_space<vmem>>, %arg4: memref<1x16x64xbf16, #tpu.memory_space<vmem>>, %arg5: memref<1x16x2xbf16, #tpu.memory_space<vmem>>) attributes {dimension_semantics = [#tpu.dimension_semantics<parallel>], iteration_bounds = array<i64: 2>, scalar_prefetch = 0 : i64, scratch_operands = 0 : i64, tpu.core_type = #tpu.core_type<tc>, window_params = [{transform_indices = @transform_0, window_bounds = array<i64: 1, 16, 64>}, {pipeline_mode = #tpu.pipeline_mode<synchronous>, transform_indices = @transform_1, window_bounds = array<i64: 64, 128>}, {pipeline_mode = #tpu.pipeline_mode<synchronous>, transform_indices = @transform_2, window_bounds = array<i64: 128, 64>}, {transform_indices = @transform_3, window_bounds = array<i64: 1, 16, 64>}, {transform_indices = @transform_4, window_bounds = array<i64: 1, 16, 2>}]} {
    %c0 = arith.constant 0 : index
    %c0_0 = arith.constant 0 : index
    %c0_1 = arith.constant 0 : index
    %0 = vector.load %arg1[%c0, %c0_0, %c0_1] : memref<1x16x64xbf16, #tpu.memory_space<vmem>>, vector<1x16x64xbf16>
    %1 = arith.extf %0 : vector<1x16x64xbf16> to vector<1x16x64xf32>
    %cst = arith.constant dense<0.000000e+00> : vector<1x64xf32>
    %2 = vector.multi_reduction <add>, %1, %cst [1] : vector<1x16x64xf32> to vector<1x64xf32>
    %cst_2 = arith.constant 1.600000e+01 : f32
    %3 = vector.broadcast %cst_2 : f32 to vector<1x64xf32>
    %4 = arith.divf %2, %3 : vector<1x64xf32>
    %cst_3 = arith.constant dense<0xFF800000> : vector<1x64xf32>
    %5 = vector.multi_reduction <maximumf>, %1, %cst_3 [1] : vector<1x16x64xf32> to vector<1x64xf32>
    %c0_4 = arith.constant 0 : index
    %c0_5 = arith.constant 0 : index
    %6 = vector.load %arg2[%c0_4, %c0_5] : memref<64x128xf32, #tpu.memory_space<vmem>>, vector<64x128xf32>
    %cst_6 = arith.constant dense<0.000000e+00> : vector<1x128xf32>
    %7 = tpu.matmul %4, %6, %cst_6 {dimension_numbers = #tpu.dot_dimension_numbers<[1], [0], [0], [1], [0, 0, 1, 1], [], []>} : vector<1x64xf32>, vector<64x128xf32>, vector<1x128xf32> -> vector<1x128xf32>
    %cst_7 = arith.constant 0.000000e+00 : f32
    %8 = vector.broadcast %cst_7 : f32 to vector<1x128xf32>
    %9 = arith.maximumf %7, %8 : vector<1x128xf32>
    %c0_8 = arith.constant 0 : index
    %c0_9 = arith.constant 0 : index
    %10 = vector.load %arg3[%c0_8, %c0_9] : memref<128x64xf32, #tpu.memory_space<vmem>>, vector<128x64xf32>
    %cst_10 = arith.constant dense<0.000000e+00> : vector<1x64xf32>
    %11 = tpu.matmul %9, %10, %cst_10 {dimension_numbers = #tpu.dot_dimension_numbers<[1], [0], [0], [1], [0, 0, 1, 1], [], []>} : vector<1x128xf32>, vector<128x64xf32>, vector<1x64xf32> -> vector<1x64xf32>
    %c0_11 = arith.constant 0 : index
    %c0_12 = arith.constant 0 : index
    %12 = vector.load %arg2[%c0_11, %c0_12] : memref<64x128xf32, #tpu.memory_space<vmem>>, vector<64x128xf32>
    %cst_13 = arith.constant dense<0.000000e+00> : vector<1x128xf32>
    %13 = tpu.matmul %5, %12, %cst_13 {dimension_numbers = #tpu.dot_dimension_numbers<[1], [0], [0], [1], [0, 0, 1, 1], [], []>} : vector<1x64xf32>, vector<64x128xf32>, vector<1x128xf32> -> vector<1x128xf32>
    %cst_14 = arith.constant 0.000000e+00 : f32
    %14 = vector.broadcast %cst_14 : f32 to vector<1x128xf32>
    %15 = arith.maximumf %13, %14 : vector<1x128xf32>
    %c0_15 = arith.constant 0 : index
    %c0_16 = arith.constant 0 : index
    %16 = vector.load %arg3[%c0_15, %c0_16] : memref<128x64xf32, #tpu.memory_space<vmem>>, vector<128x64xf32>
    %cst_17 = arith.constant dense<0.000000e+00> : vector<1x64xf32>
    %17 = tpu.matmul %15, %16, %cst_17 {dimension_numbers = #tpu.dot_dimension_numbers<[1], [0], [0], [1], [0, 0, 1, 1], [], []>} : vector<1x128xf32>, vector<128x64xf32>, vector<1x64xf32> -> vector<1x64xf32>
    %18 = arith.addf %11, %17 : vector<1x64xf32>
    %cst_18 = arith.constant 0.000000e+00 : f32
    %19 = vector.broadcast %cst_18 : f32 to vector<1x64xf32>
    %20 = arith.subf %19, %18 : vector<1x64xf32>
    %21 = math.exp %20 : vector<1x64xf32>
    %cst_19 = arith.constant 1.000000e+00 : f32
    %22 = vector.broadcast %cst_19 : f32 to vector<1x64xf32>
    %23 = arith.addf %22, %21 : vector<1x64xf32>
    %24 = tpu.reciprocal %23 {approx = true} : vector<1x64xf32> -> vector<1x64xf32>
    %25 = vector.shape_cast %24 : vector<1x64xf32> to vector<1x1x64xf32>
    %26 = vector.broadcast %25 : vector<1x1x64xf32> to vector<1x16x64xf32>
    %27 = arith.mulf %1, %26 : vector<1x16x64xf32>
    %28 = arith.truncf %27 : vector<1x16x64xf32> to vector<1x16x64xbf16>
    %c0_20 = arith.constant 0 : index
    %c0_21 = arith.constant 0 : index
    %c0_22 = arith.constant 0 : index
    %29 = vector.load %arg4[%c0_20, %c0_21, %c0_22] : memref<1x16x64xbf16, #tpu.memory_space<vmem>>, vector<1x16x64xbf16>
    tpu.vector_store %arg4[%c0_20, %c0_21, %c0_22], %28 {strides = array<i32>} : memref<1x16x64xbf16, #tpu.memory_space<vmem>>, vector<1x16x64xbf16>,
    %cst_23 = arith.constant dense<0.000000e+00> : vector<1x16xf32>
    %30 = vector.multi_reduction <add>, %27, %cst_23 [2] : vector<1x16x64xf32> to vector<1x16xf32>
    %31 = vector.shape_cast %30 : vector<1x16xf32> to vector<1x16x1xf32>
    %cst_24 = arith.constant 6.400000e+01 : f32
    %32 = vector.broadcast %cst_24 : f32 to vector<1x16x1xf32>
    %33 = arith.divf %31, %32 : vector<1x16x1xf32>
    %cst_25 = arith.constant dense<0xFF800000> : vector<1x16xf32>
    %34 = vector.multi_reduction <maximumf>, %27, %cst_25 [2] : vector<1x16x64xf32> to vector<1x16xf32>
    %35 = vector.shape_cast %34 : vector<1x16xf32> to vector<1x16x1xf32>
    %36 = tpu.concatenate %33, %35 in 2 : vector<1x16x1xf32>, vector<1x16x1xf32> -> vector<1x16x2xf32>
    %37 = arith.truncf %36 : vector<1x16x2xf32> to vector<1x16x2xbf16>
    %c0_26 = arith.constant 0 : index
    %c0_27 = arith.constant 0 : index
    %c0_28 = arith.constant 0 : index
    %38 = vector.load %arg5[%c0_26, %c0_27, %c0_28] : memref<1x16x2xbf16, #tpu.memory_space<vmem>>, vector<1x16x2xbf16>
    tpu.vector_store %arg5[%c0_26, %c0_27, %c0_28], %37 {strides = array<i32>} : memref<1x16x2xbf16, #tpu.memory_space<vmem>>, vector<1x16x2xbf16>,
    return
  }
  func.func @transform_0(%arg0: i32) -> (i32, i32, i32) {
    %c0_i32 = arith.constant 0 : i32
    %c0_i32_0 = arith.constant 0 : i32
    %c0_i32_1 = arith.constant 0 : i32
    return %arg0, %c0_i32, %c0_i32_0 : i32, i32, i32
  }
  func.func @transform_1(%arg0: i32) -> (i32, i32) {
    %c0_i32 = arith.constant 0 : i32
    %c0_i32_0 = arith.constant 0 : i32
    %c0_i32_1 = arith.constant 0 : i32
    return %c0_i32, %c0_i32_0 : i32, i32
  }
  func.func @transform_2(%arg0: i32) -> (i32, i32) {
    %c0_i32 = arith.constant 0 : i32
    %c0_i32_0 = arith.constant 0 : i32
    %c0_i32_1 = arith.constant 0 : i32
    return %c0_i32, %c0_i32_0 : i32, i32
  }
  func.func @transform_3(%arg0: i32) -> (i32, i32, i32) {
    %c0_i32 = arith.constant 0 : i32
    %c0_i32_0 = arith.constant 0 : i32
    %c0_i32_1 = arith.constant 0 : i32
    return %arg0, %c0_i32, %c0_i32_0 : i32, i32, i32
  }
  func.func @transform_4(%arg0: i32) -> (i32, i32, i32) {
    %c0_i32 = arith.constant 0 : i32
    %c0_i32_0 = arith.constant 0 : i32
    %c0_i32_1 = arith.constant 0 : i32
    return %arg0, %c0_i32, %c0_i32_0 : i32, i32, i32
  }
}

module attributes {stable_mosaic.version = 11 : i64} {
  func.func @_mm_affine_kernel(%arg0: i32, %arg1: i32, %arg2: i32, %arg3: memref<32x640xbf16, #tpu.memory_space<vmem>>, %arg4: memref<640x128xbf16, #tpu.memory_space<vmem>>, %arg5: memref<1x128xf32, #tpu.memory_space<vmem>>, %arg6: memref<1x128xf32, #tpu.memory_space<vmem>>, %arg7: memref<32x128xbf16, #tpu.memory_space<vmem>>, %arg8: memref<32x128xf32, #tpu.memory_space<vmem>>) attributes {dimension_semantics = [#tpu.dimension_semantics<parallel>, #tpu.dimension_semantics<parallel>, #tpu.dimension_semantics<arbitrary>], iteration_bounds = array<i64: 1, 1, 1>, scalar_prefetch = 0 : i64, scratch_operands = 1 : i64, tpu.core_type = #tpu.core_type<tc>, window_params = [{transform_indices = @transform_0, window_bounds = array<i64: 32, 640>}, {transform_indices = @transform_1, window_bounds = array<i64: 640, 128>}, {transform_indices = @transform_2, window_bounds = array<i64: 1, 128>}, {transform_indices = @transform_3, window_bounds = array<i64: 1, 128>}, {transform_indices = @transform_4, window_bounds = array<i64: 32, 128>}]} {
    %c0_i32 = arith.constant 0 : i32
    %0 = arith.cmpi eq, %arg2, %c0_i32 : i32
    %1 = arith.extui %0 : i1 to i32
    %c0_i32_0 = arith.constant 0 : i32
    %2 = arith.cmpi ne, %1, %c0_i32_0 : i32
    scf.if %2 {
      %cst_10 = arith.constant 0.000000e+00 : f32
      %12 = vector.broadcast %cst_10 : f32 to vector<32x128xf32>
      %c0_11 = arith.constant 0 : index
      %c0_12 = arith.constant 0 : index
      %13 = vector.load %arg8[%c0_11, %c0_12] : memref<32x128xf32, #tpu.memory_space<vmem>>, vector<32x128xf32>
      tpu.vector_store %arg8[%c0_11, %c0_12], %12 {strides = array<i32>} : memref<32x128xf32, #tpu.memory_space<vmem>>, vector<32x128xf32>,
    } else {
    }
    %c0 = arith.constant 0 : index
    %c0_1 = arith.constant 0 : index
    %3 = vector.load %arg8[%c0, %c0_1] : memref<32x128xf32, #tpu.memory_space<vmem>>, vector<32x128xf32>
    %c0_2 = arith.constant 0 : index
    %c0_3 = arith.constant 0 : index
    %4 = vector.load %arg3[%c0_2, %c0_3] : memref<32x640xbf16, #tpu.memory_space<vmem>>, vector<32x640xbf16>
    %c0_4 = arith.constant 0 : index
    %c0_5 = arith.constant 0 : index
    %5 = vector.load %arg4[%c0_4, %c0_5] : memref<640x128xbf16, #tpu.memory_space<vmem>>, vector<640x128xbf16>
    %cst = arith.constant dense<0.000000e+00> : vector<32x128xf32>
    %6 = tpu.matmul %4, %5, %cst {dimension_numbers = #tpu.dot_dimension_numbers<[1], [0], [0], [1], [0, 0, 1, 1], [], []>} : vector<32x640xbf16>, vector<640x128xbf16>, vector<32x128xf32> -> vector<32x128xf32>
    %7 = arith.addf %3, %6 : vector<32x128xf32>
    %c0_6 = arith.constant 0 : index
    %c0_7 = arith.constant 0 : index
    %8 = vector.load %arg8[%c0_6, %c0_7] : memref<32x128xf32, #tpu.memory_space<vmem>>, vector<32x128xf32>
    tpu.vector_store %arg8[%c0_6, %c0_7], %7 {strides = array<i32>} : memref<32x128xf32, #tpu.memory_space<vmem>>, vector<32x128xf32>,
    %c0_i32_8 = arith.constant 0 : i32
    %9 = arith.cmpi eq, %arg2, %c0_i32_8 : i32
    %10 = arith.extui %9 : i1 to i32
    %c0_i32_9 = arith.constant 0 : i32
    %11 = arith.cmpi ne, %10, %c0_i32_9 : i32
    scf.if %11 {
      %c0_10 = arith.constant 0 : index
      %c0_11 = arith.constant 0 : index
      %12 = vector.load %arg8[%c0_10, %c0_11] : memref<32x128xf32, #tpu.memory_space<vmem>>, vector<32x128xf32>
      %c0_12 = arith.constant 0 : index
      %c0_13 = arith.constant 0 : index
      %13 = vector.load %arg5[%c0_12, %c0_13] : memref<1x128xf32, #tpu.memory_space<vmem>>, vector<1x128xf32>
      %14 = vector.broadcast %13 : vector<1x128xf32> to vector<32x128xf32>
      %15 = arith.mulf %12, %14 : vector<32x128xf32>
      %c0_14 = arith.constant 0 : index
      %c0_15 = arith.constant 0 : index
      %16 = vector.load %arg6[%c0_14, %c0_15] : memref<1x128xf32, #tpu.memory_space<vmem>>, vector<1x128xf32>
      %17 = vector.broadcast %16 : vector<1x128xf32> to vector<32x128xf32>
      %18 = arith.addf %15, %17 : vector<32x128xf32>
      %19 = arith.truncf %18 : vector<32x128xf32> to vector<32x128xbf16>
      %c0_16 = arith.constant 0 : index
      %c0_17 = arith.constant 0 : index
      %20 = vector.load %arg7[%c0_16, %c0_17] : memref<32x128xbf16, #tpu.memory_space<vmem>>, vector<32x128xbf16>
      tpu.vector_store %arg7[%c0_16, %c0_17], %19 {strides = array<i32>} : memref<32x128xbf16, #tpu.memory_space<vmem>>, vector<32x128xbf16>,
    } else {
    }
    return
  }
  func.func @transform_0(%arg0: i32, %arg1: i32, %arg2: i32) -> (i32, i32) {
    %c0_i32 = arith.constant 0 : i32
    return %arg0, %arg2 : i32, i32
  }
  func.func @transform_1(%arg0: i32, %arg1: i32, %arg2: i32) -> (i32, i32) {
    %c0_i32 = arith.constant 0 : i32
    return %arg2, %arg1 : i32, i32
  }
  func.func @transform_2(%arg0: i32, %arg1: i32, %arg2: i32) -> (i32, i32) {
    %c0_i32 = arith.constant 0 : i32
    %c0_i32_0 = arith.constant 0 : i32
    return %c0_i32, %arg1 : i32, i32
  }
  func.func @transform_3(%arg0: i32, %arg1: i32, %arg2: i32) -> (i32, i32) {
    %c0_i32 = arith.constant 0 : i32
    %c0_i32_0 = arith.constant 0 : i32
    return %c0_i32, %arg1 : i32, i32
  }
  func.func @transform_4(%arg0: i32, %arg1: i32, %arg2: i32) -> (i32, i32) {
    %c0_i32 = arith.constant 0 : i32
    return %arg0, %arg1 : i32, i32
  }
}

module attributes {stable_mosaic.version = 11 : i64} {
  func.func @_spatial_fused_kernel(%arg0: i32, %arg1: memref<32x128xbf16, #tpu.memory_space<vmem>>, %arg2: memref<128x64xbf16, #tpu.memory_space<vmem>>, %arg3: memref<32x64xbf16, #tpu.memory_space<vmem>>, %arg4: memref<32x64xbf16, #tpu.memory_space<vmem>>, %arg5: memref<32x64xbf16, #tpu.memory_space<vmem>>) attributes {dimension_semantics = [#tpu.dimension_semantics<parallel>], iteration_bounds = array<i64: 1>, scalar_prefetch = 0 : i64, scratch_operands = 0 : i64, tpu.core_type = #tpu.core_type<tc>, window_params = [{transform_indices = @transform_0, window_bounds = array<i64: 32, 128>}, {pipeline_mode = #tpu.pipeline_mode<synchronous>, transform_indices = @transform_1, window_bounds = array<i64: 128, 64>}, {transform_indices = @transform_2, window_bounds = array<i64: 32, 64>}, {transform_indices = @transform_3, window_bounds = array<i64: 32, 64>}, {transform_indices = @transform_4, window_bounds = array<i64: 32, 64>}]} {
    %c0 = arith.constant 0 : index
    %c0_0 = arith.constant 0 : index
    %0 = vector.load %arg1[%c0, %c0_0] : memref<32x128xbf16, #tpu.memory_space<vmem>>, vector<32x128xbf16>
    %c0_1 = arith.constant 0 : index
    %c0_2 = arith.constant 0 : index
    %1 = vector.load %arg2[%c0_1, %c0_2] : memref<128x64xbf16, #tpu.memory_space<vmem>>, vector<128x64xbf16>
    %cst = arith.constant dense<0.000000e+00> : vector<32x64xf32>
    %2 = tpu.matmul %0, %1, %cst {dimension_numbers = #tpu.dot_dimension_numbers<[1], [0], [0], [1], [0, 0, 1, 1], [], []>} : vector<32x128xbf16>, vector<128x64xbf16>, vector<32x64xf32> -> vector<32x64xf32>
    %cst_3 = arith.constant 0.000000e+00 : f32
    %3 = vector.broadcast %cst_3 : f32 to vector<32x64xf32>
    %4 = arith.subf %3, %2 : vector<32x64xf32>
    %5 = math.exp %4 : vector<32x64xf32>
    %cst_4 = arith.constant 1.000000e+00 : f32
    %6 = vector.broadcast %cst_4 : f32 to vector<32x64xf32>
    %7 = arith.addf %6, %5 : vector<32x64xf32>
    %8 = tpu.reciprocal %7 {approx = true} : vector<32x64xf32> -> vector<32x64xf32>
    %c0_5 = arith.constant 0 : index
    %c0_6 = arith.constant 0 : index
    %9 = vector.load %arg3[%c0_5, %c0_6] : memref<32x64xbf16, #tpu.memory_space<vmem>>, vector<32x64xbf16>
    %10 = arith.extf %9 : vector<32x64xbf16> to vector<32x64xf32>
    %11 = arith.mulf %10, %8 : vector<32x64xf32>
    %c0_7 = arith.constant 0 : index
    %c0_8 = arith.constant 0 : index
    %12 = vector.load %arg4[%c0_7, %c0_8] : memref<32x64xbf16, #tpu.memory_space<vmem>>, vector<32x64xbf16>
    %13 = arith.extf %12 : vector<32x64xbf16> to vector<32x64xf32>
    %14 = arith.addf %11, %13 : vector<32x64xf32>
    %cst_9 = arith.constant 0.000000e+00 : f32
    %15 = vector.broadcast %cst_9 : f32 to vector<32x64xf32>
    %16 = arith.maximumf %14, %15 : vector<32x64xf32>
    %17 = arith.truncf %16 : vector<32x64xf32> to vector<32x64xbf16>
    %c0_10 = arith.constant 0 : index
    %c0_11 = arith.constant 0 : index
    %18 = vector.load %arg5[%c0_10, %c0_11] : memref<32x64xbf16, #tpu.memory_space<vmem>>, vector<32x64xbf16>
    tpu.vector_store %arg5[%c0_10, %c0_11], %17 {strides = array<i32>} : memref<32x64xbf16, #tpu.memory_space<vmem>>, vector<32x64xbf16>,
    return
  }
  func.func @transform_0(%arg0: i32) -> (i32, i32) {
    %c0_i32 = arith.constant 0 : i32
    %c0_i32_0 = arith.constant 0 : i32
    return %arg0, %c0_i32 : i32, i32
  }
  func.func @transform_1(%arg0: i32) -> (i32, i32) {
    %c0_i32 = arith.constant 0 : i32
    %c0_i32_0 = arith.constant 0 : i32
    %c0_i32_1 = arith.constant 0 : i32
    return %c0_i32, %c0_i32_0 : i32, i32
  }
  func.func @transform_2(%arg0: i32) -> (i32, i32) {
    %c0_i32 = arith.constant 0 : i32
    %c0_i32_0 = arith.constant 0 : i32
    return %arg0, %c0_i32 : i32, i32
  }
  func.func @transform_3(%arg0: i32) -> (i32, i32) {
    %c0_i32 = arith.constant 0 : i32
    %c0_i32_0 = arith.constant 0 : i32
    return %arg0, %c0_i32 : i32, i32
  }
  func.func @transform_4(%arg0: i32) -> (i32, i32) {
    %c0_i32 = arith.constant 0 : i32
    %c0_i32_0 = arith.constant 0 : i32
    return %arg0, %c0_i32 : i32, i32
  }
}

module attributes {stable_mosaic.version = 11 : i64} {
  func.func @_mm_affine_kernel(%arg0: i32, %arg1: i32, %arg2: i32, %arg3: memref<32x32xbf16, #tpu.memory_space<vmem>>, %arg4: memref<32x128xbf16, #tpu.memory_space<vmem>>, %arg5: memref<1x128xf32, #tpu.memory_space<vmem>>, %arg6: memref<1x128xf32, #tpu.memory_space<vmem>>, %arg7: memref<32x128xbf16, #tpu.memory_space<vmem>>, %arg8: memref<32x128xf32, #tpu.memory_space<vmem>>) attributes {dimension_semantics = [#tpu.dimension_semantics<parallel>, #tpu.dimension_semantics<parallel>, #tpu.dimension_semantics<arbitrary>], iteration_bounds = array<i64: 1, 1, 1>, scalar_prefetch = 0 : i64, scratch_operands = 1 : i64, tpu.core_type = #tpu.core_type<tc>, window_params = [{transform_indices = @transform_0, window_bounds = array<i64: 32, 32>}, {transform_indices = @transform_1, window_bounds = array<i64: 32, 128>}, {transform_indices = @transform_2, window_bounds = array<i64: 1, 128>}, {transform_indices = @transform_3, window_bounds = array<i64: 1, 128>}, {transform_indices = @transform_4, window_bounds = array<i64: 32, 128>}]} {
    %c0_i32 = arith.constant 0 : i32
    %0 = arith.cmpi eq, %arg2, %c0_i32 : i32
    %1 = arith.extui %0 : i1 to i32
    %c0_i32_0 = arith.constant 0 : i32
    %2 = arith.cmpi ne, %1, %c0_i32_0 : i32
    scf.if %2 {
      %cst_10 = arith.constant 0.000000e+00 : f32
      %12 = vector.broadcast %cst_10 : f32 to vector<32x128xf32>
      %c0_11 = arith.constant 0 : index
      %c0_12 = arith.constant 0 : index
      %13 = vector.load %arg8[%c0_11, %c0_12] : memref<32x128xf32, #tpu.memory_space<vmem>>, vector<32x128xf32>
      tpu.vector_store %arg8[%c0_11, %c0_12], %12 {strides = array<i32>} : memref<32x128xf32, #tpu.memory_space<vmem>>, vector<32x128xf32>,
    } else {
    }
    %c0 = arith.constant 0 : index
    %c0_1 = arith.constant 0 : index
    %3 = vector.load %arg8[%c0, %c0_1] : memref<32x128xf32, #tpu.memory_space<vmem>>, vector<32x128xf32>
    %c0_2 = arith.constant 0 : index
    %c0_3 = arith.constant 0 : index
    %4 = vector.load %arg3[%c0_2, %c0_3] : memref<32x32xbf16, #tpu.memory_space<vmem>>, vector<32x32xbf16>
    %c0_4 = arith.constant 0 : index
    %c0_5 = arith.constant 0 : index
    %5 = vector.load %arg4[%c0_4, %c0_5] : memref<32x128xbf16, #tpu.memory_space<vmem>>, vector<32x128xbf16>
    %cst = arith.constant dense<0.000000e+00> : vector<32x128xf32>
    %6 = tpu.matmul %4, %5, %cst {dimension_numbers = #tpu.dot_dimension_numbers<[1], [0], [0], [1], [0, 0, 1, 1], [], []>} : vector<32x32xbf16>, vector<32x128xbf16>, vector<32x128xf32> -> vector<32x128xf32>
    %7 = arith.addf %3, %6 : vector<32x128xf32>
    %c0_6 = arith.constant 0 : index
    %c0_7 = arith.constant 0 : index
    %8 = vector.load %arg8[%c0_6, %c0_7] : memref<32x128xf32, #tpu.memory_space<vmem>>, vector<32x128xf32>
    tpu.vector_store %arg8[%c0_6, %c0_7], %7 {strides = array<i32>} : memref<32x128xf32, #tpu.memory_space<vmem>>, vector<32x128xf32>,
    %c0_i32_8 = arith.constant 0 : i32
    %9 = arith.cmpi eq, %arg2, %c0_i32_8 : i32
    %10 = arith.extui %9 : i1 to i32
    %c0_i32_9 = arith.constant 0 : i32
    %11 = arith.cmpi ne, %10, %c0_i32_9 : i32
    scf.if %11 {
      %c0_10 = arith.constant 0 : index
      %c0_11 = arith.constant 0 : index
      %12 = vector.load %arg8[%c0_10, %c0_11] : memref<32x128xf32, #tpu.memory_space<vmem>>, vector<32x128xf32>
      %c0_12 = arith.constant 0 : index
      %c0_13 = arith.constant 0 : index
      %13 = vector.load %arg5[%c0_12, %c0_13] : memref<1x128xf32, #tpu.memory_space<vmem>>, vector<1x128xf32>
      %14 = vector.broadcast %13 : vector<1x128xf32> to vector<32x128xf32>
      %15 = arith.mulf %12, %14 : vector<32x128xf32>
      %c0_14 = arith.constant 0 : index
      %c0_15 = arith.constant 0 : index
      %16 = vector.load %arg6[%c0_14, %c0_15] : memref<1x128xf32, #tpu.memory_space<vmem>>, vector<1x128xf32>
      %17 = vector.broadcast %16 : vector<1x128xf32> to vector<32x128xf32>
      %18 = arith.addf %15, %17 : vector<32x128xf32>
      %19 = arith.truncf %18 : vector<32x128xf32> to vector<32x128xbf16>
      %c0_16 = arith.constant 0 : index
      %c0_17 = arith.constant 0 : index
      %20 = vector.load %arg7[%c0_16, %c0_17] : memref<32x128xbf16, #tpu.memory_space<vmem>>, vector<32x128xbf16>
      tpu.vector_store %arg7[%c0_16, %c0_17], %19 {strides = array<i32>} : memref<32x128xbf16, #tpu.memory_space<vmem>>, vector<32x128xbf16>,
    } else {
    }
    return
  }
  func.func @transform_0(%arg0: i32, %arg1: i32, %arg2: i32) -> (i32, i32) {
    %c0_i32 = arith.constant 0 : i32
    return %arg0, %arg2 : i32, i32
  }
  func.func @transform_1(%arg0: i32, %arg1: i32, %arg2: i32) -> (i32, i32) {
    %c0_i32 = arith.constant 0 : i32
    return %arg2, %arg1 : i32, i32
  }
  func.func @transform_2(%arg0: i32, %arg1: i32, %arg2: i32) -> (i32, i32) {
    %c0_i32 = arith.constant 0 : i32
    %c0_i32_0 = arith.constant 0 : i32
    return %c0_i32, %arg1 : i32, i32
  }
  func.func @transform_3(%arg0: i32, %arg1: i32, %arg2: i32) -> (i32, i32) {
    %c0_i32 = arith.constant 0 : i32
    %c0_i32_0 = arith.constant 0 : i32
    return %c0_i32, %arg1 : i32, i32
  }
  func.func @transform_4(%arg0: i32, %arg1: i32, %arg2: i32) -> (i32, i32) {
    %c0_i32 = arith.constant 0 : i32
    return %arg0, %arg1 : i32, i32
  }
}

module attributes {stable_mosaic.version = 11 : i64} {
  func.func @_mm_affine_kernel(%arg0: i32, %arg1: i32, %arg2: i32, %arg3: memref<16x640xbf16, #tpu.memory_space<vmem>>, %arg4: memref<640x128xbf16, #tpu.memory_space<vmem>>, %arg5: memref<1x128xf32, #tpu.memory_space<vmem>>, %arg6: memref<1x128xf32, #tpu.memory_space<vmem>>, %arg7: memref<16x128xbf16, #tpu.memory_space<vmem>>, %arg8: memref<16x128xf32, #tpu.memory_space<vmem>>) attributes {dimension_semantics = [#tpu.dimension_semantics<parallel>, #tpu.dimension_semantics<parallel>, #tpu.dimension_semantics<arbitrary>], iteration_bounds = array<i64: 1, 1, 1>, scalar_prefetch = 0 : i64, scratch_operands = 1 : i64, tpu.core_type = #tpu.core_type<tc>, window_params = [{transform_indices = @transform_0, window_bounds = array<i64: 16, 640>}, {transform_indices = @transform_1, window_bounds = array<i64: 640, 128>}, {transform_indices = @transform_2, window_bounds = array<i64: 1, 128>}, {transform_indices = @transform_3, window_bounds = array<i64: 1, 128>}, {transform_indices = @transform_4, window_bounds = array<i64: 16, 128>}]} {
    %c0_i32 = arith.constant 0 : i32
    %0 = arith.cmpi eq, %arg2, %c0_i32 : i32
    %1 = arith.extui %0 : i1 to i32
    %c0_i32_0 = arith.constant 0 : i32
    %2 = arith.cmpi ne, %1, %c0_i32_0 : i32
    scf.if %2 {
      %cst_10 = arith.constant 0.000000e+00 : f32
      %12 = vector.broadcast %cst_10 : f32 to vector<16x128xf32>
      %c0_11 = arith.constant 0 : index
      %c0_12 = arith.constant 0 : index
      %13 = vector.load %arg8[%c0_11, %c0_12] : memref<16x128xf32, #tpu.memory_space<vmem>>, vector<16x128xf32>
      tpu.vector_store %arg8[%c0_11, %c0_12], %12 {strides = array<i32>} : memref<16x128xf32, #tpu.memory_space<vmem>>, vector<16x128xf32>,
    } else {
    }
    %c0 = arith.constant 0 : index
    %c0_1 = arith.constant 0 : index
    %3 = vector.load %arg8[%c0, %c0_1] : memref<16x128xf32, #tpu.memory_space<vmem>>, vector<16x128xf32>
    %c0_2 = arith.constant 0 : index
    %c0_3 = arith.constant 0 : index
    %4 = vector.load %arg3[%c0_2, %c0_3] : memref<16x640xbf16, #tpu.memory_space<vmem>>, vector<16x640xbf16>
    %c0_4 = arith.constant 0 : index
    %c0_5 = arith.constant 0 : index
    %5 = vector.load %arg4[%c0_4, %c0_5] : memref<640x128xbf16, #tpu.memory_space<vmem>>, vector<640x128xbf16>
    %cst = arith.constant dense<0.000000e+00> : vector<16x128xf32>
    %6 = tpu.matmul %4, %5, %cst {dimension_numbers = #tpu.dot_dimension_numbers<[1], [0], [0], [1], [0, 0, 1, 1], [], []>} : vector<16x640xbf16>, vector<640x128xbf16>, vector<16x128xf32> -> vector<16x128xf32>
    %7 = arith.addf %3, %6 : vector<16x128xf32>
    %c0_6 = arith.constant 0 : index
    %c0_7 = arith.constant 0 : index
    %8 = vector.load %arg8[%c0_6, %c0_7] : memref<16x128xf32, #tpu.memory_space<vmem>>, vector<16x128xf32>
    tpu.vector_store %arg8[%c0_6, %c0_7], %7 {strides = array<i32>} : memref<16x128xf32, #tpu.memory_space<vmem>>, vector<16x128xf32>,
    %c0_i32_8 = arith.constant 0 : i32
    %9 = arith.cmpi eq, %arg2, %c0_i32_8 : i32
    %10 = arith.extui %9 : i1 to i32
    %c0_i32_9 = arith.constant 0 : i32
    %11 = arith.cmpi ne, %10, %c0_i32_9 : i32
    scf.if %11 {
      %c0_10 = arith.constant 0 : index
      %c0_11 = arith.constant 0 : index
      %12 = vector.load %arg8[%c0_10, %c0_11] : memref<16x128xf32, #tpu.memory_space<vmem>>, vector<16x128xf32>
      %c0_12 = arith.constant 0 : index
      %c0_13 = arith.constant 0 : index
      %13 = vector.load %arg5[%c0_12, %c0_13] : memref<1x128xf32, #tpu.memory_space<vmem>>, vector<1x128xf32>
      %14 = vector.broadcast %13 : vector<1x128xf32> to vector<16x128xf32>
      %15 = arith.mulf %12, %14 : vector<16x128xf32>
      %c0_14 = arith.constant 0 : index
      %c0_15 = arith.constant 0 : index
      %16 = vector.load %arg6[%c0_14, %c0_15] : memref<1x128xf32, #tpu.memory_space<vmem>>, vector<1x128xf32>
      %17 = vector.broadcast %16 : vector<1x128xf32> to vector<16x128xf32>
      %18 = arith.addf %15, %17 : vector<16x128xf32>
      %cst_16 = arith.constant 0.000000e+00 : f32
      %19 = vector.broadcast %cst_16 : f32 to vector<16x128xf32>
      %20 = arith.maximumf %18, %19 : vector<16x128xf32>
      %21 = arith.truncf %20 : vector<16x128xf32> to vector<16x128xbf16>
      %c0_17 = arith.constant 0 : index
      %c0_18 = arith.constant 0 : index
      %22 = vector.load %arg7[%c0_17, %c0_18] : memref<16x128xbf16, #tpu.memory_space<vmem>>, vector<16x128xbf16>
      tpu.vector_store %arg7[%c0_17, %c0_18], %21 {strides = array<i32>} : memref<16x128xbf16, #tpu.memory_space<vmem>>, vector<16x128xbf16>,
    } else {
    }
    return
  }
  func.func @transform_0(%arg0: i32, %arg1: i32, %arg2: i32) -> (i32, i32) {
    %c0_i32 = arith.constant 0 : i32
    return %arg0, %arg2 : i32, i32
  }
  func.func @transform_1(%arg0: i32, %arg1: i32, %arg2: i32) -> (i32, i32) {
    %c0_i32 = arith.constant 0 : i32
    return %arg2, %arg1 : i32, i32
  }
  func.func @transform_2(%arg0: i32, %arg1: i32, %arg2: i32) -> (i32, i32) {
    %c0_i32 = arith.constant 0 : i32
    %c0_i32_0 = arith.constant 0 : i32
    return %c0_i32, %arg1 : i32, i32
  }
  func.func @transform_3(%arg0: i32, %arg1: i32, %arg2: i32) -> (i32, i32) {
    %c0_i32 = arith.constant 0 : i32
    %c0_i32_0 = arith.constant 0 : i32
    return %c0_i32, %arg1 : i32, i32
  }
  func.func @transform_4(%arg0: i32, %arg1: i32, %arg2: i32) -> (i32, i32) {
    %c0_i32 = arith.constant 0 : i32
    return %arg0, %arg1 : i32, i32
  }
}

module attributes {stable_mosaic.version = 11 : i64} {
  func.func @_mm_affine_kernel(%arg0: i32, %arg1: i32, %arg2: i32, %arg3: memref<16x384xbf16, #tpu.memory_space<vmem>>, %arg4: memref<384x128xbf16, #tpu.memory_space<vmem>>, %arg5: memref<1x128xf32, #tpu.memory_space<vmem>>, %arg6: memref<1x128xf32, #tpu.memory_space<vmem>>, %arg7: memref<16x128xbf16, #tpu.memory_space<vmem>>, %arg8: memref<16x128xf32, #tpu.memory_space<vmem>>) attributes {dimension_semantics = [#tpu.dimension_semantics<parallel>, #tpu.dimension_semantics<parallel>, #tpu.dimension_semantics<arbitrary>], iteration_bounds = array<i64: 1, 1, 3>, scalar_prefetch = 0 : i64, scratch_operands = 1 : i64, tpu.core_type = #tpu.core_type<tc>, window_params = [{transform_indices = @transform_0, window_bounds = array<i64: 16, 384>}, {transform_indices = @transform_1, window_bounds = array<i64: 384, 128>}, {transform_indices = @transform_2, window_bounds = array<i64: 1, 128>}, {transform_indices = @transform_3, window_bounds = array<i64: 1, 128>}, {transform_indices = @transform_4, window_bounds = array<i64: 16, 128>}]} {
    %c0_i32 = arith.constant 0 : i32
    %0 = arith.cmpi eq, %arg2, %c0_i32 : i32
    %1 = arith.extui %0 : i1 to i32
    %c0_i32_0 = arith.constant 0 : i32
    %2 = arith.cmpi ne, %1, %c0_i32_0 : i32
    scf.if %2 {
      %cst_9 = arith.constant 0.000000e+00 : f32
      %12 = vector.broadcast %cst_9 : f32 to vector<16x128xf32>
      %c0_10 = arith.constant 0 : index
      %c0_11 = arith.constant 0 : index
      %13 = vector.load %arg8[%c0_10, %c0_11] : memref<16x128xf32, #tpu.memory_space<vmem>>, vector<16x128xf32>
      tpu.vector_store %arg8[%c0_10, %c0_11], %12 {strides = array<i32>} : memref<16x128xf32, #tpu.memory_space<vmem>>, vector<16x128xf32>,
    } else {
    }
    %c0 = arith.constant 0 : index
    %c0_1 = arith.constant 0 : index
    %3 = vector.load %arg8[%c0, %c0_1] : memref<16x128xf32, #tpu.memory_space<vmem>>, vector<16x128xf32>
    %c0_2 = arith.constant 0 : index
    %c0_3 = arith.constant 0 : index
    %4 = vector.load %arg3[%c0_2, %c0_3] : memref<16x384xbf16, #tpu.memory_space<vmem>>, vector<16x384xbf16>
    %c0_4 = arith.constant 0 : index
    %c0_5 = arith.constant 0 : index
    %5 = vector.load %arg4[%c0_4, %c0_5] : memref<384x128xbf16, #tpu.memory_space<vmem>>, vector<384x128xbf16>
    %cst = arith.constant dense<0.000000e+00> : vector<16x128xf32>
    %6 = tpu.matmul %4, %5, %cst {dimension_numbers = #tpu.dot_dimension_numbers<[1], [0], [0], [1], [0, 0, 1, 1], [], []>} : vector<16x384xbf16>, vector<384x128xbf16>, vector<16x128xf32> -> vector<16x128xf32>
    %7 = arith.addf %3, %6 : vector<16x128xf32>
    %c0_6 = arith.constant 0 : index
    %c0_7 = arith.constant 0 : index
    %8 = vector.load %arg8[%c0_6, %c0_7] : memref<16x128xf32, #tpu.memory_space<vmem>>, vector<16x128xf32>
    tpu.vector_store %arg8[%c0_6, %c0_7], %7 {strides = array<i32>} : memref<16x128xf32, #tpu.memory_space<vmem>>, vector<16x128xf32>,
    %c2_i32 = arith.constant 2 : i32
    %9 = arith.cmpi eq, %arg2, %c2_i32 : i32
    %10 = arith.extui %9 : i1 to i32
    %c0_i32_8 = arith.constant 0 : i32
    %11 = arith.cmpi ne, %10, %c0_i32_8 : i32
    scf.if %11 {
      %c0_9 = arith.constant 0 : index
      %c0_10 = arith.constant 0 : index
      %12 = vector.load %arg8[%c0_9, %c0_10] : memref<16x128xf32, #tpu.memory_space<vmem>>, vector<16x128xf32>
      %c0_11 = arith.constant 0 : index
      %c0_12 = arith.constant 0 : index
      %13 = vector.load %arg5[%c0_11, %c0_12] : memref<1x128xf32, #tpu.memory_space<vmem>>, vector<1x128xf32>
      %14 = vector.broadcast %13 : vector<1x128xf32> to vector<16x128xf32>
      %15 = arith.mulf %12, %14 : vector<16x128xf32>
      %c0_13 = arith.constant 0 : index
      %c0_14 = arith.constant 0 : index
      %16 = vector.load %arg6[%c0_13, %c0_14] : memref<1x128xf32, #tpu.memory_space<vmem>>, vector<1x128xf32>
      %17 = vector.broadcast %16 : vector<1x128xf32> to vector<16x128xf32>
      %18 = arith.addf %15, %17 : vector<16x128xf32>
      %19 = arith.truncf %18 : vector<16x128xf32> to vector<16x128xbf16>
      %c0_15 = arith.constant 0 : index
      %c0_16 = arith.constant 0 : index
      %20 = vector.load %arg7[%c0_15, %c0_16] : memref<16x128xbf16, #tpu.memory_space<vmem>>, vector<16x128xbf16>
      tpu.vector_store %arg7[%c0_15, %c0_16], %19 {strides = array<i32>} : memref<16x128xbf16, #tpu.memory_space<vmem>>, vector<16x128xbf16>,
    } else {
    }
    return
  }
  func.func @transform_0(%arg0: i32, %arg1: i32, %arg2: i32) -> (i32, i32) {
    %c0_i32 = arith.constant 0 : i32
    return %arg0, %arg2 : i32, i32
  }
  func.func @transform_1(%arg0: i32, %arg1: i32, %arg2: i32) -> (i32, i32) {
    %c0_i32 = arith.constant 0 : i32
    return %arg2, %arg1 : i32, i32
  }
  func.func @transform_2(%arg0: i32, %arg1: i32, %arg2: i32) -> (i32, i32) {
    %c0_i32 = arith.constant 0 : i32
    %c0_i32_0 = arith.constant 0 : i32
    return %c0_i32, %arg1 : i32, i32
  }
  func.func @transform_3(%arg0: i32, %arg1: i32, %arg2: i32) -> (i32, i32) {
    %c0_i32 = arith.constant 0 : i32
    %c0_i32_0 = arith.constant 0 : i32
    return %c0_i32, %arg1 : i32, i32
  }
  func.func @transform_4(%arg0: i32, %arg1: i32, %arg2: i32) -> (i32, i32) {
    %c0_i32 = arith.constant 0 : i32
    return %arg0, %arg1 : i32, i32
  }
}

module attributes {stable_mosaic.version = 11 : i64} {
  func.func @_cbam_channel_kernel(%arg0: i32, %arg1: memref<1x4x128xbf16, #tpu.memory_space<vmem>>, %arg2: memref<128x128xf32, #tpu.memory_space<vmem>>, %arg3: memref<128x128xf32, #tpu.memory_space<vmem>>, %arg4: memref<1x4x128xbf16, #tpu.memory_space<vmem>>, %arg5: memref<1x4x2xbf16, #tpu.memory_space<vmem>>) attributes {dimension_semantics = [#tpu.dimension_semantics<parallel>], iteration_bounds = array<i64: 2>, scalar_prefetch = 0 : i64, scratch_operands = 0 : i64, tpu.core_type = #tpu.core_type<tc>, window_params = [{transform_indices = @transform_0, window_bounds = array<i64: 1, 4, 128>}, {pipeline_mode = #tpu.pipeline_mode<synchronous>, transform_indices = @transform_1, window_bounds = array<i64: 128, 128>}, {pipeline_mode = #tpu.pipeline_mode<synchronous>, transform_indices = @transform_2, window_bounds = array<i64: 128, 128>}, {transform_indices = @transform_3, window_bounds = array<i64: 1, 4, 128>}, {transform_indices = @transform_4, window_bounds = array<i64: 1, 4, 2>}]} {
    %c0 = arith.constant 0 : index
    %c0_0 = arith.constant 0 : index
    %c0_1 = arith.constant 0 : index
    %0 = vector.load %arg1[%c0, %c0_0, %c0_1] : memref<1x4x128xbf16, #tpu.memory_space<vmem>>, vector<1x4x128xbf16>
    %1 = arith.extf %0 : vector<1x4x128xbf16> to vector<1x4x128xf32>
    %cst = arith.constant dense<0.000000e+00> : vector<1x128xf32>
    %2 = vector.multi_reduction <add>, %1, %cst [1] : vector<1x4x128xf32> to vector<1x128xf32>
    %cst_2 = arith.constant 4.000000e+00 : f32
    %3 = vector.broadcast %cst_2 : f32 to vector<1x128xf32>
    %4 = arith.divf %2, %3 : vector<1x128xf32>
    %cst_3 = arith.constant dense<0xFF800000> : vector<1x128xf32>
    %5 = vector.multi_reduction <maximumf>, %1, %cst_3 [1] : vector<1x4x128xf32> to vector<1x128xf32>
    %c0_4 = arith.constant 0 : index
    %c0_5 = arith.constant 0 : index
    %6 = vector.load %arg2[%c0_4, %c0_5] : memref<128x128xf32, #tpu.memory_space<vmem>>, vector<128x128xf32>
    %cst_6 = arith.constant dense<0.000000e+00> : vector<1x128xf32>
    %7 = tpu.matmul %4, %6, %cst_6 {dimension_numbers = #tpu.dot_dimension_numbers<[1], [0], [0], [1], [0, 0, 1, 1], [], []>} : vector<1x128xf32>, vector<128x128xf32>, vector<1x128xf32> -> vector<1x128xf32>
    %cst_7 = arith.constant 0.000000e+00 : f32
    %8 = vector.broadcast %cst_7 : f32 to vector<1x128xf32>
    %9 = arith.maximumf %7, %8 : vector<1x128xf32>
    %c0_8 = arith.constant 0 : index
    %c0_9 = arith.constant 0 : index
    %10 = vector.load %arg3[%c0_8, %c0_9] : memref<128x128xf32, #tpu.memory_space<vmem>>, vector<128x128xf32>
    %cst_10 = arith.constant dense<0.000000e+00> : vector<1x128xf32>
    %11 = tpu.matmul %9, %10, %cst_10 {dimension_numbers = #tpu.dot_dimension_numbers<[1], [0], [0], [1], [0, 0, 1, 1], [], []>} : vector<1x128xf32>, vector<128x128xf32>, vector<1x128xf32> -> vector<1x128xf32>
    %c0_11 = arith.constant 0 : index
    %c0_12 = arith.constant 0 : index
    %12 = vector.load %arg2[%c0_11, %c0_12] : memref<128x128xf32, #tpu.memory_space<vmem>>, vector<128x128xf32>
    %cst_13 = arith.constant dense<0.000000e+00> : vector<1x128xf32>
    %13 = tpu.matmul %5, %12, %cst_13 {dimension_numbers = #tpu.dot_dimension_numbers<[1], [0], [0], [1], [0, 0, 1, 1], [], []>} : vector<1x128xf32>, vector<128x128xf32>, vector<1x128xf32> -> vector<1x128xf32>
    %cst_14 = arith.constant 0.000000e+00 : f32
    %14 = vector.broadcast %cst_14 : f32 to vector<1x128xf32>
    %15 = arith.maximumf %13, %14 : vector<1x128xf32>
    %c0_15 = arith.constant 0 : index
    %c0_16 = arith.constant 0 : index
    %16 = vector.load %arg3[%c0_15, %c0_16] : memref<128x128xf32, #tpu.memory_space<vmem>>, vector<128x128xf32>
    %cst_17 = arith.constant dense<0.000000e+00> : vector<1x128xf32>
    %17 = tpu.matmul %15, %16, %cst_17 {dimension_numbers = #tpu.dot_dimension_numbers<[1], [0], [0], [1], [0, 0, 1, 1], [], []>} : vector<1x128xf32>, vector<128x128xf32>, vector<1x128xf32> -> vector<1x128xf32>
    %18 = arith.addf %11, %17 : vector<1x128xf32>
    %cst_18 = arith.constant 0.000000e+00 : f32
    %19 = vector.broadcast %cst_18 : f32 to vector<1x128xf32>
    %20 = arith.subf %19, %18 : vector<1x128xf32>
    %21 = math.exp %20 : vector<1x128xf32>
    %cst_19 = arith.constant 1.000000e+00 : f32
    %22 = vector.broadcast %cst_19 : f32 to vector<1x128xf32>
    %23 = arith.addf %22, %21 : vector<1x128xf32>
    %24 = tpu.reciprocal %23 {approx = true} : vector<1x128xf32> -> vector<1x128xf32>
    %25 = vector.shape_cast %24 : vector<1x128xf32> to vector<1x1x128xf32>
    %26 = vector.broadcast %25 : vector<1x1x128xf32> to vector<1x4x128xf32>
    %27 = arith.mulf %1, %26 : vector<1x4x128xf32>
    %28 = arith.truncf %27 : vector<1x4x128xf32> to vector<1x4x128xbf16>
    %c0_20 = arith.constant 0 : index
    %c0_21 = arith.constant 0 : index
    %c0_22 = arith.constant 0 : index
    %29 = vector.load %arg4[%c0_20, %c0_21, %c0_22] : memref<1x4x128xbf16, #tpu.memory_space<vmem>>, vector<1x4x128xbf16>
    tpu.vector_store %arg4[%c0_20, %c0_21, %c0_22], %28 {strides = array<i32>} : memref<1x4x128xbf16, #tpu.memory_space<vmem>>, vector<1x4x128xbf16>,
    %cst_23 = arith.constant dense<0.000000e+00> : vector<1x4xf32>
    %30 = vector.multi_reduction <add>, %27, %cst_23 [2] : vector<1x4x128xf32> to vector<1x4xf32>
    %31 = vector.shape_cast %30 : vector<1x4xf32> to vector<1x4x1xf32>
    %cst_24 = arith.constant 1.280000e+02 : f32
    %32 = vector.broadcast %cst_24 : f32 to vector<1x4x1xf32>
    %33 = arith.divf %31, %32 : vector<1x4x1xf32>
    %cst_25 = arith.constant dense<0xFF800000> : vector<1x4xf32>
    %34 = vector.multi_reduction <maximumf>, %27, %cst_25 [2] : vector<1x4x128xf32> to vector<1x4xf32>
    %35 = vector.shape_cast %34 : vector<1x4xf32> to vector<1x4x1xf32>
    %36 = tpu.concatenate %33, %35 in 2 : vector<1x4x1xf32>, vector<1x4x1xf32> -> vector<1x4x2xf32>
    %37 = arith.truncf %36 : vector<1x4x2xf32> to vector<1x4x2xbf16>
    %c0_26 = arith.constant 0 : index
    %c0_27 = arith.constant 0 : index
    %c0_28 = arith.constant 0 : index
    %38 = vector.load %arg5[%c0_26, %c0_27, %c0_28] : memref<1x4x2xbf16, #tpu.memory_space<vmem>>, vector<1x4x2xbf16>
    tpu.vector_store %arg5[%c0_26, %c0_27, %c0_28], %37 {strides = array<i32>} : memref<1x4x2xbf16, #tpu.memory_space<vmem>>, vector<1x4x2xbf16>,
    return
  }
  func.func @transform_0(%arg0: i32) -> (i32, i32, i32) {
    %c0_i32 = arith.constant 0 : i32
    %c0_i32_0 = arith.constant 0 : i32
    %c0_i32_1 = arith.constant 0 : i32
    return %arg0, %c0_i32, %c0_i32_0 : i32, i32, i32
  }
  func.func @transform_1(%arg0: i32) -> (i32, i32) {
    %c0_i32 = arith.constant 0 : i32
    %c0_i32_0 = arith.constant 0 : i32
    %c0_i32_1 = arith.constant 0 : i32
    return %c0_i32, %c0_i32_0 : i32, i32
  }
  func.func @transform_2(%arg0: i32) -> (i32, i32) {
    %c0_i32 = arith.constant 0 : i32
    %c0_i32_0 = arith.constant 0 : i32
    %c0_i32_1 = arith.constant 0 : i32
    return %c0_i32, %c0_i32_0 : i32, i32
  }
  func.func @transform_3(%arg0: i32) -> (i32, i32, i32) {
    %c0_i32 = arith.constant 0 : i32
    %c0_i32_0 = arith.constant 0 : i32
    %c0_i32_1 = arith.constant 0 : i32
    return %arg0, %c0_i32, %c0_i32_0 : i32, i32, i32
  }
  func.func @transform_4(%arg0: i32) -> (i32, i32, i32) {
    %c0_i32 = arith.constant 0 : i32
    %c0_i32_0 = arith.constant 0 : i32
    %c0_i32_1 = arith.constant 0 : i32
    return %arg0, %c0_i32, %c0_i32_0 : i32, i32, i32
  }
}

module attributes {stable_mosaic.version = 11 : i64} {
  func.func @_spatial_fused_kernel(%arg0: i32, %arg1: memref<16x128xbf16, #tpu.memory_space<vmem>>, %arg2: memref<128x128xbf16, #tpu.memory_space<vmem>>, %arg3: memref<16x128xbf16, #tpu.memory_space<vmem>>, %arg4: memref<16x128xbf16, #tpu.memory_space<vmem>>, %arg5: memref<16x128xbf16, #tpu.memory_space<vmem>>) attributes {dimension_semantics = [#tpu.dimension_semantics<parallel>], iteration_bounds = array<i64: 1>, scalar_prefetch = 0 : i64, scratch_operands = 0 : i64, tpu.core_type = #tpu.core_type<tc>, window_params = [{transform_indices = @transform_0, window_bounds = array<i64: 16, 128>}, {pipeline_mode = #tpu.pipeline_mode<synchronous>, transform_indices = @transform_1, window_bounds = array<i64: 128, 128>}, {transform_indices = @transform_2, window_bounds = array<i64: 16, 128>}, {transform_indices = @transform_3, window_bounds = array<i64: 16, 128>}, {transform_indices = @transform_4, window_bounds = array<i64: 16, 128>}]} {
    %c0 = arith.constant 0 : index
    %c0_0 = arith.constant 0 : index
    %0 = vector.load %arg1[%c0, %c0_0] : memref<16x128xbf16, #tpu.memory_space<vmem>>, vector<16x128xbf16>
    %c0_1 = arith.constant 0 : index
    %c0_2 = arith.constant 0 : index
    %1 = vector.load %arg2[%c0_1, %c0_2] : memref<128x128xbf16, #tpu.memory_space<vmem>>, vector<128x128xbf16>
    %cst = arith.constant dense<0.000000e+00> : vector<16x128xf32>
    %2 = tpu.matmul %0, %1, %cst {dimension_numbers = #tpu.dot_dimension_numbers<[1], [0], [0], [1], [0, 0, 1, 1], [], []>} : vector<16x128xbf16>, vector<128x128xbf16>, vector<16x128xf32> -> vector<16x128xf32>
    %cst_3 = arith.constant 0.000000e+00 : f32
    %3 = vector.broadcast %cst_3 : f32 to vector<16x128xf32>
    %4 = arith.subf %3, %2 : vector<16x128xf32>
    %5 = math.exp %4 : vector<16x128xf32>
    %cst_4 = arith.constant 1.000000e+00 : f32
    %6 = vector.broadcast %cst_4 : f32 to vector<16x128xf32>
    %7 = arith.addf %6, %5 : vector<16x128xf32>
    %8 = tpu.reciprocal %7 {approx = true} : vector<16x128xf32> -> vector<16x128xf32>
    %c0_5 = arith.constant 0 : index
    %c0_6 = arith.constant 0 : index
    %9 = vector.load %arg3[%c0_5, %c0_6] : memref<16x128xbf16, #tpu.memory_space<vmem>>, vector<16x128xbf16>
    %10 = arith.extf %9 : vector<16x128xbf16> to vector<16x128xf32>
    %11 = arith.mulf %10, %8 : vector<16x128xf32>
    %c0_7 = arith.constant 0 : index
    %c0_8 = arith.constant 0 : index
    %12 = vector.load %arg4[%c0_7, %c0_8] : memref<16x128xbf16, #tpu.memory_space<vmem>>, vector<16x128xbf16>
    %13 = arith.extf %12 : vector<16x128xbf16> to vector<16x128xf32>
    %14 = arith.addf %11, %13 : vector<16x128xf32>
    %cst_9 = arith.constant 0.000000e+00 : f32
    %15 = vector.broadcast %cst_9 : f32 to vector<16x128xf32>
    %16 = arith.maximumf %14, %15 : vector<16x128xf32>
    %17 = arith.truncf %16 : vector<16x128xf32> to vector<16x128xbf16>
    %c0_10 = arith.constant 0 : index
    %c0_11 = arith.constant 0 : index
    %18 = vector.load %arg5[%c0_10, %c0_11] : memref<16x128xbf16, #tpu.memory_space<vmem>>, vector<16x128xbf16>
    tpu.vector_store %arg5[%c0_10, %c0_11], %17 {strides = array<i32>} : memref<16x128xbf16, #tpu.memory_space<vmem>>, vector<16x128xbf16>,
    return
  }
  func.func @transform_0(%arg0: i32) -> (i32, i32) {
    %c0_i32 = arith.constant 0 : i32
    %c0_i32_0 = arith.constant 0 : i32
    return %arg0, %c0_i32 : i32, i32
  }
  func.func @transform_1(%arg0: i32) -> (i32, i32) {
    %c0_i32 = arith.constant 0 : i32
    %c0_i32_0 = arith.constant 0 : i32
    %c0_i32_1 = arith.constant 0 : i32
    return %c0_i32, %c0_i32_0 : i32, i32
  }
  func.func @transform_2(%arg0: i32) -> (i32, i32) {
    %c0_i32 = arith.constant 0 : i32
    %c0_i32_0 = arith.constant 0 : i32
    return %arg0, %c0_i32 : i32, i32
  }
  func.func @transform_3(%arg0: i32) -> (i32, i32) {
    %c0_i32 = arith.constant 0 : i32
    %c0_i32_0 = arith.constant 0 : i32
    return %arg0, %c0_i32 : i32, i32
  }
  func.func @transform_4(%arg0: i32) -> (i32, i32) {
    %c0_i32 = arith.constant 0 : i32
    %c0_i32_0 = arith.constant 0 : i32
    return %arg0, %c0_i32 : i32, i32
  }
}

module attributes {stable_mosaic.version = 11 : i64} {
  func.func @_mm_affine_kernel(%arg0: i32, %arg1: i32, %arg2: i32, %arg3: memref<16x64xbf16, #tpu.memory_space<vmem>>, %arg4: memref<64x128xbf16, #tpu.memory_space<vmem>>, %arg5: memref<1x128xf32, #tpu.memory_space<vmem>>, %arg6: memref<1x128xf32, #tpu.memory_space<vmem>>, %arg7: memref<16x128xbf16, #tpu.memory_space<vmem>>, %arg8: memref<16x128xf32, #tpu.memory_space<vmem>>) attributes {dimension_semantics = [#tpu.dimension_semantics<parallel>, #tpu.dimension_semantics<parallel>, #tpu.dimension_semantics<arbitrary>], iteration_bounds = array<i64: 1, 1, 1>, scalar_prefetch = 0 : i64, scratch_operands = 1 : i64, tpu.core_type = #tpu.core_type<tc>, window_params = [{transform_indices = @transform_0, window_bounds = array<i64: 16, 64>}, {transform_indices = @transform_1, window_bounds = array<i64: 64, 128>}, {transform_indices = @transform_2, window_bounds = array<i64: 1, 128>}, {transform_indices = @transform_3, window_bounds = array<i64: 1, 128>}, {transform_indices = @transform_4, window_bounds = array<i64: 16, 128>}]} {
    %c0_i32 = arith.constant 0 : i32
    %0 = arith.cmpi eq, %arg2, %c0_i32 : i32
    %1 = arith.extui %0 : i1 to i32
    %c0_i32_0 = arith.constant 0 : i32
    %2 = arith.cmpi ne, %1, %c0_i32_0 : i32
    scf.if %2 {
      %cst_10 = arith.constant 0.000000e+00 : f32
      %12 = vector.broadcast %cst_10 : f32 to vector<16x128xf32>
      %c0_11 = arith.constant 0 : index
      %c0_12 = arith.constant 0 : index
      %13 = vector.load %arg8[%c0_11, %c0_12] : memref<16x128xf32, #tpu.memory_space<vmem>>, vector<16x128xf32>
      tpu.vector_store %arg8[%c0_11, %c0_12], %12 {strides = array<i32>} : memref<16x128xf32, #tpu.memory_space<vmem>>, vector<16x128xf32>,
    } else {
    }
    %c0 = arith.constant 0 : index
    %c0_1 = arith.constant 0 : index
    %3 = vector.load %arg8[%c0, %c0_1] : memref<16x128xf32, #tpu.memory_space<vmem>>, vector<16x128xf32>
    %c0_2 = arith.constant 0 : index
    %c0_3 = arith.constant 0 : index
    %4 = vector.load %arg3[%c0_2, %c0_3] : memref<16x64xbf16, #tpu.memory_space<vmem>>, vector<16x64xbf16>
    %c0_4 = arith.constant 0 : index
    %c0_5 = arith.constant 0 : index
    %5 = vector.load %arg4[%c0_4, %c0_5] : memref<64x128xbf16, #tpu.memory_space<vmem>>, vector<64x128xbf16>
    %cst = arith.constant dense<0.000000e+00> : vector<16x128xf32>
    %6 = tpu.matmul %4, %5, %cst {dimension_numbers = #tpu.dot_dimension_numbers<[1], [0], [0], [1], [0, 0, 1, 1], [], []>} : vector<16x64xbf16>, vector<64x128xbf16>, vector<16x128xf32> -> vector<16x128xf32>
    %7 = arith.addf %3, %6 : vector<16x128xf32>
    %c0_6 = arith.constant 0 : index
    %c0_7 = arith.constant 0 : index
    %8 = vector.load %arg8[%c0_6, %c0_7] : memref<16x128xf32, #tpu.memory_space<vmem>>, vector<16x128xf32>
    tpu.vector_store %arg8[%c0_6, %c0_7], %7 {strides = array<i32>} : memref<16x128xf32, #tpu.memory_space<vmem>>, vector<16x128xf32>,
    %c0_i32_8 = arith.constant 0 : i32
    %9 = arith.cmpi eq, %arg2, %c0_i32_8 : i32
    %10 = arith.extui %9 : i1 to i32
    %c0_i32_9 = arith.constant 0 : i32
    %11 = arith.cmpi ne, %10, %c0_i32_9 : i32
    scf.if %11 {
      %c0_10 = arith.constant 0 : index
      %c0_11 = arith.constant 0 : index
      %12 = vector.load %arg8[%c0_10, %c0_11] : memref<16x128xf32, #tpu.memory_space<vmem>>, vector<16x128xf32>
      %c0_12 = arith.constant 0 : index
      %c0_13 = arith.constant 0 : index
      %13 = vector.load %arg5[%c0_12, %c0_13] : memref<1x128xf32, #tpu.memory_space<vmem>>, vector<1x128xf32>
      %14 = vector.broadcast %13 : vector<1x128xf32> to vector<16x128xf32>
      %15 = arith.mulf %12, %14 : vector<16x128xf32>
      %c0_14 = arith.constant 0 : index
      %c0_15 = arith.constant 0 : index
      %16 = vector.load %arg6[%c0_14, %c0_15] : memref<1x128xf32, #tpu.memory_space<vmem>>, vector<1x128xf32>
      %17 = vector.broadcast %16 : vector<1x128xf32> to vector<16x128xf32>
      %18 = arith.addf %15, %17 : vector<16x128xf32>
      %19 = arith.truncf %18 : vector<16x128xf32> to vector<16x128xbf16>
      %c0_16 = arith.constant 0 : index
      %c0_17 = arith.constant 0 : index
      %20 = vector.load %arg7[%c0_16, %c0_17] : memref<16x128xbf16, #tpu.memory_space<vmem>>, vector<16x128xbf16>
      tpu.vector_store %arg7[%c0_16, %c0_17], %19 {strides = array<i32>} : memref<16x128xbf16, #tpu.memory_space<vmem>>, vector<16x128xbf16>,
    } else {
    }
    return
  }
  func.func @transform_0(%arg0: i32, %arg1: i32, %arg2: i32) -> (i32, i32) {
    %c0_i32 = arith.constant 0 : i32
    return %arg0, %arg2 : i32, i32
  }
  func.func @transform_1(%arg0: i32, %arg1: i32, %arg2: i32) -> (i32, i32) {
    %c0_i32 = arith.constant 0 : i32
    return %arg2, %arg1 : i32, i32
  }
  func.func @transform_2(%arg0: i32, %arg1: i32, %arg2: i32) -> (i32, i32) {
    %c0_i32 = arith.constant 0 : i32
    %c0_i32_0 = arith.constant 0 : i32
    return %c0_i32, %arg1 : i32, i32
  }
  func.func @transform_3(%arg0: i32, %arg1: i32, %arg2: i32) -> (i32, i32) {
    %c0_i32 = arith.constant 0 : i32
    %c0_i32_0 = arith.constant 0 : i32
    return %c0_i32, %arg1 : i32, i32
  }
  func.func @transform_4(%arg0: i32, %arg1: i32, %arg2: i32) -> (i32, i32) {
    %c0_i32 = arith.constant 0 : i32
    return %arg0, %arg1 : i32, i32
  }
}

module attributes {stable_mosaic.version = 11 : i64} {
  func.func @_pool_proj_kernel(%arg0: i32, %arg1: memref<1x4x128xbf16, #tpu.memory_space<vmem>>, %arg2: memref<128x128xf32, #tpu.memory_space<vmem>>, %arg3: memref<1x128xf32, #tpu.memory_space<vmem>>, %arg4: memref<1x1x128xf32, #tpu.memory_space<vmem>>) attributes {dimension_semantics = [#tpu.dimension_semantics<parallel>], iteration_bounds = array<i64: 2>, scalar_prefetch = 0 : i64, scratch_operands = 0 : i64, tpu.core_type = #tpu.core_type<tc>, window_params = [{transform_indices = @transform_0, window_bounds = array<i64: 1, 4, 128>}, {pipeline_mode = #tpu.pipeline_mode<synchronous>, transform_indices = @transform_1, window_bounds = array<i64: 128, 128>}, {pipeline_mode = #tpu.pipeline_mode<synchronous>, transform_indices = @transform_2, window_bounds = array<i64: 1, 128>}, {transform_indices = @transform_3, window_bounds = array<i64: 1, 1, 128>}]} {
    %c0 = arith.constant 0 : index
    %c0_0 = arith.constant 0 : index
    %c0_1 = arith.constant 0 : index
    %0 = vector.load %arg1[%c0, %c0_0, %c0_1] : memref<1x4x128xbf16, #tpu.memory_space<vmem>>, vector<1x4x128xbf16>
    %1 = arith.extf %0 : vector<1x4x128xbf16> to vector<1x4x128xf32>
    %cst = arith.constant dense<0.000000e+00> : vector<1x128xf32>
    %2 = vector.multi_reduction <add>, %1, %cst [1] : vector<1x4x128xf32> to vector<1x128xf32>
    %cst_2 = arith.constant 4.000000e+00 : f32
    %3 = vector.broadcast %cst_2 : f32 to vector<1x128xf32>
    %4 = arith.divf %2, %3 : vector<1x128xf32>
    %c0_3 = arith.constant 0 : index
    %c0_4 = arith.constant 0 : index
    %5 = vector.load %arg2[%c0_3, %c0_4] : memref<128x128xf32, #tpu.memory_space<vmem>>, vector<128x128xf32>
    %cst_5 = arith.constant dense<0.000000e+00> : vector<1x128xf32>
    %6 = tpu.matmul %4, %5, %cst_5 {dimension_numbers = #tpu.dot_dimension_numbers<[1], [0], [0], [1], [0, 0, 1, 1], [], []>} : vector<1x128xf32>, vector<128x128xf32>, vector<1x128xf32> -> vector<1x128xf32>
    %c0_6 = arith.constant 0 : index
    %c0_7 = arith.constant 0 : index
    %7 = vector.load %arg3[%c0_6, %c0_7] : memref<1x128xf32, #tpu.memory_space<vmem>>, vector<1x128xf32>
    %8 = arith.addf %6, %7 : vector<1x128xf32>
    %9 = vector.shape_cast %8 : vector<1x128xf32> to vector<1x1x128xf32>
    %c0_8 = arith.constant 0 : index
    %c0_9 = arith.constant 0 : index
    %c0_10 = arith.constant 0 : index
    %10 = vector.load %arg4[%c0_8, %c0_9, %c0_10] : memref<1x1x128xf32, #tpu.memory_space<vmem>>, vector<1x1x128xf32>
    tpu.vector_store %arg4[%c0_8, %c0_9, %c0_10], %9 {strides = array<i32>} : memref<1x1x128xf32, #tpu.memory_space<vmem>>, vector<1x1x128xf32>,
    return
  }
  func.func @transform_0(%arg0: i32) -> (i32, i32, i32) {
    %c0_i32 = arith.constant 0 : i32
    %c0_i32_0 = arith.constant 0 : i32
    %c0_i32_1 = arith.constant 0 : i32
    return %arg0, %c0_i32, %c0_i32_0 : i32, i32, i32
  }
  func.func @transform_1(%arg0: i32) -> (i32, i32) {
    %c0_i32 = arith.constant 0 : i32
    %c0_i32_0 = arith.constant 0 : i32
    %c0_i32_1 = arith.constant 0 : i32
    return %c0_i32, %c0_i32_0 : i32, i32
  }
  func.func @transform_2(%arg0: i32) -> (i32, i32) {
    %c0_i32 = arith.constant 0 : i32
    %c0_i32_0 = arith.constant 0 : i32
    %c0_i32_1 = arith.constant 0 : i32
    return %c0_i32, %c0_i32_0 : i32, i32
  }
  func.func @transform_3(%arg0: i32) -> (i32, i32, i32) {
    %c0_i32 = arith.constant 0 : i32
    %c0_i32_0 = arith.constant 0 : i32
    %c0_i32_1 = arith.constant 0 : i32
    return %arg0, %c0_i32, %c0_i32_0 : i32, i32, i32
  }
}

module attributes {stable_mosaic.version = 11 : i64} {
  func.func @_mm_affine_kernel(%arg0: i32, %arg1: i32, %arg2: i32, %arg3: memref<16x384xbf16, #tpu.memory_space<vmem>>, %arg4: memref<384x128xbf16, #tpu.memory_space<vmem>>, %arg5: memref<1x128xf32, #tpu.memory_space<vmem>>, %arg6: memref<1x128xf32, #tpu.memory_space<vmem>>, %arg7: memref<16x128xbf16, #tpu.memory_space<vmem>>, %arg8: memref<16x128xf32, #tpu.memory_space<vmem>>) attributes {dimension_semantics = [#tpu.dimension_semantics<parallel>, #tpu.dimension_semantics<parallel>, #tpu.dimension_semantics<arbitrary>], iteration_bounds = array<i64: 1, 1, 3>, scalar_prefetch = 0 : i64, scratch_operands = 1 : i64, tpu.core_type = #tpu.core_type<tc>, window_params = [{transform_indices = @transform_0, window_bounds = array<i64: 16, 384>}, {transform_indices = @transform_1, window_bounds = array<i64: 384, 128>}, {transform_indices = @transform_2, window_bounds = array<i64: 1, 128>}, {transform_indices = @transform_3, window_bounds = array<i64: 1, 128>}, {transform_indices = @transform_4, window_bounds = array<i64: 16, 128>}]} {
    %c0_i32 = arith.constant 0 : i32
    %0 = arith.cmpi eq, %arg2, %c0_i32 : i32
    %1 = arith.extui %0 : i1 to i32
    %c0_i32_0 = arith.constant 0 : i32
    %2 = arith.cmpi ne, %1, %c0_i32_0 : i32
    scf.if %2 {
      %cst_9 = arith.constant 0.000000e+00 : f32
      %12 = vector.broadcast %cst_9 : f32 to vector<16x128xf32>
      %c0_10 = arith.constant 0 : index
      %c0_11 = arith.constant 0 : index
      %13 = vector.load %arg8[%c0_10, %c0_11] : memref<16x128xf32, #tpu.memory_space<vmem>>, vector<16x128xf32>
      tpu.vector_store %arg8[%c0_10, %c0_11], %12 {strides = array<i32>} : memref<16x128xf32, #tpu.memory_space<vmem>>, vector<16x128xf32>,
    } else {
    }
    %c0 = arith.constant 0 : index
    %c0_1 = arith.constant 0 : index
    %3 = vector.load %arg8[%c0, %c0_1] : memref<16x128xf32, #tpu.memory_space<vmem>>, vector<16x128xf32>
    %c0_2 = arith.constant 0 : index
    %c0_3 = arith.constant 0 : index
    %4 = vector.load %arg3[%c0_2, %c0_3] : memref<16x384xbf16, #tpu.memory_space<vmem>>, vector<16x384xbf16>
    %c0_4 = arith.constant 0 : index
    %c0_5 = arith.constant 0 : index
    %5 = vector.load %arg4[%c0_4, %c0_5] : memref<384x128xbf16, #tpu.memory_space<vmem>>, vector<384x128xbf16>
    %cst = arith.constant dense<0.000000e+00> : vector<16x128xf32>
    %6 = tpu.matmul %4, %5, %cst {dimension_numbers = #tpu.dot_dimension_numbers<[1], [0], [0], [1], [0, 0, 1, 1], [], []>} : vector<16x384xbf16>, vector<384x128xbf16>, vector<16x128xf32> -> vector<16x128xf32>
    %7 = arith.addf %3, %6 : vector<16x128xf32>
    %c0_6 = arith.constant 0 : index
    %c0_7 = arith.constant 0 : index
    %8 = vector.load %arg8[%c0_6, %c0_7] : memref<16x128xf32, #tpu.memory_space<vmem>>, vector<16x128xf32>
    tpu.vector_store %arg8[%c0_6, %c0_7], %7 {strides = array<i32>} : memref<16x128xf32, #tpu.memory_space<vmem>>, vector<16x128xf32>,
    %c2_i32 = arith.constant 2 : i32
    %9 = arith.cmpi eq, %arg2, %c2_i32 : i32
    %10 = arith.extui %9 : i1 to i32
    %c0_i32_8 = arith.constant 0 : i32
    %11 = arith.cmpi ne, %10, %c0_i32_8 : i32
    scf.if %11 {
      %c0_9 = arith.constant 0 : index
      %c0_10 = arith.constant 0 : index
      %12 = vector.load %arg8[%c0_9, %c0_10] : memref<16x128xf32, #tpu.memory_space<vmem>>, vector<16x128xf32>
      %c0_11 = arith.constant 0 : index
      %c0_12 = arith.constant 0 : index
      %13 = vector.load %arg5[%c0_11, %c0_12] : memref<1x128xf32, #tpu.memory_space<vmem>>, vector<1x128xf32>
      %14 = vector.broadcast %13 : vector<1x128xf32> to vector<16x128xf32>
      %15 = arith.mulf %12, %14 : vector<16x128xf32>
      %c0_13 = arith.constant 0 : index
      %c0_14 = arith.constant 0 : index
      %16 = vector.load %arg6[%c0_13, %c0_14] : memref<1x128xf32, #tpu.memory_space<vmem>>, vector<1x128xf32>
      %17 = vector.broadcast %16 : vector<1x128xf32> to vector<16x128xf32>
      %18 = arith.addf %15, %17 : vector<16x128xf32>
      %cst_15 = arith.constant 0.000000e+00 : f32
      %19 = vector.broadcast %cst_15 : f32 to vector<16x128xf32>
      %20 = arith.maximumf %18, %19 : vector<16x128xf32>
      %21 = arith.truncf %20 : vector<16x128xf32> to vector<16x128xbf16>
      %c0_16 = arith.constant 0 : index
      %c0_17 = arith.constant 0 : index
      %22 = vector.load %arg7[%c0_16, %c0_17] : memref<16x128xbf16, #tpu.memory_space<vmem>>, vector<16x128xbf16>
      tpu.vector_store %arg7[%c0_16, %c0_17], %21 {strides = array<i32>} : memref<16x128xbf16, #tpu.memory_space<vmem>>, vector<16x128xbf16>,
    } else {
    }
    return
  }
  func.func @transform_0(%arg0: i32, %arg1: i32, %arg2: i32) -> (i32, i32) {
    %c0_i32 = arith.constant 0 : i32
    return %arg0, %arg2 : i32, i32
  }
  func.func @transform_1(%arg0: i32, %arg1: i32, %arg2: i32) -> (i32, i32) {
    %c0_i32 = arith.constant 0 : i32
    return %arg2, %arg1 : i32, i32
  }
  func.func @transform_2(%arg0: i32, %arg1: i32, %arg2: i32) -> (i32, i32) {
    %c0_i32 = arith.constant 0 : i32
    %c0_i32_0 = arith.constant 0 : i32
    return %c0_i32, %arg1 : i32, i32
  }
  func.func @transform_3(%arg0: i32, %arg1: i32, %arg2: i32) -> (i32, i32) {
    %c0_i32 = arith.constant 0 : i32
    %c0_i32_0 = arith.constant 0 : i32
    return %c0_i32, %arg1 : i32, i32
  }
  func.func @transform_4(%arg0: i32, %arg1: i32, %arg2: i32) -> (i32, i32) {
    %c0_i32 = arith.constant 0 : i32
    return %arg0, %arg1 : i32, i32
  }
}

</mosaic_0001>

<llo_original>
// kernel: frame_encoder_forward.16
$region0: #{frame_encoder_forward.16}
  #allocation0 [shape = 'u32[]', space=smem, size = 0x4, offset = 0x4, fixed_abs, tag = 'smem constant byte address 0x4 - core index']
  #allocation1 [shape = 'u32[72,128]{1,0:T(1,128)}', space=vmem, size = 0x9000, scoped, tag = 'internal scratch']
  #allocation2 [shape = 'f32[128,128]{1,0:T(8,128)}', space=vmem, size = 0x10000, scoped, tag = 'scratch operand']
  %s0 = inlined_call_operand.vmem [shape: bf16[128,128], index: 0, kind: input, shape index: {}]
  %s1 = inlined_call_operand.vmem [shape: bf16[128,128], index: 1, kind: input, shape index: {}]
  %s2 = inlined_call_operand.vmem [shape: f32[1,128], index: 2, kind: input, shape index: {}]
  %s3 = inlined_call_operand.vmem [shape: f32[1,128], index: 3, kind: input, shape index: {}]
  %s4 = inlined_call_operand.vmem [shape: bf16[128,128], index: 4, kind: output, shape index: {}]
  %s5 = sld [smem:[#allocation0]]
  $region34: #{frame_encoder_forward.16} parent=0
    _
  %s7 = ssub.s32 1, %s5
  %s8 = scalar_select 0, %s7, %s5
  // Predicated region
  $region2: #{frame_encoder_forward.16} parent=0 // pred_check
    _
  $region3: #{frame_encoder_forward.16} parent=0 // pred_check_branch
    %10 = sbr.rel (0) target = $region5
  $region4: #{frame_encoder_forward.16} parent=0 // pred_region
    _
  $region5: #{frame_encoder_forward.16} parent=0 // pred_fallthru
    _
  // Predicated region
  $region6: #{frame_encoder_forward.16} parent=0 // pred_check
    _
  $region7: #{frame_encoder_forward.16} parent=0 // pred_check_branch
    %12 = sbr.rel (0) target = $region9
  $region8: #{frame_encoder_forward.16} parent=0 // pred_region
    _
  $region9: #{frame_encoder_forward.16} parent=0 // pred_fallthru
    _
  // Predicated region
  $region10: #{frame_encoder_forward.16} parent=0 // pred_check
    _
  $region11: #{frame_encoder_forward.16} parent=0 // pred_check_branch
    %14 = sbr.rel (0) target = $region13
  $region12: #{frame_encoder_forward.16} parent=0 // pred_region
    _
  $region13: #{frame_encoder_forward.16} parent=0 // pred_fallthru
    _
  // Predicated region
  $region14: #{frame_encoder_forward.16} parent=0 // pred_check
    _
  $region15: #{frame_encoder_forward.16} parent=0 // pred_check_branch
    %16 = sbr.rel (0) target = $region17
  $region16: #{frame_encoder_forward.16} parent=0 // pred_region
    _
  $region17: #{frame_encoder_forward.16} parent=0 // pred_fallthru
    _
  %p17 = scmp.eq.s32.totalorder 0, 0
  // Predicated region
  $region18: #{frame_encoder_forward.16} parent=0 // pred_check
    %p18 = pneg %p17
  $region19: #{frame_encoder_forward.16} parent=0 // pred_check_branch
    %20 = sbr.rel (%p18) target = $region21
  $region20: #{frame_encoder_forward.16} parent=0 // pred_region
    %21 = vst [vmem:[#allocation2] sm:$0xff] 0.0
    %22 = vst [vmem:[#allocation2 + $0x8] sm:$0xff] 0.0
    %23 = vst [vmem:[#allocation2 + $0x10] sm:$0xff] 0.0
    %24 = vst [vmem:[#allocation2 + $0x18] sm:$0xff] 0.0
    %25 = vst [vmem:[#allocation2 + $0x20] sm:$0xff] 0.0
    %26 = vst [vmem:[#allocation2 + $0x28] sm:$0xff] 0.0
    %27 = vst [vmem:[#allocation2 + $0x30] sm:$0xff] 0.0
    %28 = vst [vmem:[#allocation2 + $0x38] sm:$0xff] 0.0
    %29 = vst [vmem:[#allocation2 + $0x40] sm:$0xff] 0.0
    %30 = vst [vmem:[#allocation2 + $0x48] sm:$0xff] 0.0
    %31 = vst [vmem:[#allocation2 + $0x50] sm:$0xff] 0.0
    %32 = vst [vmem:[#allocation2 + $0x58] sm:$0xff] 0.0
    %33 = vst [vmem:[#allocation2 + $0x60] sm:$0xff] 0.0
    %34 = vst [vmem:[#allocation2 + $0x68] sm:$0xff] 0.0
    %35 = vst [vmem:[#allocation2 + $0x70] sm:$0xff] 0.0
    %36 = vst [vmem:[#allocation2 + $0x78] sm:$0xff] 0.0
  $region21: #{frame_encoder_forward.16} parent=0 // pred_fallthru
    _
  %v37 = vld [vmem:[#allocation2] sm:$0xff]
  %v38 = vld [vmem:[#allocation2 + $0x8] sm:$0xff]
  %v39 = vld [vmem:[#allocation2 + $0x10] sm:$0xff]
  %v40 = vld [vmem:[#allocation2 + $0x18] sm:$0xff]
  %v41 = vld [vmem:[#allocation2 + $0x20] sm:$0xff]
  %v42 = vld [vmem:[#allocation2 + $0x28] sm:$0xff]
  %v43 = vld [vmem:[#allocation2 + $0x30] sm:$0xff]
  %v44 = vld [vmem:[#allocation2 + $0x38] sm:$0xff]
  %v45 = vld [vmem:[#allocation2 + $0x40] sm:$0xff]
  %v46 = vld [vmem:[#allocation2 + $0x48] sm:$0xff]
  %v47 = vld [vmem:[#allocation2 + $0x50] sm:$0xff]
  %v48 = vld [vmem:[#allocation2 + $0x58] sm:$0xff]
  %v49 = vld [vmem:[#allocation2 + $0x60] sm:$0xff]
  %v50 = vld [vmem:[#allocation2 + $0x68] sm:$0xff]
  %v51 = vld [vmem:[#allocation2 + $0x70] sm:$0xff]
  %v52 = vld [vmem:[#allocation2 + $0x78] sm:$0xff]
  %v53 = vld [vmem:[%s0] sm:$0xf]
  %v54 = vld [vmem:[%s0 + $0x4] sm:$0xf]
  %v55 = vld [vmem:[%s0 + $0x8] sm:$0xf]
  %v56 = vld [vmem:[%s0 + $0xc] sm:$0xf]
  %v57 = vld [vmem:[%s0 + $0x10] sm:$0xf]
  %v58 = vld [vmem:[%s0 + $0x14] sm:$0xf]
  %v59 = vld [vmem:[%s0 + $0x18] sm:$0xf]
  %v60 = vld [vmem:[%s0 + $0x1c] sm:$0xf]
  %v61 = vld [vmem:[%s0 + $0x20] sm:$0xf]
  %v62 = vld [vmem:[%s0 + $0x24] sm:$0xf]
  %v63 = vld [vmem:[%s0 + $0x28] sm:$0xf]
  %v64 = vld [vmem:[%s0 + $0x2c] sm:$0xf]
  %v65 = vld [vmem:[%s0 + $0x30] sm:$0xf]
  %v66 = vld [vmem:[%s0 + $0x34] sm:$0xf]
  %v67 = vld [vmem:[%s0 + $0x38] sm:$0xf]
  %v68 = vld [vmem:[%s0 + $0x3c] sm:$0xf]
  %v69 = vld [vmem:[%s1] sm:$0xf]
  %v70 = vld [vmem:[%s1 + $0x4] sm:$0xf]
  %v71 = vld [vmem:[%s1 + $0x8] sm:$0xf]
  %v72 = vld [vmem:[%s1 + $0xc] sm:$0xf]
  %v73 = vld [vmem:[%s1 + $0x10] sm:$0xf]
  %v74 = vld [vmem:[%s1 + $0x14] sm:$0xf]
  %v75 = vld [vmem:[%s1 + $0x18] sm:$0xf]
  %v76 = vld [vmem:[%s1 + $0x1c] sm:$0xf]
  %v77 = vld [vmem:[%s1 + $0x20] sm:$0xf]
  %v78 = vld [vmem:[%s1 + $0x24] sm:$0xf]
  %v79 = vld [vmem:[%s1 + $0x28] sm:$0xf]
  %v80 = vld [vmem:[%s1 + $0x2c] sm:$0xf]
  %v81 = vld [vmem:[%s1 + $0x30] sm:$0xf]
  %v82 = vld [vmem:[%s1 + $0x34] sm:$0xf]
  %v83 = vld [vmem:[%s1 + $0x38] sm:$0xf]
  %v84 = vld [vmem:[%s1 + $0x3c] sm:$0xf]
  %v101 = vunpack.c.l.b16 %v53
  %v102 = vunpack.c.l.b16 %v54
  %v103 = vunpack.c.l.b16 %v55
  %v104 = vunpack.c.l.b16 %v56
  %v105 = vunpack.c.l.b16 %v57
  %v106 = vunpack.c.l.b16 %v58
  %v107 = vunpack.c.l.b16 %v59
  %v108 = vunpack.c.l.b16 %v60
  %v109 = vunpack.c.l.b16 %v61
  %v110 = vunpack.c.l.b16 %v62
  %v111 = vunpack.c.l.b16 %v63
  %v112 = vunpack.c.l.b16 %v64
  %v113 = vunpack.c.l.b16 %v65
  %v114 = vunpack.c.l.b16 %v66
  %v115 = vunpack.c.l.b16 %v67
  %v116 = vunpack.c.l.b16 %v68
  %v117 = vpack.c.b16 %v102, %v101
  %v118 = vpack.c.b16 %v104, %v103
  %v119 = vpack.c.b16 %v106, %v105
  %v120 = vpack.c.b16 %v108, %v107
  %v121 = vpack.c.b16 %v110, %v109
  %v122 = vpack.c.b16 %v112, %v111
  %v123 = vpack.c.b16 %v114, %v113
  %v124 = vpack.c.b16 %v116, %v115
  %v149 = vunpack.c.l.b16 %v69
  %v150 = vunpack.c.l.b16 %v70
  %v151 = vunpack.c.l.b16 %v71
  %v152 = vunpack.c.l.b16 %v72
  %v153 = vunpack.c.l.b16 %v73
  %v154 = vunpack.c.l.b16 %v74
  %v155 = vunpack.c.l.b16 %v75
  %v156 = vunpack.c.l.b16 %v76
  %v157 = vunpack.c.l.b16 %v77
  %v158 = vunpack.c.l.b16 %v78
  %v159 = vunpack.c.l.b16 %v79
  %v160 = vunpack.c.l.b16 %v80
  %v161 = vunpack.c.l.b16 %v81
  %v162 = vunpack.c.l.b16 %v82
  %v163 = vunpack.c.l.b16 %v83
  %v164 = vunpack.c.l.b16 %v84
  %v165 = vpack.c.b16 %v150, %v149
  %v166 = vpack.c.b16 %v152, %v151
  %v167 = vpack.c.b16 %v154, %v153
  %v168 = vpack.c.b16 %v156, %v155
  %v169 = vpack.c.b16 %v158, %v157
  %v170 = vpack.c.b16 %v160, %v159
  %v171 = vpack.c.b16 %v162, %v161
  %v172 = vpack.c.b16 %v164, %v163
  %181 = vmatpush.bf16.msra.mxu0 %v172
  %182 = vmatpush.bf16.msra.mxu0 %v171
  %183 = vmatpush.bf16.msra.mxu0 %v170
  %184 = vmatpush.bf16.msra.mxu0 %v169
  %185 = vmatpush.bf16.msra.mxu0 %v168
  %186 = vmatpush.bf16.msra.mxu0 %v167
  %187 = vmatpush.bf16.msra.mxu0 %v166
  %188 = vmatpush.bf16.msra.mxu0 %v165
  %189 = vmatmul.bf16.gmra.mxu0 %v117
  %v190 = vpop.f32.mrf.mxu0
  %v191 = vadd.f32 0.0, %v190
  %v192 = vpop.f32.mrf.mxu0
  %v193 = vadd.f32 0.0, %v192
  %194 = vmatmul.bf16.gmra.mxu0 %v118
  %v195 = vpop.f32.mrf.mxu0
  %v196 = vadd.f32 0.0, %v195
  %v197 = vpop.f32.mrf.mxu0
  %v198 = vadd.f32 0.0, %v197
  %199 = vmatmul.bf16.gmra.mxu0 %v119
  %v200 = vpop.f32.mrf.mxu0
  %v201 = vadd.f32 0.0, %v200
  %v202 = vpop.f32.mrf.mxu0
  %v203 = vadd.f32 0.0, %v202
  %204 = vmatmul.bf16.gmra.mxu0 %v120
  %v205 = vpop.f32.mrf.mxu0
  %v206 = vadd.f32 0.0, %v205
  %v207 = vpop.f32.mrf.mxu0
  %v208 = vadd.f32 0.0, %v207
  %209 = vmatmul.bf16.gmra.mxu0 %v121
  %v210 = vpop.f32.mrf.mxu0
  %v211 = vadd.f32 0.0, %v210
  %v212 = vpop.f32.mrf.mxu0
  %v213 = vadd.f32 0.0, %v212
  %214 = vmatmul.bf16.gmra.mxu0 %v122
  %v215 = vpop.f32.mrf.mxu0
  %v216 = vadd.f32 0.0, %v215
  %v217 = vpop.f32.mrf.mxu0
  %v218 = vadd.f32 0.0, %v217
  %219 = vmatmul.bf16.gmra.mxu0 %v123
  %v220 = vpop.f32.mrf.mxu0
  %v221 = vadd.f32 0.0, %v220
  %v222 = vpop.f32.mrf.mxu0
  %v223 = vadd.f32 0.0, %v222
  %224 = vmatmul.bf16.gmra.mxu0 %v124
  %v225 = vpop.f32.mrf.mxu0
  %v226 = vadd.f32 0.0, %v225
  %v227 = vpop.f32.mrf.mxu0
  %v228 = vadd.f32 0.0, %v227
  %229 = vdwg.mxu0
  %v230 = vadd.f32 %v37, %v191
  %v231 = vadd.f32 %v38, %v193
  %v232 = vadd.f32 %v39, %v196
  %v233 = vadd.f32 %v40, %v198
  %v234 = vadd.f32 %v41, %v201
  %v235 = vadd.f32 %v42, %v203
  %v236 = vadd.f32 %v43, %v206
  %v237 = vadd.f32 %v44, %v208
  %v238 = vadd.f32 %v45, %v211
  %v239 = vadd.f32 %v46, %v213
  %v240 = vadd.f32 %v47, %v216
  %v241 = vadd.f32 %v48, %v218
  %v242 = vadd.f32 %v49, %v221
  %v243 = vadd.f32 %v50, %v223
  %v244 = vadd.f32 %v51, %v226
  %v245 = vadd.f32 %v52, %v228
  %246 = vst [vmem:[#allocation2] sm:$0xff] %v230
  %247 = vst [vmem:[#allocation2 + $0x8] sm:$0xff] %v231
  %248 = vst [vmem:[#allocation2 + $0x10] sm:$0xff] %v232
  %249 = vst [vmem:[#allocation2 + $0x18] sm:$0xff] %v233
  %250 = vst [vmem:[#allocation2 + $0x20] sm:$0xff] %v234
  %251 = vst [vmem:[#allocation2 + $0x28] sm:$0xff] %v235
  %252 = vst [vmem:[#allocation2 + $0x30] sm:$0xff] %v236
  %253 = vst [vmem:[#allocation2 + $0x38] sm:$0xff] %v237
  %254 = vst [vmem:[#allocation2 + $0x40] sm:$0xff] %v238
  %255 = vst [vmem:[#allocation2 + $0x48] sm:$0xff] %v239
  %256 = vst [vmem:[#allocation2 + $0x50] sm:$0xff] %v240
  %257 = vst [vmem:[#allocation2 + $0x58] sm:$0xff] %v241
  %258 = vst [vmem:[#allocation2 + $0x60] sm:$0xff] %v242
  %259 = vst [vmem:[#allocation2 + $0x68] sm:$0xff] %v243
  %260 = vst [vmem:[#allocation2 + $0x70] sm:$0xff] %v244
  %261 = vst [vmem:[#allocation2 + $0x78] sm:$0xff] %v245
  // Predicated region
  $region22: #{frame_encoder_forward.16} parent=0 // pred_check
    %p262 = pneg %p17
  $region23: #{frame_encoder_forward.16} parent=0 // pred_check_branch
    %264 = sbr.rel (%p262) target = $region25
  $region24: #{frame_encoder_forward.16} parent=0 // pred_region
    %v265 = vld [vmem:[#allocation2] sm:$0xff]
    %v266 = vld [vmem:[#allocation2 + $0x8] sm:$0xff]
    %v267 = vld [vmem:[#allocation2 + $0x10] sm:$0xff]
    %v268 = vld [vmem:[#allocation2 + $0x18] sm:$0xff]
    %v269 = vld [vmem:[#allocation2 + $0x20] sm:$0xff]
    %v270 = vld [vmem:[#allocation2 + $0x28] sm:$0xff]
    %v271 = vld [vmem:[#allocation2 + $0x30] sm:$0xff]
    %v272 = vld [vmem:[#allocation2 + $0x38] sm:$0xff]
    %v273 = vld [vmem:[#allocation2 + $0x40] sm:$0xff]
    %v274 = vld [vmem:[#allocation2 + $0x48] sm:$0xff]
    %v275 = vld [vmem:[#allocation2 + $0x50] sm:$0xff]
    %v276 = vld [vmem:[#allocation2 + $0x58] sm:$0xff]
    %v277 = vld [vmem:[#allocation2 + $0x60] sm:$0xff]
    %v278 = vld [vmem:[#allocation2 + $0x68] sm:$0xff]
    %v279 = vld [vmem:[#allocation2 + $0x70] sm:$0xff]
    %v280 = vld [vmem:[#allocation2 + $0x78] sm:$0xff]
    %v281 = vld [vmem:[%s2] sm:$0x1]
    %v283 = vperm.slane %v281, 0
    %v285 = vmul.f32 %v265, %v283
    %v286 = vmul.f32 %v266, %v283
    %v287 = vmul.f32 %v267, %v283
    %v288 = vmul.f32 %v268, %v283
    %v289 = vmul.f32 %v269, %v283
    %v290 = vmul.f32 %v270, %v283
    %v291 = vmul.f32 %v271, %v283
    %v292 = vmul.f32 %v272, %v283
    %v293 = vmul.f32 %v273, %v283
    %v294 = vmul.f32 %v274, %v283
    %v295 = vmul.f32 %v275, %v283
    %v296 = vmul.f32 %v276, %v283
    %v297 = vmul.f32 %v277, %v283
    %v298 = vmul.f32 %v278, %v283
    %v299 = vmul.f32 %v279, %v283
    %v300 = vmul.f32 %v280, %v283
    %v301 = vld [vmem:[%s3] sm:$0x1]
    %v303 = vperm.slane %v301, 0
    %v305 = vadd.f32 %v285, %v303
    %v306 = vadd.f32 %v286, %v303
    %v307 = vadd.f32 %v287, %v303
    %v308 = vadd.f32 %v288, %v303
    %v309 = vadd.f32 %v289, %v303
    %v310 = vadd.f32 %v290, %v303
    %v311 = vadd.f32 %v291, %v303
    %v312 = vadd.f32 %v292, %v303
    %v313 = vadd.f32 %v293, %v303
    %v314 = vadd.f32 %v294, %v303
    %v315 = vadd.f32 %v295, %v303
    %v316 = vadd.f32 %v296, %v303
    %v317 = vadd.f32 %v297, %v303
    %v318 = vadd.f32 %v298, %v303
    %v319 = vadd.f32 %v299, %v303
    %v320 = vadd.f32 %v300, %v303
    %v321 = vmax.f32 %v305, 0.0
    %v322 = vmax.f32 %v306, 0.0
    %v323 = vmax.f32 %v307, 0.0
    %v324 = vmax.f32 %v308, 0.0
    %v325 = vmax.f32 %v309, 0.0
    %v326 = vmax.f32 %v310, 0.0
    %v327 = vmax.f32 %v311, 0.0
    %v328 = vmax.f32 %v312, 0.0
    %v329 = vmax.f32 %v313, 0.0
    %v330 = vmax.f32 %v314, 0.0
    %v331 = vmax.f32 %v315, 0.0
    %v332 = vmax.f32 %v316, 0.0
    %v333 = vmax.f32 %v317, 0.0
    %v334 = vmax.f32 %v318, 0.0
    %v335 = vmax.f32 %v319, 0.0
    %v336 = vmax.f32 %v320, 0.0
    %v337 = vpack.c.bf16 %v321, %v321
    %v338 = vpack.c.bf16 %v322, %v322
    %v339 = vpack.c.bf16 %v323, %v323
    %v340 = vpack.c.bf16 %v324, %v324
    %v341 = vpack.c.bf16 %v325, %v325
    %v342 = vpack.c.bf16 %v326, %v326
    %v343 = vpack.c.bf16 %v327, %v327
    %v344 = vpack.c.bf16 %v328, %v328
    %v345 = vpack.c.bf16 %v329, %v329
    %v346 = vpack.c.bf16 %v330, %v330
    %v347 = vpack.c.bf16 %v331, %v331
    %v348 = vpack.c.bf16 %v332, %v332
    %v349 = vpack.c.bf16 %v333, %v333
    %v350 = vpack.c.bf16 %v334, %v334
    %v351 = vpack.c.bf16 %v335, %v335
    %v352 = vpack.c.bf16 %v336, %v336
    %353 = vst [vmem:[%s4] sm:$0xf] %v337
    %354 = vst [vmem:[%s4 + $0x4] sm:$0xf] %v338
    %355 = vst [vmem:[%s4 + $0x8] sm:$0xf] %v339
    %356 = vst [vmem:[%s4 + $0xc] sm:$0xf] %v340
    %357 = vst [vmem:[%s4 + $0x10] sm:$0xf] %v341
    %358 = vst [vmem:[%s4 + $0x14] sm:$0xf] %v342
    %359 = vst [vmem:[%s4 + $0x18] sm:$0xf] %v343
    %360 = vst [vmem:[%s4 + $0x1c] sm:$0xf] %v344
    %361 = vst [vmem:[%s4 + $0x20] sm:$0xf] %v345
    %362 = vst [vmem:[%s4 + $0x24] sm:$0xf] %v346
    %363 = vst [vmem:[%s4 + $0x28] sm:$0xf] %v347
    %364 = vst [vmem:[%s4 + $0x2c] sm:$0xf] %v348
    %365 = vst [vmem:[%s4 + $0x30] sm:$0xf] %v349
    %366 = vst [vmem:[%s4 + $0x34] sm:$0xf] %v350
    %367 = vst [vmem:[%s4 + $0x38] sm:$0xf] %v351
    %368 = vst [vmem:[%s4 + $0x3c] sm:$0xf] %v352
  $region25: #{frame_encoder_forward.16} parent=0 // pred_fallthru
    _
  // Predicated region
  $region26: #{frame_encoder_forward.16} parent=0 // pred_check
    _
  $region27: #{frame_encoder_forward.16} parent=0 // pred_check_branch
    %370 = sbr.rel (0) target = $region29
  $region28: #{frame_encoder_forward.16} parent=0 // pred_region
    _
  $region29: #{frame_encoder_forward.16} parent=0 // pred_fallthru
    _
  // Predicated region
  $region30: #{frame_encoder_forward.16} parent=0 // pred_check
    _
  $region31: #{frame_encoder_forward.16} parent=0 // pred_check_branch
    %372 = sbr.rel (0) target = $region33
  $region32: #{frame_encoder_forward.16} parent=0 // pred_region
    _
  $region33: #{frame_encoder_forward.16} parent=0 // pred_fallthru
    _

// kernel: frame_encoder_forward.18
$region0: #{frame_encoder_forward.18}
  #allocation0 [shape = 'u32[]', space=smem, size = 0x4, offset = 0x4, fixed_abs, tag = 'smem constant byte address 0x4 - core index']
  #allocation1 [shape = 'u32[72,128]{1,0:T(1,128)}', space=vmem, size = 0x9000, scoped, tag = 'internal scratch']
  #allocation2 [shape = 'f32[32,128]{1,0:T(8,128)}', space=vmem, size = 0x4000, scoped, tag = 'scratch operand']
  %s0 = inlined_call_operand.vmem [shape: bf16[32,384], index: 0, kind: input, shape index: {}]
  %s1 = inlined_call_operand.vmem [shape: bf16[384,128], index: 1, kind: input, shape index: {}]
  %s2 = inlined_call_operand.vmem [shape: f32[1,128], index: 2, kind: input, shape index: {}]
  %s3 = inlined_call_operand.vmem [shape: f32[1,128], index: 3, kind: input, shape index: {}]
  %s4 = inlined_call_operand.vmem [shape: bf16[32,128], index: 4, kind: output, shape index: {}]
  %s5 = sld [smem:[#allocation0]]
  $region34: #{frame_encoder_forward.18} parent=0
    _
  %s7 = ssub.s32 1, %s5
  %s8 = scalar_select 0, %s7, %s5
  // Predicated region
  $region2: #{frame_encoder_forward.18} parent=0 // pred_check
    _
  $region3: #{frame_encoder_forward.18} parent=0 // pred_check_branch
    %10 = sbr.rel (0) target = $region5
  $region4: #{frame_encoder_forward.18} parent=0 // pred_region
    _
  $region5: #{frame_encoder_forward.18} parent=0 // pred_fallthru
    _
  // Predicated region
  $region6: #{frame_encoder_forward.18} parent=0 // pred_check
    _
  $region7: #{frame_encoder_forward.18} parent=0 // pred_check_branch
    %12 = sbr.rel (0) target = $region9
  $region8: #{frame_encoder_forward.18} parent=0 // pred_region
    _
  $region9: #{frame_encoder_forward.18} parent=0 // pred_fallthru
    _
  // Predicated region
  $region10: #{frame_encoder_forward.18} parent=0 // pred_check
    _
  $region11: #{frame_encoder_forward.18} parent=0 // pred_check_branch
    %14 = sbr.rel (0) target = $region13
  $region12: #{frame_encoder_forward.18} parent=0 // pred_region
    _
  $region13: #{frame_encoder_forward.18} parent=0 // pred_fallthru
    _
  // Predicated region
  $region14: #{frame_encoder_forward.18} parent=0 // pred_check
    _
  $region15: #{frame_encoder_forward.18} parent=0 // pred_check_branch
    %16 = sbr.rel (0) target = $region17
  $region16: #{frame_encoder_forward.18} parent=0 // pred_region
    _
  $region17: #{frame_encoder_forward.18} parent=0 // pred_fallthru
    _
  %p17 = scmp.eq.s32.totalorder 0, 0
  // Predicated region
  $region18: #{frame_encoder_forward.18} parent=0 // pred_check
    %p18 = pneg %p17
  $region19: #{frame_encoder_forward.18} parent=0 // pred_check_branch
    %20 = sbr.rel (%p18) target = $region21
  $region20: #{frame_encoder_forward.18} parent=0 // pred_region
    %21 = vst [vmem:[#allocation2] sm:$0xff] 0.0
    %22 = vst [vmem:[#allocation2 + $0x8] sm:$0xff] 0.0
    %23 = vst [vmem:[#allocation2 + $0x10] sm:$0xff] 0.0
    %24 = vst [vmem:[#allocation2 + $0x18] sm:$0xff] 0.0
  $region21: #{frame_encoder_forward.18} parent=0 // pred_fallthru
    _
  %v25 = vld [vmem:[#allocation2] sm:$0xff]
  %v26 = vld [vmem:[#allocation2 + $0x8] sm:$0xff]
  %v27 = vld [vmem:[#allocation2 + $0x10] sm:$0xff]
  %v28 = vld [vmem:[#allocation2 + $0x18] sm:$0xff]
  %v29 = vld [vmem:[%s0] sm:$0xff]
  %v30 = vld [vmem:[%s0 + $0x8] sm:$0xf]
  %v31 = vld [vmem:[%s0 + $0xc] sm:$0xff]
  %v32 = vld [vmem:[%s0 + $0x14] sm:$0xf]
  %v33 = vld [vmem:[%s0 + $0x18] sm:$0xff]
  %v34 = vld [vmem:[%s0 + $0x20] sm:$0xf]
  %v35 = vld [vmem:[%s0 + $0x24] sm:$0xff]
  %v36 = vld [vmem:[%s0 + $0x2c] sm:$0xf]
  %v37 = vld [vmem:[%s1] sm:$0xf]
  %v38 = vld [vmem:[%s1 + $0x4] sm:$0xf]
  %v39 = vld [vmem:[%s1 + $0x8] sm:$0xf]
  %v40 = vld [vmem:[%s1 + $0xc] sm:$0xf]
  %v41 = vld [vmem:[%s1 + $0x10] sm:$0xf]
  %v42 = vld [vmem:[%s1 + $0x14] sm:$0xf]
  %v43 = vld [vmem:[%s1 + $0x18] sm:$0xf]
  %v44 = vld [vmem:[%s1 + $0x1c] sm:$0xf]
  %v45 = vld [vmem:[%s1 + $0x20] sm:$0xf]
  %v46 = vld [vmem:[%s1 + $0x24] sm:$0xf]
  %v47 = vld [vmem:[%s1 + $0x28] sm:$0xf]
  %v48 = vld [vmem:[%s1 + $0x2c] sm:$0xf]
  %v49 = vld [vmem:[%s1 + $0x30] sm:$0xf]
  %v50 = vld [vmem:[%s1 + $0x34] sm:$0xf]
  %v51 = vld [vmem:[%s1 + $0x38] sm:$0xf]
  %v52 = vld [vmem:[%s1 + $0x3c] sm:$0xf]
  %v53 = vld [vmem:[%s1 + $0x40] sm:$0xf]
  %v54 = vld [vmem:[%s1 + $0x44] sm:$0xf]
  %v55 = vld [vmem:[%s1 + $0x48] sm:$0xf]
  %v56 = vld [vmem:[%s1 + $0x4c] sm:$0xf]
  %v57 = vld [vmem:[%s1 + $0x50] sm:$0xf]
  %v58 = vld [vmem:[%s1 + $0x54] sm:$0xf]
  %v59 = vld [vmem:[%s1 + $0x58] sm:$0xf]
  %v60 = vld [vmem:[%s1 + $0x5c] sm:$0xf]
  %v61 = vld [vmem:[%s1 + $0x60] sm:$0xf]
  %v62 = vld [vmem:[%s1 + $0x64] sm:$0xf]
  %v63 = vld [vmem:[%s1 + $0x68] sm:$0xf]
  %v64 = vld [vmem:[%s1 + $0x6c] sm:$0xf]
  %v65 = vld [vmem:[%s1 + $0x70] sm:$0xf]
  %v66 = vld [vmem:[%s1 + $0x74] sm:$0xf]
  %v67 = vld [vmem:[%s1 + $0x78] sm:$0xf]
  %v68 = vld [vmem:[%s1 + $0x7c] sm:$0xf]
  %v69 = vld [vmem:[%s1 + $0x80] sm:$0xf]
  %v70 = vld [vmem:[%s1 + $0x84] sm:$0xf]
  %v71 = vld [vmem:[%s1 + $0x88] sm:$0xf]
  %v72 = vld [vmem:[%s1 + $0x8c] sm:$0xf]
  %v73 = vld [vmem:[%s1 + $0x90] sm:$0xf]
  %v74 = vld [vmem:[%s1 + $0x94] sm:$0xf]
  %v75 = vld [vmem:[%s1 + $0x98] sm:$0xf]
  %v76 = vld [vmem:[%s1 + $0x9c] sm:$0xf]
  %v77 = vld [vmem:[%s1 + $0xa0] sm:$0xf]
  %v78 = vld [vmem:[%s1 + $0xa4] sm:$0xf]
  %v79 = vld [vmem:[%s1 + $0xa8] sm:$0xf]
  %v80 = vld [vmem:[%s1 + $0xac] sm:$0xf]
  %v81 = vld [vmem:[%s1 + $0xb0] sm:$0xf]
  %v82 = vld [vmem:[%s1 + $0xb4] sm:$0xf]
  %v83 = vld [vmem:[%s1 + $0xb8] sm:$0xf]
  %v84 = vld [vmem:[%s1 + $0xbc] sm:$0xf]
  %v93 = vunpack.c.l.b16 %v29
  %v94 = vunpack.c.h.b16 %v29
  %v95 = vunpack.c.l.b16 %v30
  %v96 = vunpack.c.l.b16 %v31
  %v97 = vunpack.c.h.b16 %v31
  %v98 = vunpack.c.l.b16 %v32
  %v99 = vunpack.c.l.b16 %v33
  %v100 = vunpack.c.h.b16 %v33
  %v101 = vunpack.c.l.b16 %v34
  %v102 = vunpack.c.l.b16 %v35
  %v103 = vunpack.c.h.b16 %v35
  %v104 = vunpack.c.l.b16 %v36
  %v105 = vpack.c.b16 %v96, %v93
  %v106 = vpack.c.b16 %v97, %v94
  %v107 = vpack.c.b16 %v98, %v95
  %v108 = vpack.c.b16 %v102, %v99
  %v109 = vpack.c.b16 %v103, %v100
  %v110 = vpack.c.b16 %v104, %v101
  %v165 = vunpack.c.l.b16 %v37
  %v166 = vunpack.c.l.b16 %v38
  %v167 = vunpack.c.l.b16 %v39
  %v168 = vunpack.c.l.b16 %v40
  %v169 = vunpack.c.l.b16 %v41
  %v170 = vunpack.c.l.b16 %v42
  %v171 = vunpack.c.l.b16 %v43
  %v172 = vunpack.c.l.b16 %v44
  %v173 = vunpack.c.l.b16 %v45
  %v174 = vunpack.c.l.b16 %v46
  %v175 = vunpack.c.l.b16 %v47
  %v176 = vunpack.c.l.b16 %v48
  %v177 = vunpack.c.l.b16 %v49
  %v178 = vunpack.c.l.b16 %v50
  %v179 = vunpack.c.l.b16 %v51
  %v180 = vunpack.c.l.b16 %v52
  %v181 = vunpack.c.l.b16 %v53
  %v182 = vunpack.c.l.b16 %v54
  %v183 = vunpack.c.l.b16 %v55
  %v184 = vunpack.c.l.b16 %v56
  %v185 = vunpack.c.l.b16 %v57
  %v186 = vunpack.c.l.b16 %v58
  %v187 = vunpack.c.l.b16 %v59
  %v188 = vunpack.c.l.b16 %v60
  %v189 = vunpack.c.l.b16 %v61
  %v190 = vunpack.c.l.b16 %v62
  %v191 = vunpack.c.l.b16 %v63
  %v192 = vunpack.c.l.b16 %v64
  %v193 = vunpack.c.l.b16 %v65
  %v194 = vunpack.c.l.b16 %v66
  %v195 = vunpack.c.l.b16 %v67
  %v196 = vunpack.c.l.b16 %v68
  %v197 = vunpack.c.l.b16 %v69
  %v198 = vunpack.c.l.b16 %v70
  %v199 = vunpack.c.l.b16 %v71
  %v200 = vunpack.c.l.b16 %v72
  %v201 = vunpack.c.l.b16 %v73
  %v202 = vunpack.c.l.b16 %v74
  %v203 = vunpack.c.l.b16 %v75
  %v204 = vunpack.c.l.b16 %v76
  %v205 = vunpack.c.l.b16 %v77
  %v206 = vunpack.c.l.b16 %v78
  %v207 = vunpack.c.l.b16 %v79
  %v208 = vunpack.c.l.b16 %v80
  %v209 = vunpack.c.l.b16 %v81
  %v210 = vunpack.c.l.b16 %v82
  %v211 = vunpack.c.l.b16 %v83
  %v212 = vunpack.c.l.b16 %v84
  %v213 = vpack.c.b16 %v166, %v165
  %v214 = vpack.c.b16 %v168, %v167
  %v215 = vpack.c.b16 %v170, %v169
  %v216 = vpack.c.b16 %v172, %v171
  %v217 = vpack.c.b16 %v174, %v173
  %v218 = vpack.c.b16 %v176, %v175
  %v219 = vpack.c.b16 %v178, %v177
  %v220 = vpack.c.b16 %v180, %v179
  %v221 = vpack.c.b16 %v182, %v181
  %v222 = vpack.c.b16 %v184, %v183
  %v223 = vpack.c.b16 %v186, %v185
  %v224 = vpack.c.b16 %v188, %v187
  %v225 = vpack.c.b16 %v190, %v189
  %v226 = vpack.c.b16 %v192, %v191
  %v227 = vpack.c.b16 %v194, %v193
  %v228 = vpack.c.b16 %v196, %v195
  %v229 = vpack.c.b16 %v198, %v197
  %v230 = vpack.c.b16 %v200, %v199
  %v231 = vpack.c.b16 %v202, %v201
  %v232 = vpack.c.b16 %v204, %v203
  %v233 = vpack.c.b16 %v206, %v205
  %v234 = vpack.c.b16 %v208, %v207
  %v235 = vpack.c.b16 %v210, %v209
  %v236 = vpack.c.b16 %v212, %v211
  %261 = vmatpush.bf16.msra.mxu0 %v220
  %262 = vmatpush.bf16.msra.mxu0 %v219
  %263 = vmatpush.bf16.msra.mxu0 %v218
  %264 = vmatpush.bf16.msra.mxu0 %v217
  %265 = vmatpush.bf16.msra.mxu0 %v216
  %266 = vmatpush.bf16.msra.mxu0 %v215
  %267 = vmatpush.bf16.msra.mxu0 %v214
  %268 = vmatpush.bf16.msra.mxu0 %v213
  %269 = vmatmul.bf16.gmra.mxu0 %v105
  %v270 = vpop.f32.mrf.mxu0
  %v271 = vadd.f32 0.0, %v270
  %v272 = vpop.f32.mrf.mxu0
  %v273 = vadd.f32 0.0, %v272
  %274 = vmatmul.bf16.gmra.mxu0 %v108
  %v275 = vpop.f32.mrf.mxu0
  %v276 = vadd.f32 0.0, %v275
  %v277 = vpop.f32.mrf.mxu0
  %v278 = vadd.f32 0.0, %v277
  %279 = vdwg.mxu0
  %280 = vmatpush.bf16.msra.mxu0 %v228
  %281 = vmatpush.bf16.msra.mxu0 %v227
  %282 = vmatpush.bf16.msra.mxu0 %v226
  %283 = vmatpush.bf16.msra.mxu0 %v225
  %284 = vmatpush.bf16.msra.mxu0 %v224
  %285 = vmatpush.bf16.msra.mxu0 %v223
  %286 = vmatpush.bf16.msra.mxu0 %v222
  %287 = vmatpush.bf16.msra.mxu0 %v221
  %288 = vmatmul.bf16.gmra.mxu0 %v106
  %v289 = vpop.f32.mrf.mxu0
  %v290 = vadd.f32 %v271, %v289
  %v291 = vpop.f32.mrf.mxu0
  %v292 = vadd.f32 %v273, %v291
  %293 = vmatmul.bf16.gmra.mxu0 %v109
  %v294 = vpop.f32.mrf.mxu0
  %v295 = vadd.f32 %v276, %v294
  %v296 = vpop.f32.mrf.mxu0
  %v297 = vadd.f32 %v278, %v296
  %298 = vdwg.mxu0
  %299 = vmatpush.bf16.msra.mxu0 %v236
  %300 = vmatpush.bf16.msra.mxu0 %v235
  %301 = vmatpush.bf16.msra.mxu0 %v234
  %302 = vmatpush.bf16.msra.mxu0 %v233
  %303 = vmatpush.bf16.msra.mxu0 %v232
  %304 = vmatpush.bf16.msra.mxu0 %v231
  %305 = vmatpush.bf16.msra.mxu0 %v230
  %306 = vmatpush.bf16.msra.mxu0 %v229
  %307 = vmatmul.bf16.gmra.mxu0 %v107
  %v308 = vpop.f32.mrf.mxu0
  %v309 = vadd.f32 %v290, %v308
  %v310 = vpop.f32.mrf.mxu0
  %v311 = vadd.f32 %v292, %v310
  %312 = vmatmul.bf16.gmra.mxu0 %v110
  %v313 = vpop.f32.mrf.mxu0
  %v314 = vadd.f32 %v295, %v313
  %v315 = vpop.f32.mrf.mxu0
  %v316 = vadd.f32 %v297, %v315
  %317 = vdwg.mxu0
  %v318 = vadd.f32 %v25, %v309
  %v319 = vadd.f32 %v26, %v311
  %v320 = vadd.f32 %v27, %v314
  %v321 = vadd.f32 %v28, %v316
  %322 = vst [vmem:[#allocation2] sm:$0xff] %v318
  %323 = vst [vmem:[#allocation2 + $0x8] sm:$0xff] %v319
  %324 = vst [vmem:[#allocation2 + $0x10] sm:$0xff] %v320
  %325 = vst [vmem:[#allocation2 + $0x18] sm:$0xff] %v321
  // Predicated region
  $region22: #{frame_encoder_forward.18} parent=0 // pred_check
    %p326 = pneg %p17
  $region23: #{frame_encoder_forward.18} parent=0 // pred_check_branch
    %328 = sbr.rel (%p326) target = $region25
  $region24: #{frame_encoder_forward.18} parent=0 // pred_region
    %v329 = vld [vmem:[#allocation2] sm:$0xff]
    %v330 = vld [vmem:[#allocation2 + $0x8] sm:$0xff]
    %v331 = vld [vmem:[#allocation2 + $0x10] sm:$0xff]
    %v332 = vld [vmem:[#allocation2 + $0x18] sm:$0xff]
    %v333 = vld [vmem:[%s2] sm:$0x1]
    %v335 = vperm.slane %v333, 0
    %v337 = vmul.f32 %v329, %v335
    %v338 = vmul.f32 %v330, %v335
    %v339 = vmul.f32 %v331, %v335
    %v340 = vmul.f32 %v332, %v335
    %v341 = vld [vmem:[%s3] sm:$0x1]
    %v343 = vperm.slane %v341, 0
    %v345 = vadd.f32 %v337, %v343
    %v346 = vadd.f32 %v338, %v343
    %v347 = vadd.f32 %v339, %v343
    %v348 = vadd.f32 %v340, %v343
    %v349 = vmax.f32 %v345, 0.0
    %v350 = vmax.f32 %v346, 0.0
    %v351 = vmax.f32 %v347, 0.0
    %v352 = vmax.f32 %v348, 0.0
    %v353 = vpack.c.bf16 %v349, %v349
    %v354 = vpack.c.bf16 %v350, %v350
    %v355 = vpack.c.bf16 %v351, %v351
    %v356 = vpack.c.bf16 %v352, %v352
    %357 = vst [vmem:[%s4] sm:$0xf] %v353
    %358 = vst [vmem:[%s4 + $0x4] sm:$0xf] %v354
    %359 = vst [vmem:[%s4 + $0x8] sm:$0xf] %v355
    %360 = vst [vmem:[%s4 + $0xc] sm:$0xf] %v356
  $region25: #{frame_encoder_forward.18} parent=0 // pred_fallthru
    _
  // Predicated region
  $region26: #{frame_encoder_forward.18} parent=0 // pred_check
    _
  $region27: #{frame_encoder_forward.18} parent=0 // pred_check_branch
    %362 = sbr.rel (0) target = $region29
  $region28: #{frame_encoder_forward.18} parent=0 // pred_region
    _
  $region29: #{frame_encoder_forward.18} parent=0 // pred_fallthru
    _
  // Predicated region
  $region30: #{frame_encoder_forward.18} parent=0 // pred_check
    _
  $region31: #{frame_encoder_forward.18} parent=0 // pred_check_branch
    %364 = sbr.rel (0) target = $region33
  $region32: #{frame_encoder_forward.18} parent=0 // pred_region
    _
  $region33: #{frame_encoder_forward.18} parent=0 // pred_fallthru
    _

// kernel: frame_encoder_forward.20
$region0: #{frame_encoder_forward.20}
  #allocation0 [shape = 'u32[]', space=smem, size = 0x4, offset = 0x4, fixed_abs, tag = 'smem constant byte address 0x4 - core index']
  #allocation1 [shape = 'u32[72,128]{1,0:T(1,128)}', space=vmem, size = 0x9000, scoped, tag = 'internal scratch']
  %s0 = inlined_call_operand.vmem [shape: bf16[2,16,64], index: 0, kind: input, shape index: {}]
  %s1 = inlined_call_operand.vmem [shape: f32[64,128], index: 1, kind: input, shape index: {}]
  %s2 = inlined_call_operand.vmem [shape: f32[128,64], index: 2, kind: input, shape index: {}]
  %s3 = inlined_call_operand.vmem [shape: bf16[2,16,64], index: 3, kind: output, shape index: {0}]
  %s4 = inlined_call_operand.vmem [shape: bf16[2,16,2], index: 4, kind: output, shape index: {1}]
  %5 = xla_tuple %s3, %s4
  %s6 = sld [smem:[#allocation0]]
  $region53: #{frame_encoder_forward.20} parent=0
    _
  %s8 = ssub.s32 1, %s6
  %s9 = scalar_select 0, %s8, %s6
  loop: start=0, step=1, limit=4
  $region2: #{frame_encoder_forward.20} parent=0 // loop_pre_header
    _
  $region3: #{frame_encoder_forward.20} parent=0 // loop_header
    %s11 = sphi 0, %s15
    %p12 = scmp.ge.s32.totalorder %s11, 4
    %s21 = sphi 0, %s23
    %s24 = sphi 0, %s21
    %s25 = sphi 0, %s24
    %s41 = sphi 0, %s25
    %s45 = sphi 0, %s45
    %s47 = sphi 0, %s45
    %s48 = sphi 0, %s47
    %s62 = sphi 0, %s48
    %s66 = sphi 0, %s66
    %s68 = sphi 0, %s66
    %s69 = sphi 0, %s68
    %s83 = sphi 0, %s69
    %s89 = sphi 0, %s91
    %s92 = sphi 0, %s89
    %s93 = sphi 0, %s92
    %s109 = sphi 0, %s93
    %s115 = sphi 0, %s117
    %s118 = sphi 0, %s115
    %s119 = sphi 0, %s118
    %s135 = sphi 0, %s119
  $region4: #{frame_encoder_forward.20} parent=0 // loop_header_branch
    %14 = sbr.rel (%p12) target = $region8
  $region5: #{frame_encoder_forward.20} parent=0 // loop_body
    %s16 = ssub.s32 %s11, 1
    %s17 = ssub.s32 %s11, 2
    %s18 = sadd.s32 %s11, 1
    %s19 = ssub.s32 %s11, %s18
    %p20 = scmp.eq.s32.totalorder %s19, 0
    %s22 = sadd.s32 %s21, 1
    %s23 = scalar_select %p20, %s21, %s22
    %p26 = pneg %p20
    %p27 = scmp.eq.s32.totalorder %s11, 1
    %p28 = por %p26, %p27
    %p29 = scmp.ne.s32.totalorder %s21, %s24
    %p30 = scmp.eq.s32.totalorder %s11, 0
    %p31 = por %p29, %p30
    %p32 = scmp.ne.s32.totalorder %s21, %s24
    %p33 = scmp.eq.s32.totalorder %s16, 1
    %p34 = por %p32, %p33
    %p35 = scmp.ne.s32.totalorder %s24, %s25
    %p36 = scmp.eq.s32.totalorder %s16, 0
    %p37 = por %p35, %p36
    %p38 = scmp.ne.s32.totalorder %s24, %s25
    %p39 = scmp.eq.s32.totalorder %s17, 1
    %p40 = por %p38, %p39
    %p42 = scmp.ne.s32.totalorder %s25, %s41
    %p43 = scmp.eq.s32.totalorder %s17, 0
    %p44 = por %p42, %p43
    %s46 = sadd.s32 %s45, 1
    %p49 = scmp.eq.s32.totalorder %s11, 1
    %p50 = scmp.ne.s32.totalorder %s45, %s47
    %p51 = scmp.eq.s32.totalorder %s11, 0
    %p52 = por %p50, %p51
    %p53 = scmp.ne.s32.totalorder %s45, %s47
    %p54 = scmp.eq.s32.totalorder %s16, 1
    %p55 = por %p53, %p54
    %p56 = scmp.ne.s32.totalorder %s47, %s48
    %p57 = scmp.eq.s32.totalorder %s16, 0
    %p58 = por %p56, %p57
    %p59 = scmp.ne.s32.totalorder %s47, %s48
    %p60 = scmp.eq.s32.totalorder %s17, 1
    %p61 = por %p59, %p60
    %p63 = scmp.ne.s32.totalorder %s48, %s62
    %p64 = scmp.eq.s32.totalorder %s17, 0
    %p65 = por %p63, %p64
    %s67 = sadd.s32 %s66, 1
    %p70 = scmp.eq.s32.totalorder %s11, 1
    %p71 = scmp.ne.s32.totalorder %s66, %s68
    %p72 = scmp.eq.s32.totalorder %s11, 0
    %p73 = por %p71, %p72
    %p74 = scmp.ne.s32.totalorder %s66, %s68
    %p75 = scmp.eq.s32.totalorder %s16, 1
    %p76 = por %p74, %p75
    %p77 = scmp.ne.s32.totalorder %s68, %s69
    %p78 = scmp.eq.s32.totalorder %s16, 0
    %p79 = por %p77, %p78
    %p80 = scmp.ne.s32.totalorder %s68, %s69
    %p81 = scmp.eq.s32.totalorder %s17, 1
    %p82 = por %p80, %p81
    %p84 = scmp.ne.s32.totalorder %s69, %s83
    %p85 = scmp.eq.s32.totalorder %s17, 0
    %p86 = por %p84, %p85
    %s87 = ssub.s32 %s11, %s18
    %p88 = scmp.eq.s32.totalorder %s87, 0
    %s90 = sadd.s32 %s89, 1
    %s91 = scalar_select %p88, %s89, %s90
    %p94 = pneg %p88
    %p95 = scmp.eq.s32.totalorder %s11, 1
    %p96 = por %p94, %p95
    %p97 = scmp.ne.s32.totalorder %s89, %s92
    %p98 = scmp.eq.s32.totalorder %s11, 0
    %p99 = por %p97, %p98
    %p100 = scmp.ne.s32.totalorder %s89, %s92
    %p101 = scmp.eq.s32.totalorder %s16, 1
    %p102 = por %p100, %p101
    %p103 = scmp.ne.s32.totalorder %s92, %s93
    %p104 = scmp.eq.s32.totalorder %s16, 0
    %p105 = por %p103, %p104
    %p106 = scmp.ne.s32.totalorder %s92, %s93
    %p107 = scmp.eq.s32.totalorder %s17, 1
    %p108 = por %p106, %p107
    %p110 = scmp.ne.s32.totalorder %s93, %s109
    %p111 = scmp.eq.s32.totalorder %s17, 0
    %p112 = por %p110, %p111
    %s113 = ssub.s32 %s11, %s18
    %p114 = scmp.eq.s32.totalorder %s113, 0
    %s116 = sadd.s32 %s115, 1
    %s117 = scalar_select %p114, %s115, %s116
    %p120 = pneg %p114
    %p121 = scmp.eq.s32.totalorder %s11, 1
    %p122 = por %p120, %p121
    %p123 = scmp.ne.s32.totalorder %s115, %s118
    %p124 = scmp.eq.s32.totalorder %s11, 0
    %p125 = por %p123, %p124
    %p126 = scmp.ne.s32.totalorder %s115, %s118
    %p127 = scmp.eq.s32.totalorder %s16, 1
    %p128 = por %p126, %p127
    %p129 = scmp.ne.s32.totalorder %s118, %s119
    %p130 = scmp.eq.s32.totalorder %s16, 0
    %p131 = por %p129, %p130
    %p132 = scmp.ne.s32.totalorder %s118, %s119
    %p133 = scmp.eq.s32.totalorder %s17, 1
    %p134 = por %p132, %p133
    %p136 = scmp.ne.s32.totalorder %s119, %s135
    %p137 = scmp.eq.s32.totalorder %s17, 0
    %p138 = por %p136, %p137
    %p139 = scmp.le.s32.totalorder 1, %s11
    %p140 = scmp.lt.s32.totalorder %s11, 3
    %p141 = pnand %p139, %p140
    %p142 = pneg %p141
    // Predicated region
    $region9: #{frame_encoder_forward.20} parent=5 // pred_check
      _
    $region10: #{frame_encoder_forward.20} parent=5 // pred_check_branch
      %144 = sbr.rel (%p141) target = $region12
    $region11: #{frame_encoder_forward.20} parent=5 // pred_region
      %s145 = ssub.s32 %s11, 1
      // Predicated region
      $region13: #{frame_encoder_forward.20} parent=11 // pred_check
        %p146 = pneg %p58
      $region14: #{frame_encoder_forward.20} parent=11 // pred_check_branch
        %148 = sbr.rel (%p146) target = $region16
      $region15: #{frame_encoder_forward.20} parent=11 // pred_region
        _
      $region16: #{frame_encoder_forward.20} parent=11 // pred_fallthru
        _
      // Predicated region
      $region17: #{frame_encoder_forward.20} parent=11 // pred_check
        %p149 = pneg %p79
      $region18: #{frame_encoder_forward.20} parent=11 // pred_check_branch
        %151 = sbr.rel (%p149) target = $region20
      $region19: #{frame_encoder_forward.20} parent=11 // pred_region
        _
      $region20: #{frame_encoder_forward.20} parent=11 // pred_fallthru
        _
    $region12: #{frame_encoder_forward.20} parent=5 // pred_fallthru
      _
    %p152 = scmp.lt.s32.totalorder %s11, 2
    // Predicated region
    $region21: #{frame_encoder_forward.20} parent=5 // pred_check
      %p153 = pneg %p152
    $region22: #{frame_encoder_forward.20} parent=5 // pred_check_branch
      %155 = sbr.rel (%p153) target = $region24
    $region23: #{frame_encoder_forward.20} parent=5 // pred_region
      // Predicated region
      $region25: #{frame_encoder_forward.20} parent=23 // pred_check
        %p156 = pneg %p31
      $region26: #{frame_encoder_forward.20} parent=23 // pred_check_branch
        %158 = sbr.rel (%p156) target = $region28
      $region27: #{frame_encoder_forward.20} parent=23 // pred_region
        %p159 = scmp.lt.s32.totalorder %s11, 1
        %s160 = scalar_select %p159, %s11, 1
        %s161 = smul.addr %s160, 2
        %s162 = smul.addr %s161, 4
        %s163 = scalar_lea.vmem %s0, %s162
      $region28: #{frame_encoder_forward.20} parent=23 // pred_fallthru
        _
    $region24: #{frame_encoder_forward.20} parent=5 // pred_fallthru
      _
    %p164 = scmp.le.s32.totalorder 1, %s11
    %p165 = scmp.lt.s32.totalorder %s11, 3
    %p166 = pnand %p164, %p165
    %p167 = pneg %p166
    // Predicated region
    $region29: #{frame_encoder_forward.20} parent=5 // pred_check
      _
    $region30: #{frame_encoder_forward.20} parent=5 // pred_check_branch
      %169 = sbr.rel (%p166) target = $region32
    $region31: #{frame_encoder_forward.20} parent=5 // pred_region
      %s170 = ssub.s32 %s11, 1
      %p171 = scmp.lt.s32.totalorder %s16, 1
      %s172 = scalar_select %p171, %s16, 1
      %s173 = smul.addr %s172, 2
      %s174 = smul.addr %s173, 4
      %s175 = scalar_lea.vmem %s0, %s174
      %p176 = pneg %p37
      %p177 = pneg %p34
      %p178 = pneg %p58
      %p179 = pneg %p55
      %p180 = pneg %p79
      %p181 = pneg %p76
      %p182 = pneg %p105
      %p183 = pneg %p102
      %p184 = scmp.lt.s32.totalorder %s16, 1
      %s185 = scalar_select %p184, %s16, 1
      %s186 = smul.addr %s185, 2
      %s187 = smul.addr %s186, 4
      %s188 = scalar_lea.vmem %s3, %s187
      %p189 = pneg %p131
      %p190 = pneg %p128
      %p191 = scmp.lt.s32.totalorder %s16, 1
      %s192 = scalar_select %p191, %s16, 1
      %s193 = smul.addr %s192, 2
      %s194 = smul.addr %s193, 4
      %s195 = scalar_lea.vmem %s4, %s194
      %p196 = scmp.lt.s32.totalorder %s16, 1
      %s197 = scalar_select %p196, %s16, 1
      %s198 = smul.addr %s197, 2
      %s199 = smul.addr %s198, 4
      %s200 = scalar_lea.vmem %s0, %s199
      %p201 = scmp.lt.s32.totalorder %s16, 1
      %s202 = scalar_select %p201, %s16, 1
      %s203 = smul.addr %s202, 2
      %s204 = smul.addr %s203, 4
      %s205 = scalar_lea.vmem %s3, %s204
      %p206 = scmp.lt.s32.totalorder %s16, 1
      %s207 = scalar_select %p206, %s16, 1
      %s208 = smul.addr %s207, 2
      %s209 = smul.addr %s208, 4
      %s210 = scalar_lea.vmem %s4, %s209
      %v211 = vld [vmem:[%s200] sm:$0xf]
      %v212 = vld [vmem:[%s200 + $0x4] sm:$0xf]
      %v213 = vunpack.c.l.bf16 %v211
      %v214 = vunpack.c.l.bf16 %v212
      %vm215 = vcmask 523264
      %v216 = vsel %vm215, %v213, 0.0
      %v217 = vsel %vm215, %v214, 0.0
      %v218 = vadd.f32 %v216, %v217
      %v219 = vrot.slane %v218, 4
      %v220 = vadd.f32 %v218, %v219
      %v221 = vrot.slane %v220, 2
      %v222 = vadd.f32 %v220, %v221
      %v223 = vrot.slane %v222, 1
      %v224 = vadd.f32 %v222, %v223
      %v225 = vrcp.pop 16.0
      %v226 = vmul.f32 16.0, %v225
      %v227 = vsub.f32 1.0, %v226
      %v228 = vmul.f32 %v225, %v227
      %v229 = vadd.f32 %v225, %v228
      %vm230 = vweird.f32 %v225
      %v231 = vsel %vm230, %v225, %v229
      %v232 = vmul.f32 %v224, %v231
      %v233 = vsel %vm215, %v213, -inf
      %v234 = vsel %vm215, %v214, -inf
      %v235 = vmax.f32 %v233, %v234
      %v236 = vrot.slane %v235, 4
      %v237 = vmax.f32 %v235, %v236
      %v238 = vrot.slane %v237, 2
      %v239 = vmax.f32 %v237, %v238
      %v240 = vrot.slane %v239, 1
      %v241 = vmax.f32 %v239, %v240
      %v242 = vld [vmem:[%s1] sm:$0xff]
      %v243 = vld [vmem:[%s1 + $0x8] sm:$0xff]
      %v244 = vld [vmem:[%s1 + $0x10] sm:$0xff]
      %v245 = vld [vmem:[%s1 + $0x18] sm:$0xff]
      %v246 = vld [vmem:[%s1 + $0x20] sm:$0xff]
      %v247 = vld [vmem:[%s1 + $0x28] sm:$0xff]
      %v248 = vld [vmem:[%s1 + $0x30] sm:$0xff]
      %v249 = vld [vmem:[%s1 + $0x38] sm:$0xff]
      %v251 = vsel %vm215, %v232, 0
      %253 = vmatpush.msra.mxu0 0.0
      %254 = vmatpush.msra.mxu0 0.0
      %255 = vmatpush.msra.mxu0 0.0
      %256 = vmatpush.msra.mxu0 0.0
      %257 = vmatpush.msra.mxu0 0.0
      %258 = vmatpush.msra.mxu0 0.0
      %259 = vmatpush.msra.mxu0 0.0
      %260 = vmatpush.msra.mxu0 0.0
      %261 = vmatpush.msra.mxu0 %v249
      %262 = vmatpush.msra.mxu0 %v248
      %263 = vmatpush.msra.mxu0 %v247
      %264 = vmatpush.msra.mxu0 %v246
      %265 = vmatpush.msra.mxu0 %v245
      %266 = vmatpush.msra.mxu0 %v244
      %267 = vmatpush.msra.mxu0 %v243
      %268 = vmatpush.msra.mxu0 %v242
      %269 = vmatmul.f32.gmra.mxu0 %v251
      %v270 = vpop.f32.mrf.mxu0
      %v271 = vadd.f32 0.0, %v270
      %272 = vdwg.mxu0
      %v273 = vmax.f32 %v271, 0.0
      %v274 = vld [vmem:[%s2] sm:$0xff]
      %v275 = vld [vmem:[%s2 + $0x8] sm:$0xff]
      %v276 = vld [vmem:[%s2 + $0x10] sm:$0xff]
      %v277 = vld [vmem:[%s2 + $0x18] sm:$0xff]
      %v278 = vld [vmem:[%s2 + $0x20] sm:$0xff]
      %v279 = vld [vmem:[%s2 + $0x28] sm:$0xff]
      %v280 = vld [vmem:[%s2 + $0x30] sm:$0xff]
      %v281 = vld [vmem:[%s2 + $0x38] sm:$0xff]
      %v282 = vld [vmem:[%s2 + $0x40] sm:$0xff]
      %v283 = vld [vmem:[%s2 + $0x48] sm:$0xff]
      %v284 = vld [vmem:[%s2 + $0x50] sm:$0xff]
      %v285 = vld [vmem:[%s2 + $0x58] sm:$0xff]
      %v286 = vld [vmem:[%s2 + $0x60] sm:$0xff]
      %v287 = vld [vmem:[%s2 + $0x68] sm:$0xff]
      %v288 = vld [vmem:[%s2 + $0x70] sm:$0xff]
      %v289 = vld [vmem:[%s2 + $0x78] sm:$0xff]
      %v291 = vsel %vm215, %v241, 0
      %293 = vmatpush.msra.mxu0 0.0
      %294 = vmatpush.msra.mxu0 0.0
      %295 = vmatpush.msra.mxu0 0.0
      %296 = vmatpush.msra.mxu0 0.0
      %297 = vmatpush.msra.mxu0 0.0
      %298 = vmatpush.msra.mxu0 0.0
      %299 = vmatpush.msra.mxu0 0.0
      %300 = vmatpush.msra.mxu0 0.0
      %301 = vmatpush.msra.mxu0 %v249
      %302 = vmatpush.msra.mxu0 %v248
      %303 = vmatpush.msra.mxu0 %v247
      %304 = vmatpush.msra.mxu0 %v246
      %305 = vmatpush.msra.mxu0 %v245
      %306 = vmatpush.msra.mxu0 %v244
      %307 = vmatpush.msra.mxu0 %v243
      %308 = vmatpush.msra.mxu0 %v242
      %309 = vmatmul.f32.gmra.mxu0 %v291
      %v310 = vpop.f32.mrf.mxu0
      %v311 = vadd.f32 0.0, %v310
      %312 = vdwg.mxu0
      %v313 = vmax.f32 %v311, 0.0
      %314 = vmatpush.msra.mxu0 %v289
      %315 = vmatpush.msra.mxu0 %v288
      %316 = vmatpush.msra.mxu0 %v287
      %317 = vmatpush.msra.mxu0 %v286
      %318 = vmatpush.msra.mxu0 %v285
      %319 = vmatpush.msra.mxu0 %v284
      %320 = vmatpush.msra.mxu0 %v283
      %321 = vmatpush.msra.mxu0 %v282
      %322 = vmatpush.msra.mxu0 %v281
      %323 = vmatpush.msra.mxu0 %v280
      %324 = vmatpush.msra.mxu0 %v279
      %325 = vmatpush.msra.mxu0 %v278
      %326 = vmatpush.msra.mxu0 %v277
      %327 = vmatpush.msra.mxu0 %v276
      %328 = vmatpush.msra.mxu0 %v275
      %329 = vmatpush.msra.mxu0 %v274
      %330 = vmatmul.f32.gmra.mxu0 %v313
      %v331 = vpop.f32.mrf.mxu0
      %v332 = vadd.f32 0.0, %v331
      %333 = vdwg.mxu0
      %334 = vmatpush.msra.mxu0 %v289
      %335 = vmatpush.msra.mxu0 %v288
      %336 = vmatpush.msra.mxu0 %v287
      %337 = vmatpush.msra.mxu0 %v286
      %338 = vmatpush.msra.mxu0 %v285
      %339 = vmatpush.msra.mxu0 %v284
      %340 = vmatpush.msra.mxu0 %v283
      %341 = vmatpush.msra.mxu0 %v282
      %342 = vmatpush.msra.mxu0 %v281
      %343 = vmatpush.msra.mxu0 %v280
      %344 = vmatpush.msra.mxu0 %v279
      %345 = vmatpush.msra.mxu0 %v278
      %346 = vmatpush.msra.mxu0 %v277
      %347 = vmatpush.msra.mxu0 %v276
      %348 = vmatpush.msra.mxu0 %v275
      %349 = vmatpush.msra.mxu0 %v274
      %350 = vmatmul.f32.gmra.mxu0 %v273
      %v351 = vpop.f32.mrf.mxu0
      %v352 = vadd.f32 %v332, %v351
      %353 = vdwg.mxu0
      %v354 = vsub.f32 0.0, %v352
      %v355 = vmul.f32 %v354, 1.442695
      %v356 = vpow.pop %v355
      %v357 = vadd.f32 %v356, 1.0
      %v358 = vrcp.pop %v357
      %v359 = vperm.slane %v358, 0
      %v360 = vmul.f32 %v213, %v359
      %v361 = vmul.f32 %v214, %v359
      %v362 = vpack.c.bf16 %v360, %v360
      %v363 = vpack.c.bf16 %v361, %v361
      %vm364 = vcmask 519168
      %365 = vst.msk [vmem:[%s205] sm:$0xf] %vm364, %v362
      %366 = vst.msk [vmem:[%s205 + $0x4] sm:$0xf] %vm364, %v363
      %v367 = vsel %vm215, %v360, 0.0
      %368 = vadd.xlane.f32.xlu0 %v367
      %v369 = vpop.xlane.xlu0 %368
      %v370 = vsel %vm215, %v361, 0.0
      %371 = vadd.xlane.f32.xlu0 %v370
      %v372 = vpop.xlane.xlu0 %371
      %v373 = vrcp.pop 64.0
      %v374 = vmul.f32 64.0, %v373
      %v375 = vsub.f32 1.0, %v374
      %v376 = vmul.f32 %v373, %v375
      %v377 = vadd.f32 %v373, %v376
      %vm378 = vweird.f32 %v373
      %v379 = vsel %vm378, %v373, %v377
      %v380 = vmul.f32 %v369, %v379
      %v381 = vmul.f32 %v372, %v379
      %v382 = vsel %vm215, %v360, -inf
      %383 = vmax.xlane.f32.xlu0 %v382
      %v384 = vpop.xlane.xlu0 %383
      %v385 = vsel %vm215, %v361, -inf
      %386 = vmax.xlane.f32.xlu0 %v385
      %v387 = vpop.xlane.xlu0 %386
      %vm388 = vcmask 7168
      %v389 = vsel %vm388, %v380, %v384
      %v390 = vsel %vm388, %v381, %v387
      %v391 = vpack.c.bf16 %v389, %v389
      %v392 = vpack.c.bf16 %v390, %v390
      %vm393 = vcmask 11264
      %394 = vst.msk [vmem:[%s210] sm:$0xf] %vm393, %v391
      %395 = vst.msk [vmem:[%s210 + $0x4] sm:$0xf] %vm393, %v392
      %p396 = scmp.lt.s32.totalorder %s16, 1
      %s397 = scalar_select %p396, %s16, 1
      %s398 = smul.addr %s397, 2
      %s399 = smul.addr %s398, 4
      %s400 = scalar_lea.vmem %s3, %s399
      %p401 = scmp.lt.s32.totalorder %s16, 1
      %s402 = scalar_select %p401, %s16, 1
      %s403 = smul.addr %s402, 2
      %s404 = smul.addr %s403, 4
      %s405 = scalar_lea.vmem %s4, %s404
      // Predicated region
      $region33: #{frame_encoder_forward.20} parent=31 // pred_check
        %p406 = pneg %p102
      $region34: #{frame_encoder_forward.20} parent=31 // pred_check_branch
        %408 = sbr.rel (%p406) target = $region36
      $region35: #{frame_encoder_forward.20} parent=31 // pred_region
        _
      $region36: #{frame_encoder_forward.20} parent=31 // pred_fallthru
        _
      // Predicated region
      $region37: #{frame_encoder_forward.20} parent=31 // pred_check
        %p409 = pneg %p128
      $region38: #{frame_encoder_forward.20} parent=31 // pred_check_branch
        %411 = sbr.rel (%p409) target = $region40
      $region39: #{frame_encoder_forward.20} parent=31 // pred_region
        _
      $region40: #{frame_encoder_forward.20} parent=31 // pred_fallthru
        _
    $region32: #{frame_encoder_forward.20} parent=5 // pred_fallthru
      _
    %p412 = scmp.le.s32.totalorder 2, %s11
    // Predicated region
    $region41: #{frame_encoder_forward.20} parent=5 // pred_check
      %p413 = pneg %p412
    $region42: #{frame_encoder_forward.20} parent=5 // pred_check_branch
      %415 = sbr.rel (%p413) target = $region44
    $region43: #{frame_encoder_forward.20} parent=5 // pred_region
      %s416 = ssub.s32 %s11, 2
      // Predicated region
      $region45: #{frame_encoder_forward.20} parent=43 // pred_check
        %p417 = pneg %p108
      $region46: #{frame_encoder_forward.20} parent=43 // pred_check_branch
        %419 = sbr.rel (%p417) target = $region48
      $region47: #{frame_encoder_forward.20} parent=43 // pred_region
        %p420 = scmp.lt.s32.totalorder %s17, 1
        %s421 = scalar_select %p420, %s17, 1
        %s422 = smul.addr %s421, 2
        %s423 = smul.addr %s422, 4
        %s424 = scalar_lea.vmem %s3, %s423
      $region48: #{frame_encoder_forward.20} parent=43 // pred_fallthru
        _
      // Predicated region
      $region49: #{frame_encoder_forward.20} parent=43 // pred_check
        %p425 = pneg %p134
      $region50: #{frame_encoder_forward.20} parent=43 // pred_check_branch
        %427 = sbr.rel (%p425) target = $region52
      $region51: #{frame_encoder_forward.20} parent=43 // pred_region
        %p428 = scmp.lt.s32.totalorder %s17, 1
        %s429 = scalar_select %p428, %s17, 1
        %s430 = smul.addr %s429, 2
        %s431 = smul.addr %s430, 4
        %s432 = scalar_lea.vmem %s4, %s431
      $region52: #{frame_encoder_forward.20} parent=43 // pred_fallthru
        _
    $region44: #{frame_encoder_forward.20} parent=5 // pred_fallthru
      _
  $region6: #{frame_encoder_forward.20} parent=0 // loop_footer
    %s15 = sadd.s32 1, %s11
  $region7: #{frame_encoder_forward.20} parent=0 // loop_footer_branch
    %10 = sbr.rel target = $region3
  $region8: #{frame_encoder_forward.20} parent=0 // loop_exit
    _

// kernel: frame_encoder_forward.19
$region0: #{frame_encoder_forward.19}
  #allocation0 [shape = 'u32[]', space=smem, size = 0x4, offset = 0x4, fixed_abs, tag = 'smem constant byte address 0x4 - core index']
  #allocation1 [shape = 'u32[72,128]{1,0:T(1,128)}', space=vmem, size = 0x9000, scoped, tag = 'internal scratch']
  #allocation2 [shape = 'f32[32,128]{1,0:T(8,128)}', space=vmem, size = 0x4000, scoped, tag = 'scratch operand']
  %s0 = inlined_call_operand.vmem [shape: bf16[32,640], index: 0, kind: input, shape index: {}]
  %s1 = inlined_call_operand.vmem [shape: bf16[640,128], index: 1, kind: input, shape index: {}]
  %s2 = inlined_call_operand.vmem [shape: f32[1,128], index: 2, kind: input, shape index: {}]
  %s3 = inlined_call_operand.vmem [shape: f32[1,128], index: 3, kind: input, shape index: {}]
  %s4 = inlined_call_operand.vmem [shape: bf16[32,128], index: 4, kind: output, shape index: {}]
  %s5 = sld [smem:[#allocation0]]
  $region34: #{frame_encoder_forward.19} parent=0
    _
  %s7 = ssub.s32 1, %s5
  %s8 = scalar_select 0, %s7, %s5
  // Predicated region
  $region2: #{frame_encoder_forward.19} parent=0 // pred_check
    _
  $region3: #{frame_encoder_forward.19} parent=0 // pred_check_branch
    %10 = sbr.rel (0) target = $region5
  $region4: #{frame_encoder_forward.19} parent=0 // pred_region
    _
  $region5: #{frame_encoder_forward.19} parent=0 // pred_fallthru
    _
  // Predicated region
  $region6: #{frame_encoder_forward.19} parent=0 // pred_check
    _
  $region7: #{frame_encoder_forward.19} parent=0 // pred_check_branch
    %12 = sbr.rel (0) target = $region9
  $region8: #{frame_encoder_forward.19} parent=0 // pred_region
    _
  $region9: #{frame_encoder_forward.19} parent=0 // pred_fallthru
    _
  // Predicated region
  $region10: #{frame_encoder_forward.19} parent=0 // pred_check
    _
  $region11: #{frame_encoder_forward.19} parent=0 // pred_check_branch
    %14 = sbr.rel (0) target = $region13
  $region12: #{frame_encoder_forward.19} parent=0 // pred_region
    _
  $region13: #{frame_encoder_forward.19} parent=0 // pred_fallthru
    _
  // Predicated region
  $region14: #{frame_encoder_forward.19} parent=0 // pred_check
    _
  $region15: #{frame_encoder_forward.19} parent=0 // pred_check_branch
    %16 = sbr.rel (0) target = $region17
  $region16: #{frame_encoder_forward.19} parent=0 // pred_region
    _
  $region17: #{frame_encoder_forward.19} parent=0 // pred_fallthru
    _
  %p17 = scmp.eq.s32.totalorder 0, 0
  // Predicated region
  $region18: #{frame_encoder_forward.19} parent=0 // pred_check
    %p18 = pneg %p17
  $region19: #{frame_encoder_forward.19} parent=0 // pred_check_branch
    %20 = sbr.rel (%p18) target = $region21
  $region20: #{frame_encoder_forward.19} parent=0 // pred_region
    %21 = vst [vmem:[#allocation2] sm:$0xff] 0.0
    %22 = vst [vmem:[#allocation2 + $0x8] sm:$0xff] 0.0
    %23 = vst [vmem:[#allocation2 + $0x10] sm:$0xff] 0.0
    %24 = vst [vmem:[#allocation2 + $0x18] sm:$0xff] 0.0
  $region21: #{frame_encoder_forward.19} parent=0 // pred_fallthru
    _
  %v25 = vld [vmem:[#allocation2] sm:$0xff]
  %v26 = vld [vmem:[#allocation2 + $0x8] sm:$0xff]
  %v27 = vld [vmem:[#allocation2 + $0x10] sm:$0xff]
  %v28 = vld [vmem:[#allocation2 + $0x18] sm:$0xff]
  %v29 = vld [vmem:[%s0] sm:$0xff]
  %v30 = vld [vmem:[%s0 + $0x8] sm:$0xff]
  %v31 = vld [vmem:[%s0 + $0x10] sm:$0xf]
  %v32 = vld [vmem:[%s0 + $0x14] sm:$0xff]
  %v33 = vld [vmem:[%s0 + $0x1c] sm:$0xff]
  %v34 = vld [vmem:[%s0 + $0x24] sm:$0xf]
  %v35 = vld [vmem:[%s0 + $0x28] sm:$0xff]
  %v36 = vld [vmem:[%s0 + $0x30] sm:$0xff]
  %v37 = vld [vmem:[%s0 + $0x38] sm:$0xf]
  %v38 = vld [vmem:[%s0 + $0x3c] sm:$0xff]
  %v39 = vld [vmem:[%s0 + $0x44] sm:$0xff]
  %v40 = vld [vmem:[%s0 + $0x4c] sm:$0xf]
  %v41 = vld [vmem:[%s1] sm:$0xf]
  %v42 = vld [vmem:[%s1 + $0x4] sm:$0xf]
  %v43 = vld [vmem:[%s1 + $0x8] sm:$0xf]
  %v44 = vld [vmem:[%s1 + $0xc] sm:$0xf]
  %v45 = vld [vmem:[%s1 + $0x10] sm:$0xf]
  %v46 = vld [vmem:[%s1 + $0x14] sm:$0xf]
  %v47 = vld [vmem:[%s1 + $0x18] sm:$0xf]
  %v48 = vld [vmem:[%s1 + $0x1c] sm:$0xf]
  %v49 = vld [vmem:[%s1 + $0x20] sm:$0xf]
  %v50 = vld [vmem:[%s1 + $0x24] sm:$0xf]
  %v51 = vld [vmem:[%s1 + $0x28] sm:$0xf]
  %v52 = vld [vmem:[%s1 + $0x2c] sm:$0xf]
  %v53 = vld [vmem:[%s1 + $0x30] sm:$0xf]
  %v54 = vld [vmem:[%s1 + $0x34] sm:$0xf]
  %v55 = vld [vmem:[%s1 + $0x38] sm:$0xf]
  %v56 = vld [vmem:[%s1 + $0x3c] sm:$0xf]
  %v57 = vld [vmem:[%s1 + $0x40] sm:$0xf]
  %v58 = vld [vmem:[%s1 + $0x44] sm:$0xf]
  %v59 = vld [vmem:[%s1 + $0x48] sm:$0xf]
  %v60 = vld [vmem:[%s1 + $0x4c] sm:$0xf]
  %v61 = vld [vmem:[%s1 + $0x50] sm:$0xf]
  %v62 = vld [vmem:[%s1 + $0x54] sm:$0xf]
  %v63 = vld [vmem:[%s1 + $0x58] sm:$0xf]
  %v64 = vld [vmem:[%s1 + $0x5c] sm:$0xf]
  %v65 = vld [vmem:[%s1 + $0x60] sm:$0xf]
  %v66 = vld [vmem:[%s1 + $0x64] sm:$0xf]
  %v67 = vld [vmem:[%s1 + $0x68] sm:$0xf]
  %v68 = vld [vmem:[%s1 + $0x6c] sm:$0xf]
  %v69 = vld [vmem:[%s1 + $0x70] sm:$0xf]
  %v70 = vld [vmem:[%s1 + $0x74] sm:$0xf]
  %v71 = vld [vmem:[%s1 + $0x78] sm:$0xf]
  %v72 = vld [vmem:[%s1 + $0x7c] sm:$0xf]
  %v73 = vld [vmem:[%s1 + $0x80] sm:$0xf]
  %v74 = vld [vmem:[%s1 + $0x84] sm:$0xf]
  %v75 = vld [vmem:[%s1 + $0x88] sm:$0xf]
  %v76 = vld [vmem:[%s1 + $0x8c] sm:$0xf]
  %v77 = vld [vmem:[%s1 + $0x90] sm:$0xf]
  %v78 = vld [vmem:[%s1 + $0x94] sm:$0xf]
  %v79 = vld [vmem:[%s1 + $0x98] sm:$0xf]
  %v80 = vld [vmem:[%s1 + $0x9c] sm:$0xf]
  %v81 = vld [vmem:[%s1 + $0xa0] sm:$0xf]
  %v82 = vld [vmem:[%s1 + $0xa4] sm:$0xf]
  %v83 = vld [vmem:[%s1 + $0xa8] sm:$0xf]
  %v84 = vld [vmem:[%s1 + $0xac] sm:$0xf]
  %v85 = vld [vmem:[%s1 + $0xb0] sm:$0xf]
  %v86 = vld [vmem:[%s1 + $0xb4] sm:$0xf]
  %v87 = vld [vmem:[%s1 + $0xb8] sm:$0xf]
  %v88 = vld [vmem:[%s1 + $0xbc] sm:$0xf]
  %v89 = vld [vmem:[%s1 + $0xc0] sm:$0xf]
  %v90 = vld [vmem:[%s1 + $0xc4] sm:$0xf]
  %v91 = vld [vmem:[%s1 + $0xc8] sm:$0xf]
  %v92 = vld [vmem:[%s1 + $0xcc] sm:$0xf]
  %v93 = vld [vmem:[%s1 + $0xd0] sm:$0xf]
  %v94 = vld [vmem:[%s1 + $0xd4] sm:$0xf]
  %v95 = vld [vmem:[%s1 + $0xd8] sm:$0xf]
  %v96 = vld [vmem:[%s1 + $0xdc] sm:$0xf]
  %v97 = vld [vmem:[%s1 + $0xe0] sm:$0xf]
  %v98 = vld [vmem:[%s1 + $0xe4] sm:$0xf]
  %v99 = vld [vmem:[%s1 + $0xe8] sm:$0xf]
  %v100 = vld [vmem:[%s1 + $0xec] sm:$0xf]
  %v101 = vld [vmem:[%s1 + $0xf0] sm:$0xf]
  %v102 = vld [vmem:[%s1 + $0xf4] sm:$0xf]
  %v103 = vld [vmem:[%s1 + $0xf8] sm:$0xf]
  %v104 = vld [vmem:[%s1 + $0xfc] sm:$0xf]
  %v105 = vld [vmem:[%s1 + $0x100] sm:$0xf]
  %v106 = vld [vmem:[%s1 + $0x104] sm:$0xf]
  %v107 = vld [vmem:[%s1 + $0x108] sm:$0xf]
  %v108 = vld [vmem:[%s1 + $0x10c] sm:$0xf]
  %v109 = vld [vmem:[%s1 + $0x110] sm:$0xf]
  %v110 = vld [vmem:[%s1 + $0x114] sm:$0xf]
  %v111 = vld [vmem:[%s1 + $0x118] sm:$0xf]
  %v112 = vld [vmem:[%s1 + $0x11c] sm:$0xf]
  %v113 = vld [vmem:[%s1 + $0x120] sm:$0xf]
  %v114 = vld [vmem:[%s1 + $0x124] sm:$0xf]
  %v115 = vld [vmem:[%s1 + $0x128] sm:$0xf]
  %v116 = vld [vmem:[%s1 + $0x12c] sm:$0xf]
  %v117 = vld [vmem:[%s1 + $0x130] sm:$0xf]
  %v118 = vld [vmem:[%s1 + $0x134] sm:$0xf]
  %v119 = vld [vmem:[%s1 + $0x138] sm:$0xf]
  %v120 = vld [vmem:[%s1 + $0x13c] sm:$0xf]
  %v133 = vunpack.c.l.b16 %v29
  %v134 = vunpack.c.h.b16 %v29
  %v135 = vunpack.c.l.b16 %v30
  %v136 = vunpack.c.h.b16 %v30
  %v137 = vunpack.c.l.b16 %v31
  %v138 = vunpack.c.l.b16 %v32
  %v139 = vunpack.c.h.b16 %v32
  %v140 = vunpack.c.l.b16 %v33
  %v141 = vunpack.c.h.b16 %v33
  %v142 = vunpack.c.l.b16 %v34
  %v143 = vunpack.c.l.b16 %v35
  %v144 = vunpack.c.h.b16 %v35
  %v145 = vunpack.c.l.b16 %v36
  %v146 = vunpack.c.h.b16 %v36
  %v147 = vunpack.c.l.b16 %v37
  %v148 = vunpack.c.l.b16 %v38
  %v149 = vunpack.c.h.b16 %v38
  %v150 = vunpack.c.l.b16 %v39
  %v151 = vunpack.c.h.b16 %v39
  %v152 = vunpack.c.l.b16 %v40
  %v153 = vpack.c.b16 %v138, %v133
  %v154 = vpack.c.b16 %v139, %v134
  %v155 = vpack.c.b16 %v140, %v135
  %v156 = vpack.c.b16 %v141, %v136
  %v157 = vpack.c.b16 %v142, %v137
  %v158 = vpack.c.b16 %v148, %v143
  %v159 = vpack.c.b16 %v149, %v144
  %v160 = vpack.c.b16 %v150, %v145
  %v161 = vpack.c.b16 %v151, %v146
  %v162 = vpack.c.b16 %v152, %v147
  %v253 = vunpack.c.l.b16 %v41
  %v254 = vunpack.c.l.b16 %v42
  %v255 = vunpack.c.l.b16 %v43
  %v256 = vunpack.c.l.b16 %v44
  %v257 = vunpack.c.l.b16 %v45
  %v258 = vunpack.c.l.b16 %v46
  %v259 = vunpack.c.l.b16 %v47
  %v260 = vunpack.c.l.b16 %v48
  %v261 = vunpack.c.l.b16 %v49
  %v262 = vunpack.c.l.b16 %v50
  %v263 = vunpack.c.l.b16 %v51
  %v264 = vunpack.c.l.b16 %v52
  %v265 = vunpack.c.l.b16 %v53
  %v266 = vunpack.c.l.b16 %v54
  %v267 = vunpack.c.l.b16 %v55
  %v268 = vunpack.c.l.b16 %v56
  %v269 = vunpack.c.l.b16 %v57
  %v270 = vunpack.c.l.b16 %v58
  %v271 = vunpack.c.l.b16 %v59
  %v272 = vunpack.c.l.b16 %v60
  %v273 = vunpack.c.l.b16 %v61
  %v274 = vunpack.c.l.b16 %v62
  %v275 = vunpack.c.l.b16 %v63
  %v276 = vunpack.c.l.b16 %v64
  %v277 = vunpack.c.l.b16 %v65
  %v278 = vunpack.c.l.b16 %v66
  %v279 = vunpack.c.l.b16 %v67
  %v280 = vunpack.c.l.b16 %v68
  %v281 = vunpack.c.l.b16 %v69
  %v282 = vunpack.c.l.b16 %v70
  %v283 = vunpack.c.l.b16 %v71
  %v284 = vunpack.c.l.b16 %v72
  %v285 = vunpack.c.l.b16 %v73
  %v286 = vunpack.c.l.b16 %v74
  %v287 = vunpack.c.l.b16 %v75
  %v288 = vunpack.c.l.b16 %v76
  %v289 = vunpack.c.l.b16 %v77
  %v290 = vunpack.c.l.b16 %v78
  %v291 = vunpack.c.l.b16 %v79
  %v292 = vunpack.c.l.b16 %v80
  %v293 = vunpack.c.l.b16 %v81
  %v294 = vunpack.c.l.b16 %v82
  %v295 = vunpack.c.l.b16 %v83
  %v296 = vunpack.c.l.b16 %v84
  %v297 = vunpack.c.l.b16 %v85
  %v298 = vunpack.c.l.b16 %v86
  %v299 = vunpack.c.l.b16 %v87
  %v300 = vunpack.c.l.b16 %v88
  %v301 = vunpack.c.l.b16 %v89
  %v302 = vunpack.c.l.b16 %v90
  %v303 = vunpack.c.l.b16 %v91
  %v304 = vunpack.c.l.b16 %v92
  %v305 = vunpack.c.l.b16 %v93
  %v306 = vunpack.c.l.b16 %v94
  %v307 = vunpack.c.l.b16 %v95
  %v308 = vunpack.c.l.b16 %v96
  %v309 = vunpack.c.l.b16 %v97
  %v310 = vunpack.c.l.b16 %v98
  %v311 = vunpack.c.l.b16 %v99
  %v312 = vunpack.c.l.b16 %v100
  %v313 = vunpack.c.l.b16 %v101
  %v314 = vunpack.c.l.b16 %v102
  %v315 = vunpack.c.l.b16 %v103
  %v316 = vunpack.c.l.b16 %v104
  %v317 = vunpack.c.l.b16 %v105
  %v318 = vunpack.c.l.b16 %v106
  %v319 = vunpack.c.l.b16 %v107
  %v320 = vunpack.c.l.b16 %v108
  %v321 = vunpack.c.l.b16 %v109
  %v322 = vunpack.c.l.b16 %v110
  %v323 = vunpack.c.l.b16 %v111
  %v324 = vunpack.c.l.b16 %v112
  %v325 = vunpack.c.l.b16 %v113
  %v326 = vunpack.c.l.b16 %v114
  %v327 = vunpack.c.l.b16 %v115
  %v328 = vunpack.c.l.b16 %v116
  %v329 = vunpack.c.l.b16 %v117
  %v330 = vunpack.c.l.b16 %v118
  %v331 = vunpack.c.l.b16 %v119
  %v332 = vunpack.c.l.b16 %v120
  %v333 = vpack.c.b16 %v254, %v253
  %v334 = vpack.c.b16 %v256, %v255
  %v335 = vpack.c.b16 %v258, %v257
  %v336 = vpack.c.b16 %v260, %v259
  %v337 = vpack.c.b16 %v262, %v261
  %v338 = vpack.c.b16 %v264, %v263
  %v339 = vpack.c.b16 %v266, %v265
  %v340 = vpack.c.b16 %v268, %v267
  %v341 = vpack.c.b16 %v270, %v269
  %v342 = vpack.c.b16 %v272, %v271
  %v343 = vpack.c.b16 %v274, %v273
  %v344 = vpack.c.b16 %v276, %v275
  %v345 = vpack.c.b16 %v278, %v277
  %v346 = vpack.c.b16 %v280, %v279
  %v347 = vpack.c.b16 %v282, %v281
  %v348 = vpack.c.b16 %v284, %v283
  %v349 = vpack.c.b16 %v286, %v285
  %v350 = vpack.c.b16 %v288, %v287
  %v351 = vpack.c.b16 %v290, %v289
  %v352 = vpack.c.b16 %v292, %v291
  %v353 = vpack.c.b16 %v294, %v293
  %v354 = vpack.c.b16 %v296, %v295
  %v355 = vpack.c.b16 %v298, %v297
  %v356 = vpack.c.b16 %v300, %v299
  %v357 = vpack.c.b16 %v302, %v301
  %v358 = vpack.c.b16 %v304, %v303
  %v359 = vpack.c.b16 %v306, %v305
  %v360 = vpack.c.b16 %v308, %v307
  %v361 = vpack.c.b16 %v310, %v309
  %v362 = vpack.c.b16 %v312, %v311
  %v363 = vpack.c.b16 %v314, %v313
  %v364 = vpack.c.b16 %v316, %v315
  %v365 = vpack.c.b16 %v318, %v317
  %v366 = vpack.c.b16 %v320, %v319
  %v367 = vpack.c.b16 %v322, %v321
  %v368 = vpack.c.b16 %v324, %v323
  %v369 = vpack.c.b16 %v326, %v325
  %v370 = vpack.c.b16 %v328, %v327
  %v371 = vpack.c.b16 %v330, %v329
  %v372 = vpack.c.b16 %v332, %v331
  %413 = vmatpush.bf16.msra.mxu0 %v340
  %414 = vmatpush.bf16.msra.mxu0 %v339
  %415 = vmatpush.bf16.msra.mxu0 %v338
  %416 = vmatpush.bf16.msra.mxu0 %v337
  %417 = vmatpush.bf16.msra.mxu0 %v336
  %418 = vmatpush.bf16.msra.mxu0 %v335
  %419 = vmatpush.bf16.msra.mxu0 %v334
  %420 = vmatpush.bf16.msra.mxu0 %v333
  %421 = vmatmul.bf16.gmra.mxu0 %v153
  %v422 = vpop.f32.mrf.mxu0
  %v423 = vadd.f32 0.0, %v422
  %v424 = vpop.f32.mrf.mxu0
  %v425 = vadd.f32 0.0, %v424
  %426 = vmatmul.bf16.gmra.mxu0 %v158
  %v427 = vpop.f32.mrf.mxu0
  %v428 = vadd.f32 0.0, %v427
  %v429 = vpop.f32.mrf.mxu0
  %v430 = vadd.f32 0.0, %v429
  %431 = vdwg.mxu0
  %432 = vmatpush.bf16.msra.mxu0 %v348
  %433 = vmatpush.bf16.msra.mxu0 %v347
  %434 = vmatpush.bf16.msra.mxu0 %v346
  %435 = vmatpush.bf16.msra.mxu0 %v345
  %436 = vmatpush.bf16.msra.mxu0 %v344
  %437 = vmatpush.bf16.msra.mxu0 %v343
  %438 = vmatpush.bf16.msra.mxu0 %v342
  %439 = vmatpush.bf16.msra.mxu0 %v341
  %440 = vmatmul.bf16.gmra.mxu0 %v154
  %v441 = vpop.f32.mrf.mxu0
  %v442 = vadd.f32 %v423, %v441
  %v443 = vpop.f32.mrf.mxu0
  %v444 = vadd.f32 %v425, %v443
  %445 = vmatmul.bf16.gmra.mxu0 %v159
  %v446 = vpop.f32.mrf.mxu0
  %v447 = vadd.f32 %v428, %v446
  %v448 = vpop.f32.mrf.mxu0
  %v449 = vadd.f32 %v430, %v448
  %450 = vdwg.mxu0
  %451 = vmatpush.bf16.msra.mxu0 %v356
  %452 = vmatpush.bf16.msra.mxu0 %v355
  %453 = vmatpush.bf16.msra.mxu0 %v354
  %454 = vmatpush.bf16.msra.mxu0 %v353
  %455 = vmatpush.bf16.msra.mxu0 %v352
  %456 = vmatpush.bf16.msra.mxu0 %v351
  %457 = vmatpush.bf16.msra.mxu0 %v350
  %458 = vmatpush.bf16.msra.mxu0 %v349
  %459 = vmatmul.bf16.gmra.mxu0 %v155
  %v460 = vpop.f32.mrf.mxu0
  %v461 = vadd.f32 %v442, %v460
  %v462 = vpop.f32.mrf.mxu0
  %v463 = vadd.f32 %v444, %v462
  %464 = vmatmul.bf16.gmra.mxu0 %v160
  %v465 = vpop.f32.mrf.mxu0
  %v466 = vadd.f32 %v447, %v465
  %v467 = vpop.f32.mrf.mxu0
  %v468 = vadd.f32 %v449, %v467
  %469 = vdwg.mxu0
  %470 = vmatpush.bf16.msra.mxu0 %v364
  %471 = vmatpush.bf16.msra.mxu0 %v363
  %472 = vmatpush.bf16.msra.mxu0 %v362
  %473 = vmatpush.bf16.msra.mxu0 %v361
  %474 = vmatpush.bf16.msra.mxu0 %v360
  %475 = vmatpush.bf16.msra.mxu0 %v359
  %476 = vmatpush.bf16.msra.mxu0 %v358
  %477 = vmatpush.bf16.msra.mxu0 %v357
  %478 = vmatmul.bf16.gmra.mxu0 %v156
  %v479 = vpop.f32.mrf.mxu0
  %v480 = vadd.f32 %v461, %v479
  %v481 = vpop.f32.mrf.mxu0
  %v482 = vadd.f32 %v463, %v481
  %483 = vmatmul.bf16.gmra.mxu0 %v161
  %v484 = vpop.f32.mrf.mxu0
  %v485 = vadd.f32 %v466, %v484
  %v486 = vpop.f32.mrf.mxu0
  %v487 = vadd.f32 %v468, %v486
  %488 = vdwg.mxu0
  %489 = vmatpush.bf16.msra.mxu0 %v372
  %490 = vmatpush.bf16.msra.mxu0 %v371
  %491 = vmatpush.bf16.msra.mxu0 %v370
  %492 = vmatpush.bf16.msra.mxu0 %v369
  %493 = vmatpush.bf16.msra.mxu0 %v368
  %494 = vmatpush.bf16.msra.mxu0 %v367
  %495 = vmatpush.bf16.msra.mxu0 %v366
  %496 = vmatpush.bf16.msra.mxu0 %v365
  %497 = vmatmul.bf16.gmra.mxu0 %v157
  %v498 = vpop.f32.mrf.mxu0
  %v499 = vadd.f32 %v480, %v498
  %v500 = vpop.f32.mrf.mxu0
  %v501 = vadd.f32 %v482, %v500
  %502 = vmatmul.bf16.gmra.mxu0 %v162
  %v503 = vpop.f32.mrf.mxu0
  %v504 = vadd.f32 %v485, %v503
  %v505 = vpop.f32.mrf.mxu0
  %v506 = vadd.f32 %v487, %v505
  %507 = vdwg.mxu0
  %v508 = vadd.f32 %v25, %v499
  %v509 = vadd.f32 %v26, %v501
  %v510 = vadd.f32 %v27, %v504
  %v511 = vadd.f32 %v28, %v506
  %512 = vst [vmem:[#allocation2] sm:$0xff] %v508
  %513 = vst [vmem:[#allocation2 + $0x8] sm:$0xff] %v509
  %514 = vst [vmem:[#allocation2 + $0x10] sm:$0xff] %v510
  %515 = vst [vmem:[#allocation2 + $0x18] sm:$0xff] %v511
  // Predicated region
  $region22: #{frame_encoder_forward.19} parent=0 // pred_check
    %p516 = pneg %p17
  $region23: #{frame_encoder_forward.19} parent=0 // pred_check_branch
    %518 = sbr.rel (%p516) target = $region25
  $region24: #{frame_encoder_forward.19} parent=0 // pred_region
    %v519 = vld [vmem:[#allocation2] sm:$0xff]
    %v520 = vld [vmem:[#allocation2 + $0x8] sm:$0xff]
    %v521 = vld [vmem:[#allocation2 + $0x10] sm:$0xff]
    %v522 = vld [vmem:[#allocation2 + $0x18] sm:$0xff]
    %v523 = vld [vmem:[%s2] sm:$0x1]
    %v525 = vperm.slane %v523, 0
    %v527 = vmul.f32 %v519, %v525
    %v528 = vmul.f32 %v520, %v525
    %v529 = vmul.f32 %v521, %v525
    %v530 = vmul.f32 %v522, %v525
    %v531 = vld [vmem:[%s3] sm:$0x1]
    %v533 = vperm.slane %v531, 0
    %v535 = vadd.f32 %v527, %v533
    %v536 = vadd.f32 %v528, %v533
    %v537 = vadd.f32 %v529, %v533
    %v538 = vadd.f32 %v530, %v533
    %v539 = vpack.c.bf16 %v535, %v535
    %v540 = vpack.c.bf16 %v536, %v536
    %v541 = vpack.c.bf16 %v537, %v537
    %v542 = vpack.c.bf16 %v538, %v538
    %543 = vst [vmem:[%s4] sm:$0xf] %v539
    %544 = vst [vmem:[%s4 + $0x4] sm:$0xf] %v540
    %545 = vst [vmem:[%s4 + $0x8] sm:$0xf] %v541
    %546 = vst [vmem:[%s4 + $0xc] sm:$0xf] %v542
  $region25: #{frame_encoder_forward.19} parent=0 // pred_fallthru
    _
  // Predicated region
  $region26: #{frame_encoder_forward.19} parent=0 // pred_check
    _
  $region27: #{frame_encoder_forward.19} parent=0 // pred_check_branch
    %548 = sbr.rel (0) target = $region29
  $region28: #{frame_encoder_forward.19} parent=0 // pred_region
    _
  $region29: #{frame_encoder_forward.19} parent=0 // pred_fallthru
    _
  // Predicated region
  $region30: #{frame_encoder_forward.19} parent=0 // pred_check
    _
  $region31: #{frame_encoder_forward.19} parent=0 // pred_check_branch
    %550 = sbr.rel (0) target = $region33
  $region32: #{frame_encoder_forward.19} parent=0 // pred_region
    _
  $region33: #{frame_encoder_forward.19} parent=0 // pred_fallthru
    _

// kernel: frame_encoder_forward.17
$region0: #{frame_encoder_forward.17}
  #allocation0 [shape = 'u32[]', space=smem, size = 0x4, offset = 0x4, fixed_abs, tag = 'smem constant byte address 0x4 - core index']
  #allocation1 [shape = 'u32[72,128]{1,0:T(1,128)}', space=vmem, size = 0x9000, scoped, tag = 'internal scratch']
  #allocation2 [shape = 'f32[32,128]{1,0:T(8,128)}', space=vmem, size = 0x4000, scoped, tag = 'scratch operand']
  %s0 = inlined_call_operand.vmem [shape: bf16[32,32], index: 0, kind: input, shape index: {}]
  %s1 = inlined_call_operand.vmem [shape: bf16[32,128], index: 1, kind: input, shape index: {}]
  %s2 = inlined_call_operand.vmem [shape: f32[1,128], index: 2, kind: input, shape index: {}]
  %s3 = inlined_call_operand.vmem [shape: f32[1,128], index: 3, kind: input, shape index: {}]
  %s4 = inlined_call_operand.vmem [shape: bf16[32,128], index: 4, kind: output, shape index: {}]
  %s5 = sld [smem:[#allocation0]]
  $region34: #{frame_encoder_forward.17} parent=0
    _
  %s7 = ssub.s32 1, %s5
  %s8 = scalar_select 0, %s7, %s5
  // Predicated region
  $region2: #{frame_encoder_forward.17} parent=0 // pred_check
    _
  $region3: #{frame_encoder_forward.17} parent=0 // pred_check_branch
    %10 = sbr.rel (0) target = $region5
  $region4: #{frame_encoder_forward.17} parent=0 // pred_region
    _
  $region5: #{frame_encoder_forward.17} parent=0 // pred_fallthru
    _
  // Predicated region
  $region6: #{frame_encoder_forward.17} parent=0 // pred_check
    _
  $region7: #{frame_encoder_forward.17} parent=0 // pred_check_branch
    %12 = sbr.rel (0) target = $region9
  $region8: #{frame_encoder_forward.17} parent=0 // pred_region
    _
  $region9: #{frame_encoder_forward.17} parent=0 // pred_fallthru
    _
  // Predicated region
  $region10: #{frame_encoder_forward.17} parent=0 // pred_check
    _
  $region11: #{frame_encoder_forward.17} parent=0 // pred_check_branch
    %14 = sbr.rel (0) target = $region13
  $region12: #{frame_encoder_forward.17} parent=0 // pred_region
    _
  $region13: #{frame_encoder_forward.17} parent=0 // pred_fallthru
    _
  // Predicated region
  $region14: #{frame_encoder_forward.17} parent=0 // pred_check
    _
  $region15: #{frame_encoder_forward.17} parent=0 // pred_check_branch
    %16 = sbr.rel (0) target = $region17
  $region16: #{frame_encoder_forward.17} parent=0 // pred_region
    _
  $region17: #{frame_encoder_forward.17} parent=0 // pred_fallthru
    _
  %p18 = scmp.eq.s32.totalorder 0, 0
  // Predicated region
  $region18: #{frame_encoder_forward.17} parent=0 // pred_check
    %p19 = pneg %p18
  $region19: #{frame_encoder_forward.17} parent=0 // pred_check_branch
    %21 = sbr.rel (%p19) target = $region21
  $region20: #{frame_encoder_forward.17} parent=0 // pred_region
    %22 = vst [vmem:[#allocation2] sm:$0xff] 0.0
    %23 = vst [vmem:[#allocation2 + $0x8] sm:$0xff] 0.0
    %24 = vst [vmem:[#allocation2 + $0x10] sm:$0xff] 0.0
    %25 = vst [vmem:[#allocation2 + $0x18] sm:$0xff] 0.0
  $region21: #{frame_encoder_forward.17} parent=0 // pred_fallthru
    _
  %v26 = vld [vmem:[#allocation2] sm:$0xff]
  %v27 = vld [vmem:[#allocation2 + $0x8] sm:$0xff]
  %v28 = vld [vmem:[#allocation2 + $0x10] sm:$0xff]
  %v29 = vld [vmem:[#allocation2 + $0x18] sm:$0xff]
  %v30 = vld [vmem:[%s0] sm:$0xf]
  %v31 = vld [vmem:[%s0 + $0x4] sm:$0xf]
  %v32 = vld [vmem:[%s0 + $0x8] sm:$0xf]
  %v33 = vld [vmem:[%s0 + $0xc] sm:$0xf]
  %v34 = vld [vmem:[%s1] sm:$0xf]
  %v35 = vld [vmem:[%s1 + $0x4] sm:$0xf]
  %v36 = vld [vmem:[%s1 + $0x8] sm:$0xf]
  %v37 = vld [vmem:[%s1 + $0xc] sm:$0xf]
  %v42 = vunpack.c.l.b16 %v30
  %v43 = vunpack.c.l.b16 %v31
  %v44 = vunpack.c.l.b16 %v32
  %v45 = vunpack.c.l.b16 %v33
  %v46 = vpack.c.b16 %v43, %v42
  %v47 = vpack.c.b16 %v45, %v44
  %v52 = vunpack.c.l.b16 %v34
  %v53 = vunpack.c.l.b16 %v35
  %v54 = vunpack.c.l.b16 %v36
  %v55 = vunpack.c.l.b16 %v37
  %v56 = vpack.c.b16 %v53, %v52
  %v57 = vpack.c.b16 %v55, %v54
  %vm60 = vcmask 261120
  %v62 = vsel %vm60, %v46, 0
  %v65 = vsel %vm60, %v47, 0
  %67 = vmatpush.bf16.msra.mxu0 0
  %68 = vmatpush.bf16.msra.mxu0 0
  %69 = vmatpush.bf16.msra.mxu0 0
  %70 = vmatpush.bf16.msra.mxu0 0
  %71 = vmatpush.bf16.msra.mxu0 0
  %72 = vmatpush.bf16.msra.mxu0 0
  %73 = vmatpush.bf16.msra.mxu0 %v57
  %74 = vmatpush.bf16.msra.mxu0 %v56
  %75 = vmatmul.bf16.gmra.mxu0 %v62
  %v76 = vpop.f32.mrf.mxu0
  %v77 = vadd.f32 0.0, %v76
  %v78 = vpop.f32.mrf.mxu0
  %v79 = vadd.f32 0.0, %v78
  %80 = vmatmul.bf16.gmra.mxu0 %v65
  %v81 = vpop.f32.mrf.mxu0
  %v82 = vadd.f32 0.0, %v81
  %v83 = vpop.f32.mrf.mxu0
  %v84 = vadd.f32 0.0, %v83
  %85 = vdwg.mxu0
  %v86 = vadd.f32 %v26, %v77
  %v87 = vadd.f32 %v27, %v79
  %v88 = vadd.f32 %v28, %v82
  %v89 = vadd.f32 %v29, %v84
  %90 = vst [vmem:[#allocation2] sm:$0xff] %v86
  %91 = vst [vmem:[#allocation2 + $0x8] sm:$0xff] %v87
  %92 = vst [vmem:[#allocation2 + $0x10] sm:$0xff] %v88
  %93 = vst [vmem:[#allocation2 + $0x18] sm:$0xff] %v89
  // Predicated region
  $region22: #{frame_encoder_forward.17} parent=0 // pred_check
    %p94 = pneg %p18
  $region23: #{frame_encoder_forward.17} parent=0 // pred_check_branch
    %96 = sbr.rel (%p94) target = $region25
  $region24: #{frame_encoder_forward.17} parent=0 // pred_region
    %v97 = vld [vmem:[#allocation2] sm:$0xff]
    %v98 = vld [vmem:[#allocation2 + $0x8] sm:$0xff]
    %v99 = vld [vmem:[#allocation2 + $0x10] sm:$0xff]
    %v100 = vld [vmem:[#allocation2 + $0x18] sm:$0xff]
    %v101 = vld [vmem:[%s2] sm:$0x1]
    %v103 = vperm.slane %v101, 0
    %v105 = vmul.f32 %v97, %v103
    %v106 = vmul.f32 %v98, %v103
    %v107 = vmul.f32 %v99, %v103
    %v108 = vmul.f32 %v100, %v103
    %v109 = vld [vmem:[%s3] sm:$0x1]
    %v111 = vperm.slane %v109, 0
    %v113 = vadd.f32 %v105, %v111
    %v114 = vadd.f32 %v106, %v111
    %v115 = vadd.f32 %v107, %v111
    %v116 = vadd.f32 %v108, %v111
    %v117 = vpack.c.bf16 %v113, %v113
    %v118 = vpack.c.bf16 %v114, %v114
    %v119 = vpack.c.bf16 %v115, %v115
    %v120 = vpack.c.bf16 %v116, %v116
    %121 = vst [vmem:[%s4] sm:$0xf] %v117
    %122 = vst [vmem:[%s4 + $0x4] sm:$0xf] %v118
    %123 = vst [vmem:[%s4 + $0x8] sm:$0xf] %v119
    %124 = vst [vmem:[%s4 + $0xc] sm:$0xf] %v120
  $region25: #{frame_encoder_forward.17} parent=0 // pred_fallthru
    _
  // Predicated region
  $region26: #{frame_encoder_forward.17} parent=0 // pred_check
    _
  $region27: #{frame_encoder_forward.17} parent=0 // pred_check_branch
    %126 = sbr.rel (0) target = $region29
  $region28: #{frame_encoder_forward.17} parent=0 // pred_region
    _
  $region29: #{frame_encoder_forward.17} parent=0 // pred_fallthru
    _
  // Predicated region
  $region30: #{frame_encoder_forward.17} parent=0 // pred_check
    _
  $region31: #{frame_encoder_forward.17} parent=0 // pred_check_branch
    %128 = sbr.rel (0) target = $region33
  $region32: #{frame_encoder_forward.17} parent=0 // pred_region
    _
  $region33: #{frame_encoder_forward.17} parent=0 // pred_fallthru
    _

// kernel: frame_encoder_forward.21
$region0: #{frame_encoder_forward.21}
  #allocation0 [shape = 'u32[]', space=smem, size = 0x4, offset = 0x4, fixed_abs, tag = 'smem constant byte address 0x4 - core index']
  #allocation1 [shape = 'u32[72,128]{1,0:T(1,128)}', space=vmem, size = 0x9000, scoped, tag = 'internal scratch']
  %s0 = inlined_call_operand.vmem [shape: bf16[32,128], index: 0, kind: input, shape index: {}]
  %s1 = inlined_call_operand.vmem [shape: bf16[128,64], index: 1, kind: input, shape index: {}]
  %s2 = inlined_call_operand.vmem [shape: bf16[32,64], index: 2, kind: input, shape index: {}]
  %s3 = inlined_call_operand.vmem [shape: bf16[32,64], index: 3, kind: input, shape index: {}]
  %s4 = inlined_call_operand.vmem [shape: bf16[32,64], index: 4, kind: output, shape index: {}]
  %s5 = sld [smem:[#allocation0]]
  $region26: #{frame_encoder_forward.21} parent=0
    _
  %s7 = ssub.s32 1, %s5
  %s8 = scalar_select 0, %s7, %s5
  // Predicated region
  $region2: #{frame_encoder_forward.21} parent=0 // pred_check
    _
  $region3: #{frame_encoder_forward.21} parent=0 // pred_check_branch
    %10 = sbr.rel (0) target = $region5
  $region4: #{frame_encoder_forward.21} parent=0 // pred_region
    _
  $region5: #{frame_encoder_forward.21} parent=0 // pred_fallthru
    _
  // Predicated region
  $region6: #{frame_encoder_forward.21} parent=0 // pred_check
    _
  $region7: #{frame_encoder_forward.21} parent=0 // pred_check_branch
    %12 = sbr.rel (0) target = $region9
  $region8: #{frame_encoder_forward.21} parent=0 // pred_region
    _
  $region9: #{frame_encoder_forward.21} parent=0 // pred_fallthru
    _
  // Predicated region
  $region10: #{frame_encoder_forward.21} parent=0 // pred_check
    _
  $region11: #{frame_encoder_forward.21} parent=0 // pred_check_branch
    %14 = sbr.rel (0) target = $region13
  $region12: #{frame_encoder_forward.21} parent=0 // pred_region
    _
  $region13: #{frame_encoder_forward.21} parent=0 // pred_fallthru
    _
  // Predicated region
  $region14: #{frame_encoder_forward.21} parent=0 // pred_check
    _
  $region15: #{frame_encoder_forward.21} parent=0 // pred_check_branch
    %16 = sbr.rel (0) target = $region17
  $region16: #{frame_encoder_forward.21} parent=0 // pred_region
    _
  $region17: #{frame_encoder_forward.21} parent=0 // pred_fallthru
    _
  %v17 = vld [vmem:[%s0] sm:$0xf]
  %v18 = vld [vmem:[%s0 + $0x4] sm:$0xf]
  %v19 = vld [vmem:[%s0 + $0x8] sm:$0xf]
  %v20 = vld [vmem:[%s0 + $0xc] sm:$0xf]
  %v21 = vld [vmem:[%s1] sm:$0xf]
  %v22 = vld [vmem:[%s1 + $0x4] sm:$0xf]
  %v23 = vld [vmem:[%s1 + $0x8] sm:$0xf]
  %v24 = vld [vmem:[%s1 + $0xc] sm:$0xf]
  %v25 = vld [vmem:[%s1 + $0x10] sm:$0xf]
  %v26 = vld [vmem:[%s1 + $0x14] sm:$0xf]
  %v27 = vld [vmem:[%s1 + $0x18] sm:$0xf]
  %v28 = vld [vmem:[%s1 + $0x1c] sm:$0xf]
  %v29 = vld [vmem:[%s1 + $0x20] sm:$0xf]
  %v30 = vld [vmem:[%s1 + $0x24] sm:$0xf]
  %v31 = vld [vmem:[%s1 + $0x28] sm:$0xf]
  %v32 = vld [vmem:[%s1 + $0x2c] sm:$0xf]
  %v33 = vld [vmem:[%s1 + $0x30] sm:$0xf]
  %v34 = vld [vmem:[%s1 + $0x34] sm:$0xf]
  %v35 = vld [vmem:[%s1 + $0x38] sm:$0xf]
  %v36 = vld [vmem:[%s1 + $0x3c] sm:$0xf]
  %v41 = vunpack.c.l.b16 %v17
  %v42 = vunpack.c.l.b16 %v18
  %v43 = vunpack.c.l.b16 %v19
  %v44 = vunpack.c.l.b16 %v20
  %v45 = vpack.c.b16 %v42, %v41
  %v46 = vpack.c.b16 %v44, %v43
  %v65 = vunpack.c.l.b16 %v21
  %v66 = vunpack.c.l.b16 %v22
  %v67 = vunpack.c.l.b16 %v23
  %v68 = vunpack.c.l.b16 %v24
  %v69 = vunpack.c.l.b16 %v25
  %v70 = vunpack.c.l.b16 %v26
  %v71 = vunpack.c.l.b16 %v27
  %v72 = vunpack.c.l.b16 %v28
  %v73 = vunpack.c.l.b16 %v29
  %v74 = vunpack.c.l.b16 %v30
  %v75 = vunpack.c.l.b16 %v31
  %v76 = vunpack.c.l.b16 %v32
  %v77 = vunpack.c.l.b16 %v33
  %v78 = vunpack.c.l.b16 %v34
  %v79 = vunpack.c.l.b16 %v35
  %v80 = vunpack.c.l.b16 %v36
  %v81 = vpack.c.b16 %v66, %v65
  %v82 = vpack.c.b16 %v68, %v67
  %v83 = vpack.c.b16 %v70, %v69
  %v84 = vpack.c.b16 %v72, %v71
  %v85 = vpack.c.b16 %v74, %v73
  %v86 = vpack.c.b16 %v76, %v75
  %v87 = vpack.c.b16 %v78, %v77
  %v88 = vpack.c.b16 %v80, %v79
  %97 = vmatpush.bf16.msra.mxu0 %v88
  %98 = vmatpush.bf16.msra.mxu0 %v87
  %99 = vmatpush.bf16.msra.mxu0 %v86
  %100 = vmatpush.bf16.msra.mxu0 %v85
  %101 = vmatpush.bf16.msra.mxu0 %v84
  %102 = vmatpush.bf16.msra.mxu0 %v83
  %103 = vmatpush.bf16.msra.mxu0 %v82
  %104 = vmatpush.bf16.msra.mxu0 %v81
  %105 = vmatmul.bf16.gmra.mxu0 %v45
  %v106 = vpop.f32.mrf.mxu0
  %v107 = vadd.f32 0.0, %v106
  %v108 = vpop.f32.mrf.mxu0
  %v109 = vadd.f32 0.0, %v108
  %110 = vmatmul.bf16.gmra.mxu0 %v46
  %v111 = vpop.f32.mrf.mxu0
  %v112 = vadd.f32 0.0, %v111
  %v113 = vpop.f32.mrf.mxu0
  %v114 = vadd.f32 0.0, %v113
  %115 = vdwg.mxu0
  %v116 = vsub.f32 0.0, %v107
  %v117 = vsub.f32 0.0, %v109
  %v118 = vsub.f32 0.0, %v112
  %v119 = vsub.f32 0.0, %v114
  %v120 = vmul.f32 %v116, 1.442695
  %v121 = vpow.pop %v120
  %v122 = vmul.f32 %v117, 1.442695
  %v123 = vpow.pop %v122
  %v124 = vmul.f32 %v118, 1.442695
  %v125 = vpow.pop %v124
  %v126 = vmul.f32 %v119, 1.442695
  %v127 = vpow.pop %v126
  %v128 = vadd.f32 %v121, 1.0
  %v129 = vadd.f32 %v123, 1.0
  %v130 = vadd.f32 %v125, 1.0
  %v131 = vadd.f32 %v127, 1.0
  %v132 = vrcp.pop %v128
  %v133 = vrcp.pop %v129
  %v134 = vrcp.pop %v130
  %v135 = vrcp.pop %v131
  %v136 = vld [vmem:[%s2] sm:$0xf]
  %v137 = vld [vmem:[%s2 + $0x4] sm:$0xf]
  %v138 = vld [vmem:[%s2 + $0x8] sm:$0xf]
  %v139 = vld [vmem:[%s2 + $0xc] sm:$0xf]
  %v140 = vunpack.c.l.bf16 %v136
  %v141 = vunpack.c.l.bf16 %v137
  %v142 = vunpack.c.l.bf16 %v138
  %v143 = vunpack.c.l.bf16 %v139
  %v144 = vmul.f32 %v140, %v132
  %v145 = vmul.f32 %v141, %v133
  %v146 = vmul.f32 %v142, %v134
  %v147 = vmul.f32 %v143, %v135
  %v148 = vld [vmem:[%s3] sm:$0xf]
  %v149 = vld [vmem:[%s3 + $0x4] sm:$0xf]
  %v150 = vld [vmem:[%s3 + $0x8] sm:$0xf]
  %v151 = vld [vmem:[%s3 + $0xc] sm:$0xf]
  %v152 = vunpack.c.l.bf16 %v148
  %v153 = vunpack.c.l.bf16 %v149
  %v154 = vunpack.c.l.bf16 %v150
  %v155 = vunpack.c.l.bf16 %v151
  %v156 = vadd.f32 %v144, %v152
  %v157 = vadd.f32 %v145, %v153
  %v158 = vadd.f32 %v146, %v154
  %v159 = vadd.f32 %v147, %v155
  %v160 = vmax.f32 %v156, 0.0
  %v161 = vmax.f32 %v157, 0.0
  %v162 = vmax.f32 %v158, 0.0
  %v163 = vmax.f32 %v159, 0.0
  %v164 = vpack.c.bf16 %v160, %v160
  %v165 = vpack.c.bf16 %v161, %v161
  %v166 = vpack.c.bf16 %v162, %v162
  %v167 = vpack.c.bf16 %v163, %v163
  %vm168 = vcmask 519168
  %169 = vst.msk [vmem:[%s4] sm:$0xf] %vm168, %v164
  %170 = vst.msk [vmem:[%s4 + $0x4] sm:$0xf] %vm168, %v165
  %171 = vst.msk [vmem:[%s4 + $0x8] sm:$0xf] %vm168, %v166
  %172 = vst.msk [vmem:[%s4 + $0xc] sm:$0xf] %vm168, %v167
  // Predicated region
  $region18: #{frame_encoder_forward.21} parent=0 // pred_check
    _
  $region19: #{frame_encoder_forward.21} parent=0 // pred_check_branch
    %174 = sbr.rel (0) target = $region21
  $region20: #{frame_encoder_forward.21} parent=0 // pred_region
    _
  $region21: #{frame_encoder_forward.21} parent=0 // pred_fallthru
    _
  // Predicated region
  $region22: #{frame_encoder_forward.21} parent=0 // pred_check
    _
  $region23: #{frame_encoder_forward.21} parent=0 // pred_check_branch
    %176 = sbr.rel (0) target = $region25
  $region24: #{frame_encoder_forward.21} parent=0 // pred_region
    _
  $region25: #{frame_encoder_forward.21} parent=0 // pred_fallthru
    _

// kernel: frame_encoder_forward.23
$region0: #{frame_encoder_forward.23}
  #allocation0 [shape = 'u32[]', space=smem, size = 0x4, offset = 0x4, fixed_abs, tag = 'smem constant byte address 0x4 - core index']
  #allocation1 [shape = 'u32[72,128]{1,0:T(1,128)}', space=vmem, size = 0x9000, scoped, tag = 'internal scratch']
  #allocation2 [shape = 'f32[16,128]{1,0:T(8,128)}', space=vmem, size = 0x2000, scoped, tag = 'scratch operand']
  %s0 = inlined_call_operand.vmem [shape: bf16[16,640], index: 0, kind: input, shape index: {}]
  %s1 = inlined_call_operand.vmem [shape: bf16[640,128], index: 1, kind: input, shape index: {}]
  %s2 = inlined_call_operand.vmem [shape: f32[1,128], index: 2, kind: input, shape index: {}]
  %s3 = inlined_call_operand.vmem [shape: f32[1,128], index: 3, kind: input, shape index: {}]
  %s4 = inlined_call_operand.vmem [shape: bf16[16,128], index: 4, kind: output, shape index: {}]
  %s5 = sld [smem:[#allocation0]]
  $region34: #{frame_encoder_forward.23} parent=0
    _
  %s7 = ssub.s32 1, %s5
  %s8 = scalar_select 0, %s7, %s5
  // Predicated region
  $region2: #{frame_encoder_forward.23} parent=0 // pred_check
    _
  $region3: #{frame_encoder_forward.23} parent=0 // pred_check_branch
    %10 = sbr.rel (0) target = $region5
  $region4: #{frame_encoder_forward.23} parent=0 // pred_region
    _
  $region5: #{frame_encoder_forward.23} parent=0 // pred_fallthru
    _
  // Predicated region
  $region6: #{frame_encoder_forward.23} parent=0 // pred_check
    _
  $region7: #{frame_encoder_forward.23} parent=0 // pred_check_branch
    %12 = sbr.rel (0) target = $region9
  $region8: #{frame_encoder_forward.23} parent=0 // pred_region
    _
  $region9: #{frame_encoder_forward.23} parent=0 // pred_fallthru
    _
  // Predicated region
  $region10: #{frame_encoder_forward.23} parent=0 // pred_check
    _
  $region11: #{frame_encoder_forward.23} parent=0 // pred_check_branch
    %14 = sbr.rel (0) target = $region13
  $region12: #{frame_encoder_forward.23} parent=0 // pred_region
    _
  $region13: #{frame_encoder_forward.23} parent=0 // pred_fallthru
    _
  // Predicated region
  $region14: #{frame_encoder_forward.23} parent=0 // pred_check
    _
  $region15: #{frame_encoder_forward.23} parent=0 // pred_check_branch
    %16 = sbr.rel (0) target = $region17
  $region16: #{frame_encoder_forward.23} parent=0 // pred_region
    _
  $region17: #{frame_encoder_forward.23} parent=0 // pred_fallthru
    _
  %p17 = scmp.eq.s32.totalorder 0, 0
  // Predicated region
  $region18: #{frame_encoder_forward.23} parent=0 // pred_check
    %p18 = pneg %p17
  $region19: #{frame_encoder_forward.23} parent=0 // pred_check_branch
    %20 = sbr.rel (%p18) target = $region21
  $region20: #{frame_encoder_forward.23} parent=0 // pred_region
    %21 = vst [vmem:[#allocation2] sm:$0xff] 0.0
    %22 = vst [vmem:[#allocation2 + $0x8] sm:$0xff] 0.0
  $region21: #{frame_encoder_forward.23} parent=0 // pred_fallthru
    _
  %v23 = vld [vmem:[#allocation2] sm:$0xff]
  %v24 = vld [vmem:[#allocation2 + $0x8] sm:$0xff]
  %v25 = vld [vmem:[%s0] sm:$0xff]
  %v26 = vld [vmem:[%s0 + $0x8] sm:$0xff]
  %v27 = vld [vmem:[%s0 + $0x10] sm:$0xf]
  %v28 = vld [vmem:[%s0 + $0x14] sm:$0xff]
  %v29 = vld [vmem:[%s0 + $0x1c] sm:$0xff]
  %v30 = vld [vmem:[%s0 + $0x24] sm:$0xf]
  %v31 = vld [vmem:[%s1] sm:$0xf]
  %v32 = vld [vmem:[%s1 + $0x4] sm:$0xf]
  %v33 = vld [vmem:[%s1 + $0x8] sm:$0xf]
  %v34 = vld [vmem:[%s1 + $0xc] sm:$0xf]
  %v35 = vld [vmem:[%s1 + $0x10] sm:$0xf]
  %v36 = vld [vmem:[%s1 + $0x14] sm:$0xf]
  %v37 = vld [vmem:[%s1 + $0x18] sm:$0xf]
  %v38 = vld [vmem:[%s1 + $0x1c] sm:$0xf]
  %v39 = vld [vmem:[%s1 + $0x20] sm:$0xf]
  %v40 = vld [vmem:[%s1 + $0x24] sm:$0xf]
  %v41 = vld [vmem:[%s1 + $0x28] sm:$0xf]
  %v42 = vld [vmem:[%s1 + $0x2c] sm:$0xf]
  %v43 = vld [vmem:[%s1 + $0x30] sm:$0xf]
  %v44 = vld [vmem:[%s1 + $0x34] sm:$0xf]
  %v45 = vld [vmem:[%s1 + $0x38] sm:$0xf]
  %v46 = vld [vmem:[%s1 + $0x3c] sm:$0xf]
  %v47 = vld [vmem:[%s1 + $0x40] sm:$0xf]
  %v48 = vld [vmem:[%s1 + $0x44] sm:$0xf]
  %v49 = vld [vmem:[%s1 + $0x48] sm:$0xf]
  %v50 = vld [vmem:[%s1 + $0x4c] sm:$0xf]
  %v51 = vld [vmem:[%s1 + $0x50] sm:$0xf]
  %v52 = vld [vmem:[%s1 + $0x54] sm:$0xf]
  %v53 = vld [vmem:[%s1 + $0x58] sm:$0xf]
  %v54 = vld [vmem:[%s1 + $0x5c] sm:$0xf]
  %v55 = vld [vmem:[%s1 + $0x60] sm:$0xf]
  %v56 = vld [vmem:[%s1 + $0x64] sm:$0xf]
  %v57 = vld [vmem:[%s1 + $0x68] sm:$0xf]
  %v58 = vld [vmem:[%s1 + $0x6c] sm:$0xf]
  %v59 = vld [vmem:[%s1 + $0x70] sm:$0xf]
  %v60 = vld [vmem:[%s1 + $0x74] sm:$0xf]
  %v61 = vld [vmem:[%s1 + $0x78] sm:$0xf]
  %v62 = vld [vmem:[%s1 + $0x7c] sm:$0xf]
  %v63 = vld [vmem:[%s1 + $0x80] sm:$0xf]
  %v64 = vld [vmem:[%s1 + $0x84] sm:$0xf]
  %v65 = vld [vmem:[%s1 + $0x88] sm:$0xf]
  %v66 = vld [vmem:[%s1 + $0x8c] sm:$0xf]
  %v67 = vld [vmem:[%s1 + $0x90] sm:$0xf]
  %v68 = vld [vmem:[%s1 + $0x94] sm:$0xf]
  %v69 = vld [vmem:[%s1 + $0x98] sm:$0xf]
  %v70 = vld [vmem:[%s1 + $0x9c] sm:$0xf]
  %v71 = vld [vmem:[%s1 + $0xa0] sm:$0xf]
  %v72 = vld [vmem:[%s1 + $0xa4] sm:$0xf]
  %v73 = vld [vmem:[%s1 + $0xa8] sm:$0xf]
  %v74 = vld [vmem:[%s1 + $0xac] sm:$0xf]
  %v75 = vld [vmem:[%s1 + $0xb0] sm:$0xf]
  %v76 = vld [vmem:[%s1 + $0xb4] sm:$0xf]
  %v77 = vld [vmem:[%s1 + $0xb8] sm:$0xf]
  %v78 = vld [vmem:[%s1 + $0xbc] sm:$0xf]
  %v79 = vld [vmem:[%s1 + $0xc0] sm:$0xf]
  %v80 = vld [vmem:[%s1 + $0xc4] sm:$0xf]
  %v81 = vld [vmem:[%s1 + $0xc8] sm:$0xf]
  %v82 = vld [vmem:[%s1 + $0xcc] sm:$0xf]
  %v83 = vld [vmem:[%s1 + $0xd0] sm:$0xf]
  %v84 = vld [vmem:[%s1 + $0xd4] sm:$0xf]
  %v85 = vld [vmem:[%s1 + $0xd8] sm:$0xf]
  %v86 = vld [vmem:[%s1 + $0xdc] sm:$0xf]
  %v87 = vld [vmem:[%s1 + $0xe0] sm:$0xf]
  %v88 = vld [vmem:[%s1 + $0xe4] sm:$0xf]
  %v89 = vld [vmem:[%s1 + $0xe8] sm:$0xf]
  %v90 = vld [vmem:[%s1 + $0xec] sm:$0xf]
  %v91 = vld [vmem:[%s1 + $0xf0] sm:$0xf]
  %v92 = vld [vmem:[%s1 + $0xf4] sm:$0xf]
  %v93 = vld [vmem:[%s1 + $0xf8] sm:$0xf]
  %v94 = vld [vmem:[%s1 + $0xfc] sm:$0xf]
  %v95 = vld [vmem:[%s1 + $0x100] sm:$0xf]
  %v96 = vld [vmem:[%s1 + $0x104] sm:$0xf]
  %v97 = vld [vmem:[%s1 + $0x108] sm:$0xf]
  %v98 = vld [vmem:[%s1 + $0x10c] sm:$0xf]
  %v99 = vld [vmem:[%s1 + $0x110] sm:$0xf]
  %v100 = vld [vmem:[%s1 + $0x114] sm:$0xf]
  %v101 = vld [vmem:[%s1 + $0x118] sm:$0xf]
  %v102 = vld [vmem:[%s1 + $0x11c] sm:$0xf]
  %v103 = vld [vmem:[%s1 + $0x120] sm:$0xf]
  %v104 = vld [vmem:[%s1 + $0x124] sm:$0xf]
  %v105 = vld [vmem:[%s1 + $0x128] sm:$0xf]
  %v106 = vld [vmem:[%s1 + $0x12c] sm:$0xf]
  %v107 = vld [vmem:[%s1 + $0x130] sm:$0xf]
  %v108 = vld [vmem:[%s1 + $0x134] sm:$0xf]
  %v109 = vld [vmem:[%s1 + $0x138] sm:$0xf]
  %v110 = vld [vmem:[%s1 + $0x13c] sm:$0xf]
  %v117 = vunpack.c.l.b16 %v25
  %v118 = vunpack.c.h.b16 %v25
  %v119 = vunpack.c.l.b16 %v26
  %v120 = vunpack.c.h.b16 %v26
  %v121 = vunpack.c.l.b16 %v27
  %v122 = vunpack.c.l.b16 %v28
  %v123 = vunpack.c.h.b16 %v28
  %v124 = vunpack.c.l.b16 %v29
  %v125 = vunpack.c.h.b16 %v29
  %v126 = vunpack.c.l.b16 %v30
  %v127 = vpack.c.b16 %v122, %v117
  %v128 = vpack.c.b16 %v123, %v118
  %v129 = vpack.c.b16 %v124, %v119
  %v130 = vpack.c.b16 %v125, %v120
  %v131 = vpack.c.b16 %v126, %v121
  %v217 = vunpack.c.l.b16 %v31
  %v218 = vunpack.c.l.b16 %v32
  %v219 = vunpack.c.l.b16 %v33
  %v220 = vunpack.c.l.b16 %v34
  %v221 = vunpack.c.l.b16 %v35
  %v222 = vunpack.c.l.b16 %v36
  %v223 = vunpack.c.l.b16 %v37
  %v224 = vunpack.c.l.b16 %v38
  %v225 = vunpack.c.l.b16 %v39
  %v226 = vunpack.c.l.b16 %v40
  %v227 = vunpack.c.l.b16 %v41
  %v228 = vunpack.c.l.b16 %v42
  %v229 = vunpack.c.l.b16 %v43
  %v230 = vunpack.c.l.b16 %v44
  %v231 = vunpack.c.l.b16 %v45
  %v232 = vunpack.c.l.b16 %v46
  %v233 = vunpack.c.l.b16 %v47
  %v234 = vunpack.c.l.b16 %v48
  %v235 = vunpack.c.l.b16 %v49
  %v236 = vunpack.c.l.b16 %v50
  %v237 = vunpack.c.l.b16 %v51
  %v238 = vunpack.c.l.b16 %v52
  %v239 = vunpack.c.l.b16 %v53
  %v240 = vunpack.c.l.b16 %v54
  %v241 = vunpack.c.l.b16 %v55
  %v242 = vunpack.c.l.b16 %v56
  %v243 = vunpack.c.l.b16 %v57
  %v244 = vunpack.c.l.b16 %v58
  %v245 = vunpack.c.l.b16 %v59
  %v246 = vunpack.c.l.b16 %v60
  %v247 = vunpack.c.l.b16 %v61
  %v248 = vunpack.c.l.b16 %v62
  %v249 = vunpack.c.l.b16 %v63
  %v250 = vunpack.c.l.b16 %v64
  %v251 = vunpack.c.l.b16 %v65
  %v252 = vunpack.c.l.b16 %v66
  %v253 = vunpack.c.l.b16 %v67
  %v254 = vunpack.c.l.b16 %v68
  %v255 = vunpack.c.l.b16 %v69
  %v256 = vunpack.c.l.b16 %v70
  %v257 = vunpack.c.l.b16 %v71
  %v258 = vunpack.c.l.b16 %v72
  %v259 = vunpack.c.l.b16 %v73
  %v260 = vunpack.c.l.b16 %v74
  %v261 = vunpack.c.l.b16 %v75
  %v262 = vunpack.c.l.b16 %v76
  %v263 = vunpack.c.l.b16 %v77
  %v264 = vunpack.c.l.b16 %v78
  %v265 = vunpack.c.l.b16 %v79
  %v266 = vunpack.c.l.b16 %v80
  %v267 = vunpack.c.l.b16 %v81
  %v268 = vunpack.c.l.b16 %v82
  %v269 = vunpack.c.l.b16 %v83
  %v270 = vunpack.c.l.b16 %v84
  %v271 = vunpack.c.l.b16 %v85
  %v272 = vunpack.c.l.b16 %v86
  %v273 = vunpack.c.l.b16 %v87
  %v274 = vunpack.c.l.b16 %v88
  %v275 = vunpack.c.l.b16 %v89
  %v276 = vunpack.c.l.b16 %v90
  %v277 = vunpack.c.l.b16 %v91
  %v278 = vunpack.c.l.b16 %v92
  %v279 = vunpack.c.l.b16 %v93
  %v280 = vunpack.c.l.b16 %v94
  %v281 = vunpack.c.l.b16 %v95
  %v282 = vunpack.c.l.b16 %v96
  %v283 = vunpack.c.l.b16 %v97
  %v284 = vunpack.c.l.b16 %v98
  %v285 = vunpack.c.l.b16 %v99
  %v286 = vunpack.c.l.b16 %v100
  %v287 = vunpack.c.l.b16 %v101
  %v288 = vunpack.c.l.b16 %v102
  %v289 = vunpack.c.l.b16 %v103
  %v290 = vunpack.c.l.b16 %v104
  %v291 = vunpack.c.l.b16 %v105
  %v292 = vunpack.c.l.b16 %v106
  %v293 = vunpack.c.l.b16 %v107
  %v294 = vunpack.c.l.b16 %v108
  %v295 = vunpack.c.l.b16 %v109
  %v296 = vunpack.c.l.b16 %v110
  %v297 = vpack.c.b16 %v218, %v217
  %v298 = vpack.c.b16 %v220, %v219
  %v299 = vpack.c.b16 %v222, %v221
  %v300 = vpack.c.b16 %v224, %v223
  %v301 = vpack.c.b16 %v226, %v225
  %v302 = vpack.c.b16 %v228, %v227
  %v303 = vpack.c.b16 %v230, %v229
  %v304 = vpack.c.b16 %v232, %v231
  %v305 = vpack.c.b16 %v234, %v233
  %v306 = vpack.c.b16 %v236, %v235
  %v307 = vpack.c.b16 %v238, %v237
  %v308 = vpack.c.b16 %v240, %v239
  %v309 = vpack.c.b16 %v242, %v241
  %v310 = vpack.c.b16 %v244, %v243
  %v311 = vpack.c.b16 %v246, %v245
  %v312 = vpack.c.b16 %v248, %v247
  %v313 = vpack.c.b16 %v250, %v249
  %v314 = vpack.c.b16 %v252, %v251
  %v315 = vpack.c.b16 %v254, %v253
  %v316 = vpack.c.b16 %v256, %v255
  %v317 = vpack.c.b16 %v258, %v257
  %v318 = vpack.c.b16 %v260, %v259
  %v319 = vpack.c.b16 %v262, %v261
  %v320 = vpack.c.b16 %v264, %v263
  %v321 = vpack.c.b16 %v266, %v265
  %v322 = vpack.c.b16 %v268, %v267
  %v323 = vpack.c.b16 %v270, %v269
  %v324 = vpack.c.b16 %v272, %v271
  %v325 = vpack.c.b16 %v274, %v273
  %v326 = vpack.c.b16 %v276, %v275
  %v327 = vpack.c.b16 %v278, %v277
  %v328 = vpack.c.b16 %v280, %v279
  %v329 = vpack.c.b16 %v282, %v281
  %v330 = vpack.c.b16 %v284, %v283
  %v331 = vpack.c.b16 %v286, %v285
  %v332 = vpack.c.b16 %v288, %v287
  %v333 = vpack.c.b16 %v290, %v289
  %v334 = vpack.c.b16 %v292, %v291
  %v335 = vpack.c.b16 %v294, %v293
  %v336 = vpack.c.b16 %v296, %v295
  %377 = vmatpush.bf16.msra.mxu0 %v304
  %378 = vmatpush.bf16.msra.mxu0 %v303
  %379 = vmatpush.bf16.msra.mxu0 %v302
  %380 = vmatpush.bf16.msra.mxu0 %v301
  %381 = vmatpush.bf16.msra.mxu0 %v300
  %382 = vmatpush.bf16.msra.mxu0 %v299
  %383 = vmatpush.bf16.msra.mxu0 %v298
  %384 = vmatpush.bf16.msra.mxu0 %v297
  %385 = vmatmul.bf16.gmra.mxu0 %v127
  %v386 = vpop.f32.mrf.mxu0
  %v387 = vadd.f32 0.0, %v386
  %v388 = vpop.f32.mrf.mxu0
  %v389 = vadd.f32 0.0, %v388
  %390 = vdwg.mxu0
  %391 = vmatpush.bf16.msra.mxu0 %v312
  %392 = vmatpush.bf16.msra.mxu0 %v311
  %393 = vmatpush.bf16.msra.mxu0 %v310
  %394 = vmatpush.bf16.msra.mxu0 %v309
  %395 = vmatpush.bf16.msra.mxu0 %v308
  %396 = vmatpush.bf16.msra.mxu0 %v307
  %397 = vmatpush.bf16.msra.mxu0 %v306
  %398 = vmatpush.bf16.msra.mxu0 %v305
  %399 = vmatmul.bf16.gmra.mxu0 %v128
  %v400 = vpop.f32.mrf.mxu0
  %v401 = vadd.f32 %v387, %v400
  %v402 = vpop.f32.mrf.mxu0
  %v403 = vadd.f32 %v389, %v402
  %404 = vdwg.mxu0
  %405 = vmatpush.bf16.msra.mxu0 %v320
  %406 = vmatpush.bf16.msra.mxu0 %v319
  %407 = vmatpush.bf16.msra.mxu0 %v318
  %408 = vmatpush.bf16.msra.mxu0 %v317
  %409 = vmatpush.bf16.msra.mxu0 %v316
  %410 = vmatpush.bf16.msra.mxu0 %v315
  %411 = vmatpush.bf16.msra.mxu0 %v314
  %412 = vmatpush.bf16.msra.mxu0 %v313
  %413 = vmatmul.bf16.gmra.mxu0 %v129
  %v414 = vpop.f32.mrf.mxu0
  %v415 = vadd.f32 %v401, %v414
  %v416 = vpop.f32.mrf.mxu0
  %v417 = vadd.f32 %v403, %v416
  %418 = vdwg.mxu0
  %419 = vmatpush.bf16.msra.mxu0 %v328
  %420 = vmatpush.bf16.msra.mxu0 %v327
  %421 = vmatpush.bf16.msra.mxu0 %v326
  %422 = vmatpush.bf16.msra.mxu0 %v325
  %423 = vmatpush.bf16.msra.mxu0 %v324
  %424 = vmatpush.bf16.msra.mxu0 %v323
  %425 = vmatpush.bf16.msra.mxu0 %v322
  %426 = vmatpush.bf16.msra.mxu0 %v321
  %427 = vmatmul.bf16.gmra.mxu0 %v130
  %v428 = vpop.f32.mrf.mxu0
  %v429 = vadd.f32 %v415, %v428
  %v430 = vpop.f32.mrf.mxu0
  %v431 = vadd.f32 %v417, %v430
  %432 = vdwg.mxu0
  %433 = vmatpush.bf16.msra.mxu0 %v336
  %434 = vmatpush.bf16.msra.mxu0 %v335
  %435 = vmatpush.bf16.msra.mxu0 %v334
  %436 = vmatpush.bf16.msra.mxu0 %v333
  %437 = vmatpush.bf16.msra.mxu0 %v332
  %438 = vmatpush.bf16.msra.mxu0 %v331
  %439 = vmatpush.bf16.msra.mxu0 %v330
  %440 = vmatpush.bf16.msra.mxu0 %v329
  %441 = vmatmul.bf16.gmra.mxu0 %v131
  %v442 = vpop.f32.mrf.mxu0
  %v443 = vadd.f32 %v429, %v442
  %v444 = vpop.f32.mrf.mxu0
  %v445 = vadd.f32 %v431, %v444
  %446 = vdwg.mxu0
  %v447 = vadd.f32 %v23, %v443
  %v448 = vadd.f32 %v24, %v445
  %449 = vst [vmem:[#allocation2] sm:$0xff] %v447
  %450 = vst [vmem:[#allocation2 + $0x8] sm:$0xff] %v448
  // Predicated region
  $region22: #{frame_encoder_forward.23} parent=0 // pred_check
    %p451 = pneg %p17
  $region23: #{frame_encoder_forward.23} parent=0 // pred_check_branch
    %453 = sbr.rel (%p451) target = $region25
  $region24: #{frame_encoder_forward.23} parent=0 // pred_region
    %v454 = vld [vmem:[#allocation2] sm:$0xff]
    %v455 = vld [vmem:[#allocation2 + $0x8] sm:$0xff]
    %v456 = vld [vmem:[%s2] sm:$0x1]
    %v458 = vperm.slane %v456, 0
    %v460 = vmul.f32 %v454, %v458
    %v461 = vmul.f32 %v455, %v458
    %v462 = vld [vmem:[%s3] sm:$0x1]
    %v464 = vperm.slane %v462, 0
    %v466 = vadd.f32 %v460, %v464
    %v467 = vadd.f32 %v461, %v464
    %v468 = vmax.f32 %v466, 0.0
    %v469 = vmax.f32 %v467, 0.0
    %v470 = vpack.c.bf16 %v468, %v468
    %v471 = vpack.c.bf16 %v469, %v469
    %472 = vst [vmem:[%s4] sm:$0xf] %v470
    %473 = vst [vmem:[%s4 + $0x4] sm:$0xf] %v471
  $region25: #{frame_encoder_forward.23} parent=0 // pred_fallthru
    _
  // Predicated region
  $region26: #{frame_encoder_forward.23} parent=0 // pred_check
    _
  $region27: #{frame_encoder_forward.23} parent=0 // pred_check_branch
    %475 = sbr.rel (0) target = $region29
  $region28: #{frame_encoder_forward.23} parent=0 // pred_region
    _
  $region29: #{frame_encoder_forward.23} parent=0 // pred_fallthru
    _
  // Predicated region
  $region30: #{frame_encoder_forward.23} parent=0 // pred_check
    _
  $region31: #{frame_encoder_forward.23} parent=0 // pred_check_branch
    %477 = sbr.rel (0) target = $region33
  $region32: #{frame_encoder_forward.23} parent=0 // pred_region
    _
  $region33: #{frame_encoder_forward.23} parent=0 // pred_fallthru
    _

// kernel: frame_encoder_forward.24
$region0: #{frame_encoder_forward.24}
  #allocation0 [shape = 'u32[]', space=smem, size = 0x4, offset = 0x4, fixed_abs, tag = 'smem constant byte address 0x4 - core index']
  #allocation1 [shape = 'u32[72,128]{1,0:T(1,128)}', space=vmem, size = 0x9000, scoped, tag = 'internal scratch']
  #allocation2 [shape = 'f32[16,128]{1,0:T(8,128)}', space=vmem, size = 0x2000, scoped, tag = 'scratch operand']
  %s0 = inlined_call_operand.vmem [shape: bf16[16,1152], index: 0, kind: input, shape index: {}]
  %s1 = inlined_call_operand.vmem [shape: bf16[1152,128], index: 1, kind: input, shape index: {}]
  %s2 = inlined_call_operand.vmem [shape: f32[1,128], index: 2, kind: input, shape index: {}]
  %s3 = inlined_call_operand.vmem [shape: f32[1,128], index: 3, kind: input, shape index: {}]
  %s4 = inlined_call_operand.vmem [shape: bf16[16,128], index: 4, kind: output, shape index: {}]
  %s5 = sld [smem:[#allocation0]]
  $region83: #{frame_encoder_forward.24} parent=0
    _
  %s7 = ssub.s32 1, %s5
  %s8 = scalar_select 0, %s7, %s5
  $region1: #{frame_encoder_forward.24} parent=0
    #allocation3 [shape = 'u8[24576]{0}', space=vmem, size = 0x6000, scoped, tag = 'input window, operand 0']
    loop: start=0, step=1, limit=5
    $region2: #{frame_encoder_forward.24} parent=1 // loop_pre_header
      _
    $region3: #{frame_encoder_forward.24} parent=1 // loop_header
      %s10 = sphi 0, %s14
      %p11 = scmp.ge.s32.totalorder %s10, 5
      %s17 = sphi 0, %s36
      %s18 = sphi 0, %s32
      %s19 = sphi 0, %s28
      %s20 = sphi 0, %s17
      %s21 = sphi 0, %s18
      %s22 = sphi 0, %s19
      %s23 = sphi 0, %s20
      %s24 = sphi 0, %s21
      %s25 = sphi 0, %s22
      %s41 = sphi 0, %s43
      %s44 = sphi 0, %s41
      %s45 = sphi 0, %s44
      %s61 = sphi 0, %s45
      %s69 = sphi 0, %s71
      %s72 = sphi 0, %s69
      %s73 = sphi 0, %s72
      %s89 = sphi 0, %s73
      %s95 = sphi 0, %s97
      %s98 = sphi 0, %s95
      %s99 = sphi 0, %s98
      %s115 = sphi 0, %s99
      %s121 = sphi 0, %s123
      %s124 = sphi 0, %s121
      %s125 = sphi 0, %s124
      %s141 = sphi 0, %s125
      %s149 = sphi 0, %s151
      %s152 = sphi 0, %s149
      %s153 = sphi 0, %s152
      %s169 = sphi 0, %s153
    $region4: #{frame_encoder_forward.24} parent=1 // loop_header_branch
      %13 = sbr.rel (%p11) target = $region8
    $region5: #{frame_encoder_forward.24} parent=1 // loop_body
      %s15 = ssub.s32 %s10, 1
      %s16 = ssub.s32 %s10, 2
      %s26 = sadd.s32 1, %s19
      %p27 = scmp.ge.s32.totalorder %s26, 3
      %s28 = scalar_select %p27, 0, %s26
      %s29 = sadd.s32 1, %s18
      %s30 = scalar_select %p27, %s29, %s18
      %p31 = scmp.ge.s32.totalorder %s30, 1
      %s32 = scalar_select %p31, 0, %s30
      %s33 = sadd.s32 1, %s17
      %s34 = scalar_select %p31, %s33, %s17
      %p35 = scmp.ge.s32.totalorder %s34, 1
      %s36 = scalar_select %p35, 0, %s34
      %s37 = ssub.s32 %s17, %s36
      %s38 = ssub.s32 %s19, %s28
      %s39 = sor.u32 %s37, %s38
      %p40 = scmp.eq.s32.totalorder %s39, 0
      %s42 = sadd.s32 %s41, 1
      %s43 = scalar_select %p40, %s41, %s42
      %p46 = pneg %p40
      %p47 = scmp.eq.s32.totalorder %s10, 2
      %p48 = por %p46, %p47
      %p49 = scmp.ne.s32.totalorder %s41, %s44
      %p50 = scmp.eq.s32.totalorder %s10, 0
      %p51 = por %p49, %p50
      %p52 = scmp.ne.s32.totalorder %s41, %s44
      %p53 = scmp.eq.s32.totalorder %s15, 2
      %p54 = por %p52, %p53
      %p55 = scmp.ne.s32.totalorder %s44, %s45
      %p56 = scmp.eq.s32.totalorder %s15, 0
      %p57 = por %p55, %p56
      %p58 = scmp.ne.s32.totalorder %s44, %s45
      %p59 = scmp.eq.s32.totalorder %s16, 2
      %p60 = por %p58, %p59
      %p62 = scmp.ne.s32.totalorder %s45, %s61
      %p63 = scmp.eq.s32.totalorder %s16, 0
      %p64 = por %p62, %p63
      %s65 = ssub.s32 %s19, %s28
      %s66 = ssub.s32 %s18, %s32
      %s67 = sor.u32 %s65, %s66
      %p68 = scmp.eq.s32.totalorder %s67, 0
      %s70 = sadd.s32 %s69, 1
      %s71 = scalar_select %p68, %s69, %s70
      %p74 = pneg %p68
      %p75 = scmp.eq.s32.totalorder %s10, 2
      %p76 = por %p74, %p75
      %p77 = scmp.ne.s32.totalorder %s69, %s72
      %p78 = scmp.eq.s32.totalorder %s10, 0
      %p79 = por %p77, %p78
      %p80 = scmp.ne.s32.totalorder %s69, %s72
      %p81 = scmp.eq.s32.totalorder %s15, 2
      %p82 = por %p80, %p81
      %p83 = scmp.ne.s32.totalorder %s72, %s73
      %p84 = scmp.eq.s32.totalorder %s15, 0
      %p85 = por %p83, %p84
      %p86 = scmp.ne.s32.totalorder %s72, %s73
      %p87 = scmp.eq.s32.totalorder %s16, 2
      %p88 = por %p86, %p87
      %p90 = scmp.ne.s32.totalorder %s73, %s89
      %p91 = scmp.eq.s32.totalorder %s16, 0
      %p92 = por %p90, %p91
      %s93 = ssub.s32 %s18, %s32
      %p94 = scmp.eq.s32.totalorder %s93, 0
      %s96 = sadd.s32 %s95, 1
      %s97 = scalar_select %p94, %s95, %s96
      %p100 = pneg %p94
      %p101 = scmp.eq.s32.totalorder %s10, 2
      %p102 = por %p100, %p101
      %p103 = scmp.ne.s32.totalorder %s95, %s98
      %p104 = scmp.eq.s32.totalorder %s10, 0
      %p105 = por %p103, %p104
      %p106 = scmp.ne.s32.totalorder %s95, %s98
      %p107 = scmp.eq.s32.totalorder %s15, 2
      %p108 = por %p106, %p107
      %p109 = scmp.ne.s32.totalorder %s98, %s99
      %p110 = scmp.eq.s32.totalorder %s15, 0
      %p111 = por %p109, %p110
      %p112 = scmp.ne.s32.totalorder %s98, %s99
      %p113 = scmp.eq.s32.totalorder %s16, 2
      %p114 = por %p112, %p113
      %p116 = scmp.ne.s32.totalorder %s99, %s115
      %p117 = scmp.eq.s32.totalorder %s16, 0
      %p118 = por %p116, %p117
      %s119 = ssub.s32 %s18, %s32
      %p120 = scmp.eq.s32.totalorder %s119, 0
      %s122 = sadd.s32 %s121, 1
      %s123 = scalar_select %p120, %s121, %s122
      %p126 = pneg %p120
      %p127 = scmp.eq.s32.totalorder %s10, 2
      %p128 = por %p126, %p127
      %p129 = scmp.ne.s32.totalorder %s121, %s124
      %p130 = scmp.eq.s32.totalorder %s10, 0
      %p131 = por %p129, %p130
      %p132 = scmp.ne.s32.totalorder %s121, %s124
      %p133 = scmp.eq.s32.totalorder %s15, 2
      %p134 = por %p132, %p133
      %p135 = scmp.ne.s32.totalorder %s124, %s125
      %p136 = scmp.eq.s32.totalorder %s15, 0
      %p137 = por %p135, %p136
      %p138 = scmp.ne.s32.totalorder %s124, %s125
      %p139 = scmp.eq.s32.totalorder %s16, 2
      %p140 = por %p138, %p139
      %p142 = scmp.ne.s32.totalorder %s125, %s141
      %p143 = scmp.eq.s32.totalorder %s16, 0
      %p144 = por %p142, %p143
      %s145 = ssub.s32 %s17, %s36
      %s146 = ssub.s32 %s18, %s32
      %s147 = sor.u32 %s145, %s146
      %p148 = scmp.eq.s32.totalorder %s147, 0
      %s150 = sadd.s32 %s149, 1
      %s151 = scalar_select %p148, %s149, %s150
      %p154 = pneg %p148
      %p155 = scmp.eq.s32.totalorder %s10, 2
      %p156 = por %p154, %p155
      %p157 = scmp.ne.s32.totalorder %s149, %s152
      %p158 = scmp.eq.s32.totalorder %s10, 0
      %p159 = por %p157, %p158
      %p160 = scmp.ne.s32.totalorder %s149, %s152
      %p161 = scmp.eq.s32.totalorder %s15, 2
      %p162 = por %p160, %p161
      %p163 = scmp.ne.s32.totalorder %s152, %s153
      %p164 = scmp.eq.s32.totalorder %s15, 0
      %p165 = por %p163, %p164
      %p166 = scmp.ne.s32.totalorder %s152, %s153
      %p167 = scmp.eq.s32.totalorder %s16, 2
      %p168 = por %p166, %p167
      %p170 = scmp.ne.s32.totalorder %s153, %s169
      %p171 = scmp.eq.s32.totalorder %s16, 0
      %p172 = por %p170, %p171
      %p173 = scmp.le.s32.totalorder 1, %s10
      %p174 = scmp.lt.s32.totalorder %s10, 4
      %p175 = pnand %p173, %p174
      %p176 = pneg %p175
      // Predicated region
      $region9: #{frame_encoder_forward.24} parent=5 // pred_check
        _
      $region10: #{frame_encoder_forward.24} parent=5 // pred_check_branch
        %178 = sbr.rel (%p175) target = $region12
      $region11: #{frame_encoder_forward.24} parent=5 // pred_region
        %s179 = ssub.s32 %s10, 1
        // Predicated region
        $region13: #{frame_encoder_forward.24} parent=11 // pred_check
          %p180 = pneg %p111
        $region14: #{frame_encoder_forward.24} parent=11 // pred_check_branch
          %182 = sbr.rel (%p180) target = $region16
        $region15: #{frame_encoder_forward.24} parent=11 // pred_region
          %p183 = scmp.lt.s32.totalorder %s21, 0
          %s184 = scalar_select %p183, %s21, 0
          %s185 = scalar_lea.vmem %s2, %s184
        $region16: #{frame_encoder_forward.24} parent=11 // pred_fallthru
          _
        // Predicated region
        $region17: #{frame_encoder_forward.24} parent=11 // pred_check
          %p186 = pneg %p137
        $region18: #{frame_encoder_forward.24} parent=11 // pred_check_branch
          %188 = sbr.rel (%p186) target = $region20
        $region19: #{frame_encoder_forward.24} parent=11 // pred_region
          %p189 = scmp.lt.s32.totalorder %s21, 0
          %s190 = scalar_select %p189, %s21, 0
          %s191 = scalar_lea.vmem %s3, %s190
        $region20: #{frame_encoder_forward.24} parent=11 // pred_fallthru
          _
      $region12: #{frame_encoder_forward.24} parent=5 // pred_fallthru
        _
      %p192 = scmp.lt.s32.totalorder %s10, 3
      // Predicated region
      $region21: #{frame_encoder_forward.24} parent=5 // pred_check
        %p193 = pneg %p192
      $region22: #{frame_encoder_forward.24} parent=5 // pred_check_branch
        %195 = sbr.rel (%p193) target = $region24
      $region23: #{frame_encoder_forward.24} parent=5 // pred_region
        // Predicated region
        $region25: #{frame_encoder_forward.24} parent=23 // pred_check
          %p196 = pneg %p51
        $region26: #{frame_encoder_forward.24} parent=23 // pred_check_branch
          %198 = sbr.rel (%p196) target = $region28
        $region27: #{frame_encoder_forward.24} parent=23 // pred_region
          %s199 = sand.u32 %s41, 1
          %s200 = sand.u32 %s41, 1
          %s201 = smul.addr %s200, 24
          %s202 = scalar_lea.vmem [#allocation3], %s201
          %s203 = smul.u32 2, %s17
          %s204 = smul.u32 3, %s19
          %s205 = smul.addr %s203, 9
          %s206 = sadd.s32 %s204, %s205
          %s207 = smul.addr %s206, 4
          %s208 = scalar_lea.vmem %s0, %s207
          // Predicated region
          $region29: #{frame_encoder_forward.24} parent=27 // pred_check
            _
          $region30: #{frame_encoder_forward.24} parent=27 // pred_check_branch
            %210 = sbr.rel (0) target = $region32
          $region31: #{frame_encoder_forward.24} parent=27 // pred_region
            // Predicated region
            $region33: #{frame_encoder_forward.24} parent=31 // pred_check
              _
            $region34: #{frame_encoder_forward.24} parent=31 // pred_check_branch
              %212 = sbr.rel (0) target = $region36
            $region35: #{frame_encoder_forward.24} parent=31 // pred_region
              %s213 = scalar_lea.vmem %s208, 8
              %s214 = scalar_lea.vmem %s202, 8 [#allocation3]
              loop: start=0, step=1, limit=1
              $region37: #{frame_encoder_forward.24} parent=35 // loop_pre_header
                _
              $region38: #{frame_encoder_forward.24} parent=35 // loop_header
                %s216 = sphi 0, %s220
                %p217 = scmp.ge.s32.totalorder %s216, 1
                %s221 = sphi %s208, %s208
                %s222 = sphi %s202, %s202
              $region39: #{frame_encoder_forward.24} parent=35 // loop_header_branch
                %219 = sbr.rel (%p217) target = $region43
              $region40: #{frame_encoder_forward.24} parent=35 // loop_body
                %v223 = vld [vmem:[%s221] sm:$0xff]
                %224 = vst [vmem:[%s222] sm:$0xff] %v223
                %v225 = vld [vmem:[%s221 + $0x24] sm:$0xff]
                %226 = vst [vmem:[%s222 + $0xc] sm:$0xff] %v225
              $region41: #{frame_encoder_forward.24} parent=35 // loop_footer
                %s220 = sadd.s32 1, %s216
              $region42: #{frame_encoder_forward.24} parent=35 // loop_footer_branch
                %215 = sbr.rel target = $region38
              $region43: #{frame_encoder_forward.24} parent=35 // loop_exit
                _
              %s228 = ssub.s32 16, 1
              loop: start=0, step=1, limit=1
              $region44: #{frame_encoder_forward.24} parent=35 // loop_pre_header
                _
              $region45: #{frame_encoder_forward.24} parent=35 // loop_header
                %s230 = sphi 0, %s234
                %p231 = scmp.ge.s32.totalorder %s230, 1
                %s235 = sphi %s213, %s213
                %s236 = sphi %s214, %s214
              $region46: #{frame_encoder_forward.24} parent=35 // loop_header_branch
                %233 = sbr.rel (%p231) target = $region50
              $region47: #{frame_encoder_forward.24} parent=35 // loop_body
                %v237 = vld [vmem:[%s235] sm:%s228]
                %238 = vst [vmem:[%s236] sm:%s228] %v237
                %v239 = vld [vmem:[%s235 + $0x24] sm:%s228]
                %240 = vst [vmem:[%s236 + $0xc] sm:%s228] %v239
              $region48: #{frame_encoder_forward.24} parent=35 // loop_footer
                %s234 = sadd.s32 1, %s230
              $region49: #{frame_encoder_forward.24} parent=35 // loop_footer_branch
                %229 = sbr.rel target = $region45
              $region50: #{frame_encoder_forward.24} parent=35 // loop_exit
                _
            $region36: #{frame_encoder_forward.24} parent=31 // pred_fallthru
              _
          $region32: #{frame_encoder_forward.24} parent=27 // pred_fallthru
            _
          %241 = vnop
        $region28: #{frame_encoder_forward.24} parent=23 // pred_fallthru
          _
        // Predicated region
        $region51: #{frame_encoder_forward.24} parent=23 // pred_check
          %p242 = pneg %p79
        $region52: #{frame_encoder_forward.24} parent=23 // pred_check_branch
          %244 = sbr.rel (%p242) target = $region54
        $region53: #{frame_encoder_forward.24} parent=23 // pred_region
          %s245 = smul.u32 48, %s19
          %p246 = scmp.lt.s32.totalorder %s245, 143
          %s247 = scalar_select %p246, %s245, 143
          %p248 = scmp.lt.s32.totalorder %s18, 0
          %s249 = scalar_select %p248, %s18, 0
          %s250 = sadd.s32 %s249, %s247
          %s251 = smul.addr %s250, 4
          %s252 = scalar_lea.vmem %s1, %s251
          %s253 = smul.u32 48, %s19
        $region54: #{frame_encoder_forward.24} parent=23 // pred_fallthru
          _
      $region24: #{frame_encoder_forward.24} parent=5 // pred_fallthru
        _
      %p254 = scmp.le.s32.totalorder 1, %s10
      %p255 = scmp.lt.s32.totalorder %s10, 4
      %p256 = pnand %p254, %p255
      %p257 = pneg %p256
      // Predicated region
      $region55: #{frame_encoder_forward.24} parent=5 // pred_check
        _
      $region56: #{frame_encoder_forward.24} parent=5 // pred_check_branch
        %259 = sbr.rel (%p256) target = $region58
      $region57: #{frame_encoder_forward.24} parent=5 // pred_region
        %s260 = ssub.s32 %s10, 1
        %s261 = sand.u32 %s44, 1
        %s262 = sand.u32 %s44, 1
        %s263 = smul.addr %s262, 24
        %s264 = scalar_lea.vmem [#allocation3], %s263
        // Predicated region
        $region59: #{frame_encoder_forward.24} parent=57 // pred_check
          %p265 = pneg %p57
        $region60: #{frame_encoder_forward.24} parent=57 // pred_check_branch
          %267 = sbr.rel (%p265) target = $region62
        $region61: #{frame_encoder_forward.24} parent=57 // pred_region
          _
        $region62: #{frame_encoder_forward.24} parent=57 // pred_fallthru
          _
        %s268 = sand.u32 %s44, 1
        %s269 = sand.u32 %s44, 1
        %s270 = smul.addr %s269, 24
        %s271 = scalar_lea.vmem [#allocation3], %s270
        %p272 = pneg %p57
        %p273 = pneg %p54
        %s274 = smul.u32 48, %s22
        %p275 = scmp.lt.s32.totalorder %s274, 143
        %s276 = scalar_select %p275, %s274, 143
        %p277 = scmp.lt.s32.totalorder %s21, 0
        %s278 = scalar_select %p277, %s21, 0
        %s279 = sadd.s32 %s278, %s276
        %s280 = smul.addr %s279, 4
        %s281 = scalar_lea.vmem %s1, %s280
        %p282 = pneg %p85
        %p283 = pneg %p82
        %p284 = scmp.lt.s32.totalorder %s21, 0
        %s285 = scalar_select %p284, %s21, 0
        %s286 = scalar_lea.vmem %s2, %s285
        %p287 = pneg %p111
        %p288 = pneg %p108
        %p289 = scmp.lt.s32.totalorder %s21, 0
        %s290 = scalar_select %p289, %s21, 0
        %s291 = scalar_lea.vmem %s3, %s290
        %p292 = pneg %p137
        %p293 = pneg %p134
        %p294 = pneg %p165
        %p295 = pneg %p162
        %s296 = smul.u32 2, %s20
        %p297 = scmp.lt.s32.totalorder %s296, 1
        %s298 = scalar_select %p297, %s296, 1
        %p299 = scmp.lt.s32.totalorder %s21, 0
        %s300 = scalar_select %p299, %s21, 0
        %s301 = sadd.s32 %s300, %s298
        %s302 = smul.addr %s301, 4
        %s303 = scalar_lea.vmem %s4, %s302
        %s304 = smul.u32 2, %s20
        %s305 = smul.u32 3, %s22
        %s306 = smul.u32 48, %s22
        %p307 = scmp.lt.s32.totalorder %s306, 143
        %s308 = scalar_select %p307, %s306, 143
        %p309 = scmp.lt.s32.totalorder %s21, 0
        %s310 = scalar_select %p309, %s21, 0
        %s311 = sadd.s32 %s310, %s308
        %s312 = smul.addr %s311, 4
        %s313 = scalar_lea.vmem %s1, %s312
        %s314 = smul.u32 48, %s22
        %p315 = scmp.lt.s32.totalorder %s21, 0
        %s316 = scalar_select %p315, %s21, 0
        %s317 = scalar_lea.vmem %s2, %s316
        %p318 = scmp.lt.s32.totalorder %s21, 0
        %s319 = scalar_select %p318, %s21, 0
        %s320 = scalar_lea.vmem %s3, %s319
        %s321 = smul.u32 2, %s20
        %p322 = scmp.lt.s32.totalorder %s321, 1
        %s323 = scalar_select %p322, %s321, 1
        %p324 = scmp.lt.s32.totalorder %s21, 0
        %s325 = scalar_select %p324, %s21, 0
        %s326 = sadd.s32 %s325, %s323
        %s327 = smul.addr %s326, 4
        %s328 = scalar_lea.vmem %s4, %s327
        %s329 = smul.u32 2, %s20
        %p330 = scmp.eq.s32.totalorder %s22, 0
        // Predicated region
        $region63: #{frame_encoder_forward.24} parent=57 // pred_check
          %p331 = pneg %p330
        $region64: #{frame_encoder_forward.24} parent=57 // pred_check_branch
          %333 = sbr.rel (%p331) target = $region66
        $region65: #{frame_encoder_forward.24} parent=57 // pred_region
          %334 = vst [vmem:[#allocation2] sm:$0xff] 0.0
          %335 = vst [vmem:[#allocation2 + $0x8] sm:$0xff] 0.0
        $region66: #{frame_encoder_forward.24} parent=57 // pred_fallthru
          _
        %v336 = vld [vmem:[#allocation2] sm:$0xff]
        %v337 = vld [vmem:[#allocation2 + $0x8] sm:$0xff]
        %v338 = vld [vmem:[%s264] sm:$0xff]
        %v339 = vld [vmem:[%s264 + $0x8] sm:$0xf]
        %v340 = vld [vmem:[%s264 + $0xc] sm:$0xff]
        %v341 = vld [vmem:[%s264 + $0x14] sm:$0xf]
        %v342 = vld [vmem:[%s313] sm:$0xf]
        %v343 = vld [vmem:[%s313 + $0x4] sm:$0xf]
        %v344 = vld [vmem:[%s313 + $0x8] sm:$0xf]
        %v345 = vld [vmem:[%s313 + $0xc] sm:$0xf]
        %v346 = vld [vmem:[%s313 + $0x10] sm:$0xf]
        %v347 = vld [vmem:[%s313 + $0x14] sm:$0xf]
        %v348 = vld [vmem:[%s313 + $0x18] sm:$0xf]
        %v349 = vld [vmem:[%s313 + $0x1c] sm:$0xf]
        %v350 = vld [vmem:[%s313 + $0x20] sm:$0xf]
        %v351 = vld [vmem:[%s313 + $0x24] sm:$0xf]
        %v352 = vld [vmem:[%s313 + $0x28] sm:$0xf]
        %v353 = vld [vmem:[%s313 + $0x2c] sm:$0xf]
        %v354 = vld [vmem:[%s313 + $0x30] sm:$0xf]
        %v355 = vld [vmem:[%s313 + $0x34] sm:$0xf]
        %v356 = vld [vmem:[%s313 + $0x38] sm:$0xf]
        %v357 = vld [vmem:[%s313 + $0x3c] sm:$0xf]
        %v358 = vld [vmem:[%s313 + $0x40] sm:$0xf]
        %v359 = vld [vmem:[%s313 + $0x44] sm:$0xf]
        %v360 = vld [vmem:[%s313 + $0x48] sm:$0xf]
        %v361 = vld [vmem:[%s313 + $0x4c] sm:$0xf]
        %v362 = vld [vmem:[%s313 + $0x50] sm:$0xf]
        %v363 = vld [vmem:[%s313 + $0x54] sm:$0xf]
        %v364 = vld [vmem:[%s313 + $0x58] sm:$0xf]
        %v365 = vld [vmem:[%s313 + $0x5c] sm:$0xf]
        %v366 = vld [vmem:[%s313 + $0x60] sm:$0xf]
        %v367 = vld [vmem:[%s313 + $0x64] sm:$0xf]
        %v368 = vld [vmem:[%s313 + $0x68] sm:$0xf]
        %v369 = vld [vmem:[%s313 + $0x6c] sm:$0xf]
        %v370 = vld [vmem:[%s313 + $0x70] sm:$0xf]
        %v371 = vld [vmem:[%s313 + $0x74] sm:$0xf]
        %v372 = vld [vmem:[%s313 + $0x78] sm:$0xf]
        %v373 = vld [vmem:[%s313 + $0x7c] sm:$0xf]
        %v374 = vld [vmem:[%s313 + $0x80] sm:$0xf]
        %v375 = vld [vmem:[%s313 + $0x84] sm:$0xf]
        %v376 = vld [vmem:[%s313 + $0x88] sm:$0xf]
        %v377 = vld [vmem:[%s313 + $0x8c] sm:$0xf]
        %v378 = vld [vmem:[%s313 + $0x90] sm:$0xf]
        %v379 = vld [vmem:[%s313 + $0x94] sm:$0xf]
        %v380 = vld [vmem:[%s313 + $0x98] sm:$0xf]
        %v381 = vld [vmem:[%s313 + $0x9c] sm:$0xf]
        %v382 = vld [vmem:[%s313 + $0xa0] sm:$0xf]
        %v383 = vld [vmem:[%s313 + $0xa4] sm:$0xf]
        %v384 = vld [vmem:[%s313 + $0xa8] sm:$0xf]
        %v385 = vld [vmem:[%s313 + $0xac] sm:$0xf]
        %v386 = vld [vmem:[%s313 + $0xb0] sm:$0xf]
        %v387 = vld [vmem:[%s313 + $0xb4] sm:$0xf]
        %v388 = vld [vmem:[%s313 + $0xb8] sm:$0xf]
        %v389 = vld [vmem:[%s313 + $0xbc] sm:$0xf]
        %v394 = vunpack.c.l.b16 %v338
        %v395 = vunpack.c.h.b16 %v338
        %v396 = vunpack.c.l.b16 %v339
        %v397 = vunpack.c.l.b16 %v340
        %v398 = vunpack.c.h.b16 %v340
        %v399 = vunpack.c.l.b16 %v341
        %v400 = vpack.c.b16 %v397, %v394
        %v401 = vpack.c.b16 %v398, %v395
        %v402 = vpack.c.b16 %v399, %v396
        %v454 = vunpack.c.l.b16 %v342
        %v455 = vunpack.c.l.b16 %v343
        %v456 = vunpack.c.l.b16 %v344
        %v457 = vunpack.c.l.b16 %v345
        %v458 = vunpack.c.l.b16 %v346
        %v459 = vunpack.c.l.b16 %v347
        %v460 = vunpack.c.l.b16 %v348
        %v461 = vunpack.c.l.b16 %v349
        %v462 = vunpack.c.l.b16 %v350
        %v463 = vunpack.c.l.b16 %v351
        %v464 = vunpack.c.l.b16 %v352
        %v465 = vunpack.c.l.b16 %v353
        %v466 = vunpack.c.l.b16 %v354
        %v467 = vunpack.c.l.b16 %v355
        %v468 = vunpack.c.l.b16 %v356
        %v469 = vunpack.c.l.b16 %v357
        %v470 = vunpack.c.l.b16 %v358
        %v471 = vunpack.c.l.b16 %v359
        %v472 = vunpack.c.l.b16 %v360
        %v473 = vunpack.c.l.b16 %v361
        %v474 = vunpack.c.l.b16 %v362
        %v475 = vunpack.c.l.b16 %v363
        %v476 = vunpack.c.l.b16 %v364
        %v477 = vunpack.c.l.b16 %v365
        %v478 = vunpack.c.l.b16 %v366
        %v479 = vunpack.c.l.b16 %v367
        %v480 = vunpack.c.l.b16 %v368
        %v481 = vunpack.c.l.b16 %v369
        %v482 = vunpack.c.l.b16 %v370
        %v483 = vunpack.c.l.b16 %v371
        %v484 = vunpack.c.l.b16 %v372
        %v485 = vunpack.c.l.b16 %v373
        %v486 = vunpack.c.l.b16 %v374
        %v487 = vunpack.c.l.b16 %v375
        %v488 = vunpack.c.l.b16 %v376
        %v489 = vunpack.c.l.b16 %v377
        %v490 = vunpack.c.l.b16 %v378
        %v491 = vunpack.c.l.b16 %v379
        %v492 = vunpack.c.l.b16 %v380
        %v493 = vunpack.c.l.b16 %v381
        %v494 = vunpack.c.l.b16 %v382
        %v495 = vunpack.c.l.b16 %v383
        %v496 = vunpack.c.l.b16 %v384
        %v497 = vunpack.c.l.b16 %v385
        %v498 = vunpack.c.l.b16 %v386
        %v499 = vunpack.c.l.b16 %v387
        %v500 = vunpack.c.l.b16 %v388
        %v501 = vunpack.c.l.b16 %v389
        %v502 = vpack.c.b16 %v455, %v454
        %v503 = vpack.c.b16 %v457, %v456
        %v504 = vpack.c.b16 %v459, %v458
        %v505 = vpack.c.b16 %v461, %v460
        %v506 = vpack.c.b16 %v463, %v462
        %v507 = vpack.c.b16 %v465, %v464
        %v508 = vpack.c.b16 %v467, %v466
        %v509 = vpack.c.b16 %v469, %v468
        %v510 = vpack.c.b16 %v471, %v470
        %v511 = vpack.c.b16 %v473, %v472
        %v512 = vpack.c.b16 %v475, %v474
        %v513 = vpack.c.b16 %v477, %v476
        %v514 = vpack.c.b16 %v479, %v478
        %v515 = vpack.c.b16 %v481, %v480
        %v516 = vpack.c.b16 %v483, %v482
        %v517 = vpack.c.b16 %v485, %v484
        %v518 = vpack.c.b16 %v487, %v486
        %v519 = vpack.c.b16 %v489, %v488
        %v520 = vpack.c.b16 %v491, %v490
        %v521 = vpack.c.b16 %v493, %v492
        %v522 = vpack.c.b16 %v495, %v494
        %v523 = vpack.c.b16 %v497, %v496
        %v524 = vpack.c.b16 %v499, %v498
        %v525 = vpack.c.b16 %v501, %v500
        %550 = vmatpush.bf16.msra.mxu0 %v509
        %551 = vmatpush.bf16.msra.mxu0 %v508
        %552 = vmatpush.bf16.msra.mxu0 %v507
        %553 = vmatpush.bf16.msra.mxu0 %v506
        %554 = vmatpush.bf16.msra.mxu0 %v505
        %555 = vmatpush.bf16.msra.mxu0 %v504
        %556 = vmatpush.bf16.msra.mxu0 %v503
        %557 = vmatpush.bf16.msra.mxu0 %v502
        %558 = vmatmul.bf16.gmra.mxu0 %v400
        %v559 = vpop.f32.mrf.mxu0
        %v560 = vadd.f32 0.0, %v559
        %v561 = vpop.f32.mrf.mxu0
        %v562 = vadd.f32 0.0, %v561
        %563 = vdwg.mxu0
        %564 = vmatpush.bf16.msra.mxu0 %v517
        %565 = vmatpush.bf16.msra.mxu0 %v516
        %566 = vmatpush.bf16.msra.mxu0 %v515
        %567 = vmatpush.bf16.msra.mxu0 %v514
        %568 = vmatpush.bf16.msra.mxu0 %v513
        %569 = vmatpush.bf16.msra.mxu0 %v512
        %570 = vmatpush.bf16.msra.mxu0 %v511
        %571 = vmatpush.bf16.msra.mxu0 %v510
        %572 = vmatmul.bf16.gmra.mxu0 %v401
        %v573 = vpop.f32.mrf.mxu0
        %v574 = vadd.f32 %v560, %v573
        %v575 = vpop.f32.mrf.mxu0
        %v576 = vadd.f32 %v562, %v575
        %577 = vdwg.mxu0
        %578 = vmatpush.bf16.msra.mxu0 %v525
        %579 = vmatpush.bf16.msra.mxu0 %v524
        %580 = vmatpush.bf16.msra.mxu0 %v523
        %581 = vmatpush.bf16.msra.mxu0 %v522
        %582 = vmatpush.bf16.msra.mxu0 %v521
        %583 = vmatpush.bf16.msra.mxu0 %v520
        %584 = vmatpush.bf16.msra.mxu0 %v519
        %585 = vmatpush.bf16.msra.mxu0 %v518
        %586 = vmatmul.bf16.gmra.mxu0 %v402
        %v587 = vpop.f32.mrf.mxu0
        %v588 = vadd.f32 %v574, %v587
        %v589 = vpop.f32.mrf.mxu0
        %v590 = vadd.f32 %v576, %v589
        %591 = vdwg.mxu0
        %v592 = vadd.f32 %v336, %v588
        %v593 = vadd.f32 %v337, %v590
        %594 = vst [vmem:[#allocation2] sm:$0xff] %v592
        %595 = vst [vmem:[#allocation2 + $0x8] sm:$0xff] %v593
        %p596 = scmp.eq.s32.totalorder %s22, 2
        // Predicated region
        $region67: #{frame_encoder_forward.24} parent=57 // pred_check
          %p597 = pneg %p596
        $region68: #{frame_encoder_forward.24} parent=57 // pred_check_branch
          %599 = sbr.rel (%p597) target = $region70
        $region69: #{frame_encoder_forward.24} parent=57 // pred_region
          %v600 = vld [vmem:[#allocation2] sm:$0xff]
          %v601 = vld [vmem:[#allocation2 + $0x8] sm:$0xff]
          %v602 = vld [vmem:[%s317] sm:$0x1]
          %v604 = vperm.slane %v602, 0
          %v606 = vmul.f32 %v600, %v604
          %v607 = vmul.f32 %v601, %v604
          %v608 = vld [vmem:[%s320] sm:$0x1]
          %v610 = vperm.slane %v608, 0
          %v612 = vadd.f32 %v606, %v610
          %v613 = vadd.f32 %v607, %v610
          %v614 = vpack.c.bf16 %v612, %v612
          %v615 = vpack.c.bf16 %v613, %v613
          %616 = vst [vmem:[%s328] sm:$0xf] %v614
          %617 = vst [vmem:[%s328 + $0x4] sm:$0xf] %v615
        $region70: #{frame_encoder_forward.24} parent=57 // pred_fallthru
          _
        %s618 = smul.u32 2, %s20
        %p619 = scmp.lt.s32.totalorder %s618, 1
        %s620 = scalar_select %p619, %s618, 1
        %p621 = scmp.lt.s32.totalorder %s21, 0
        %s622 = scalar_select %p621, %s21, 0
        %s623 = sadd.s32 %s622, %s620
        %s624 = smul.addr %s623, 4
        %s625 = scalar_lea.vmem %s4, %s624
        // Predicated region
        $region71: #{frame_encoder_forward.24} parent=57 // pred_check
          %p626 = pneg %p162
        $region72: #{frame_encoder_forward.24} parent=57 // pred_check_branch
          %628 = sbr.rel (%p626) target = $region74
        $region73: #{frame_encoder_forward.24} parent=57 // pred_region
          %s629 = smul.u32 2, %s20
        $region74: #{frame_encoder_forward.24} parent=57 // pred_fallthru
          _
        // Predicated region
        $region75: #{frame_encoder_forward.24} parent=57 // pred_check
          %p630 = pneg %p162
        $region76: #{frame_encoder_forward.24} parent=57 // pred_check_branch
          %632 = sbr.rel (%p630) target = $region78
        $region77: #{frame_encoder_forward.24} parent=57 // pred_region
          %s633 = smul.u32 2, %s20
          %p634 = scmp.lt.s32.totalorder %s633, 1
          %s635 = scalar_select %p634, %s633, 1
          %p636 = scmp.lt.s32.totalorder %s21, 0
          %s637 = scalar_select %p636, %s21, 0
          %s638 = sadd.s32 %s637, %s635
          %s639 = smul.addr %s638, 4
          %s640 = scalar_lea.vmem %s4, %s639
        $region78: #{frame_encoder_forward.24} parent=57 // pred_fallthru
          _
      $region58: #{frame_encoder_forward.24} parent=5 // pred_fallthru
        _
      %p641 = scmp.le.s32.totalorder 2, %s10
      // Predicated region
      $region79: #{frame_encoder_forward.24} parent=5 // pred_check
        %p642 = pneg %p641
      $region80: #{frame_encoder_forward.24} parent=5 // pred_check_branch
        %644 = sbr.rel (%p642) target = $region82
      $region81: #{frame_encoder_forward.24} parent=5 // pred_region
        %s645 = ssub.s32 %s10, 2
      $region82: #{frame_encoder_forward.24} parent=5 // pred_fallthru
        _
    $region6: #{frame_encoder_forward.24} parent=1 // loop_footer
      %s14 = sadd.s32 1, %s10
    $region7: #{frame_encoder_forward.24} parent=1 // loop_footer_branch
      %9 = sbr.rel target = $region3
    $region8: #{frame_encoder_forward.24} parent=1 // loop_exit
      _

// kernel: frame_encoder_forward.25
$region0: #{frame_encoder_forward.25}
  #allocation0 [shape = 'u32[]', space=smem, size = 0x4, offset = 0x4, fixed_abs, tag = 'smem constant byte address 0x4 - core index']
  #allocation1 [shape = 'u32[72,128]{1,0:T(1,128)}', space=vmem, size = 0x9000, scoped, tag = 'internal scratch']
  %s0 = inlined_call_operand.vmem [shape: bf16[2,4,128], index: 0, kind: input, shape index: {}]
  %s1 = inlined_call_operand.vmem [shape: f32[128,128], index: 1, kind: input, shape index: {}]
  %s2 = inlined_call_operand.vmem [shape: f32[128,128], index: 2, kind: input, shape index: {}]
  %s3 = inlined_call_operand.vmem [shape: bf16[2,4,128], index: 3, kind: output, shape index: {0}]
  %s4 = inlined_call_operand.vmem [shape: bf16[2,4,2], index: 4, kind: output, shape index: {1}]
  %5 = xla_tuple %s3, %s4
  %s6 = sld [smem:[#allocation0]]
  $region53: #{frame_encoder_forward.25} parent=0
    _
  %s8 = ssub.s32 1, %s6
  %s9 = scalar_select 0, %s8, %s6
  loop: start=0, step=1, limit=4
  $region2: #{frame_encoder_forward.25} parent=0 // loop_pre_header
    _
  $region3: #{frame_encoder_forward.25} parent=0 // loop_header
    %s11 = sphi 0, %s15
    %p12 = scmp.ge.s32.totalorder %s11, 4
    %s21 = sphi 0, %s23
    %s24 = sphi 0, %s21
    %s25 = sphi 0, %s24
    %s41 = sphi 0, %s25
    %s45 = sphi 0, %s45
    %s47 = sphi 0, %s45
    %s48 = sphi 0, %s47
    %s62 = sphi 0, %s48
    %s66 = sphi 0, %s66
    %s68 = sphi 0, %s66
    %s69 = sphi 0, %s68
    %s83 = sphi 0, %s69
    %s89 = sphi 0, %s91
    %s92 = sphi 0, %s89
    %s93 = sphi 0, %s92
    %s109 = sphi 0, %s93
    %s115 = sphi 0, %s117
    %s118 = sphi 0, %s115
    %s119 = sphi 0, %s118
    %s135 = sphi 0, %s119
  $region4: #{frame_encoder_forward.25} parent=0 // loop_header_branch
    %14 = sbr.rel (%p12) target = $region8
  $region5: #{frame_encoder_forward.25} parent=0 // loop_body
    %s16 = ssub.s32 %s11, 1
    %s17 = ssub.s32 %s11, 2
    %s18 = sadd.s32 %s11, 1
    %s19 = ssub.s32 %s11, %s18
    %p20 = scmp.eq.s32.totalorder %s19, 0
    %s22 = sadd.s32 %s21, 1
    %s23 = scalar_select %p20, %s21, %s22
    %p26 = pneg %p20
    %p27 = scmp.eq.s32.totalorder %s11, 1
    %p28 = por %p26, %p27
    %p29 = scmp.ne.s32.totalorder %s21, %s24
    %p30 = scmp.eq.s32.totalorder %s11, 0
    %p31 = por %p29, %p30
    %p32 = scmp.ne.s32.totalorder %s21, %s24
    %p33 = scmp.eq.s32.totalorder %s16, 1
    %p34 = por %p32, %p33
    %p35 = scmp.ne.s32.totalorder %s24, %s25
    %p36 = scmp.eq.s32.totalorder %s16, 0
    %p37 = por %p35, %p36
    %p38 = scmp.ne.s32.totalorder %s24, %s25
    %p39 = scmp.eq.s32.totalorder %s17, 1
    %p40 = por %p38, %p39
    %p42 = scmp.ne.s32.totalorder %s25, %s41
    %p43 = scmp.eq.s32.totalorder %s17, 0
    %p44 = por %p42, %p43
    %s46 = sadd.s32 %s45, 1
    %p49 = scmp.eq.s32.totalorder %s11, 1
    %p50 = scmp.ne.s32.totalorder %s45, %s47
    %p51 = scmp.eq.s32.totalorder %s11, 0
    %p52 = por %p50, %p51
    %p53 = scmp.ne.s32.totalorder %s45, %s47
    %p54 = scmp.eq.s32.totalorder %s16, 1
    %p55 = por %p53, %p54
    %p56 = scmp.ne.s32.totalorder %s47, %s48
    %p57 = scmp.eq.s32.totalorder %s16, 0
    %p58 = por %p56, %p57
    %p59 = scmp.ne.s32.totalorder %s47, %s48
    %p60 = scmp.eq.s32.totalorder %s17, 1
    %p61 = por %p59, %p60
    %p63 = scmp.ne.s32.totalorder %s48, %s62
    %p64 = scmp.eq.s32.totalorder %s17, 0
    %p65 = por %p63, %p64
    %s67 = sadd.s32 %s66, 1
    %p70 = scmp.eq.s32.totalorder %s11, 1
    %p71 = scmp.ne.s32.totalorder %s66, %s68
    %p72 = scmp.eq.s32.totalorder %s11, 0
    %p73 = por %p71, %p72
    %p74 = scmp.ne.s32.totalorder %s66, %s68
    %p75 = scmp.eq.s32.totalorder %s16, 1
    %p76 = por %p74, %p75
    %p77 = scmp.ne.s32.totalorder %s68, %s69
    %p78 = scmp.eq.s32.totalorder %s16, 0
    %p79 = por %p77, %p78
    %p80 = scmp.ne.s32.totalorder %s68, %s69
    %p81 = scmp.eq.s32.totalorder %s17, 1
    %p82 = por %p80, %p81
    %p84 = scmp.ne.s32.totalorder %s69, %s83
    %p85 = scmp.eq.s32.totalorder %s17, 0
    %p86 = por %p84, %p85
    %s87 = ssub.s32 %s11, %s18
    %p88 = scmp.eq.s32.totalorder %s87, 0
    %s90 = sadd.s32 %s89, 1
    %s91 = scalar_select %p88, %s89, %s90
    %p94 = pneg %p88
    %p95 = scmp.eq.s32.totalorder %s11, 1
    %p96 = por %p94, %p95
    %p97 = scmp.ne.s32.totalorder %s89, %s92
    %p98 = scmp.eq.s32.totalorder %s11, 0
    %p99 = por %p97, %p98
    %p100 = scmp.ne.s32.totalorder %s89, %s92
    %p101 = scmp.eq.s32.totalorder %s16, 1
    %p102 = por %p100, %p101
    %p103 = scmp.ne.s32.totalorder %s92, %s93
    %p104 = scmp.eq.s32.totalorder %s16, 0
    %p105 = por %p103, %p104
    %p106 = scmp.ne.s32.totalorder %s92, %s93
    %p107 = scmp.eq.s32.totalorder %s17, 1
    %p108 = por %p106, %p107
    %p110 = scmp.ne.s32.totalorder %s93, %s109
    %p111 = scmp.eq.s32.totalorder %s17, 0
    %p112 = por %p110, %p111
    %s113 = ssub.s32 %s11, %s18
    %p114 = scmp.eq.s32.totalorder %s113, 0
    %s116 = sadd.s32 %s115, 1
    %s117 = scalar_select %p114, %s115, %s116
    %p120 = pneg %p114
    %p121 = scmp.eq.s32.totalorder %s11, 1
    %p122 = por %p120, %p121
    %p123 = scmp.ne.s32.totalorder %s115, %s118
    %p124 = scmp.eq.s32.totalorder %s11, 0
    %p125 = por %p123, %p124
    %p126 = scmp.ne.s32.totalorder %s115, %s118
    %p127 = scmp.eq.s32.totalorder %s16, 1
    %p128 = por %p126, %p127
    %p129 = scmp.ne.s32.totalorder %s118, %s119
    %p130 = scmp.eq.s32.totalorder %s16, 0
    %p131 = por %p129, %p130
    %p132 = scmp.ne.s32.totalorder %s118, %s119
    %p133 = scmp.eq.s32.totalorder %s17, 1
    %p134 = por %p132, %p133
    %p136 = scmp.ne.s32.totalorder %s119, %s135
    %p137 = scmp.eq.s32.totalorder %s17, 0
    %p138 = por %p136, %p137
    %p139 = scmp.le.s32.totalorder 1, %s11
    %p140 = scmp.lt.s32.totalorder %s11, 3
    %p141 = pnand %p139, %p140
    %p142 = pneg %p141
    // Predicated region
    $region9: #{frame_encoder_forward.25} parent=5 // pred_check
      _
    $region10: #{frame_encoder_forward.25} parent=5 // pred_check_branch
      %144 = sbr.rel (%p141) target = $region12
    $region11: #{frame_encoder_forward.25} parent=5 // pred_region
      %s145 = ssub.s32 %s11, 1
      // Predicated region
      $region13: #{frame_encoder_forward.25} parent=11 // pred_check
        %p146 = pneg %p58
      $region14: #{frame_encoder_forward.25} parent=11 // pred_check_branch
        %148 = sbr.rel (%p146) target = $region16
      $region15: #{frame_encoder_forward.25} parent=11 // pred_region
        _
      $region16: #{frame_encoder_forward.25} parent=11 // pred_fallthru
        _
      // Predicated region
      $region17: #{frame_encoder_forward.25} parent=11 // pred_check
        %p149 = pneg %p79
      $region18: #{frame_encoder_forward.25} parent=11 // pred_check_branch
        %151 = sbr.rel (%p149) target = $region20
      $region19: #{frame_encoder_forward.25} parent=11 // pred_region
        _
      $region20: #{frame_encoder_forward.25} parent=11 // pred_fallthru
        _
    $region12: #{frame_encoder_forward.25} parent=5 // pred_fallthru
      _
    %p152 = scmp.lt.s32.totalorder %s11, 2
    // Predicated region
    $region21: #{frame_encoder_forward.25} parent=5 // pred_check
      %p153 = pneg %p152
    $region22: #{frame_encoder_forward.25} parent=5 // pred_check_branch
      %155 = sbr.rel (%p153) target = $region24
    $region23: #{frame_encoder_forward.25} parent=5 // pred_region
      // Predicated region
      $region25: #{frame_encoder_forward.25} parent=23 // pred_check
        %p156 = pneg %p31
      $region26: #{frame_encoder_forward.25} parent=23 // pred_check_branch
        %158 = sbr.rel (%p156) target = $region28
      $region27: #{frame_encoder_forward.25} parent=23 // pred_region
        %p159 = scmp.lt.s32.totalorder %s11, 1
        %s160 = scalar_select %p159, %s11, 1
        %s161 = smul.addr %s160, 2
        %s162 = scalar_lea.vmem %s0, %s161
      $region28: #{frame_encoder_forward.25} parent=23 // pred_fallthru
        _
    $region24: #{frame_encoder_forward.25} parent=5 // pred_fallthru
      _
    %p163 = scmp.le.s32.totalorder 1, %s11
    %p164 = scmp.lt.s32.totalorder %s11, 3
    %p165 = pnand %p163, %p164
    %p166 = pneg %p165
    // Predicated region
    $region29: #{frame_encoder_forward.25} parent=5 // pred_check
      _
    $region30: #{frame_encoder_forward.25} parent=5 // pred_check_branch
      %168 = sbr.rel (%p165) target = $region32
    $region31: #{frame_encoder_forward.25} parent=5 // pred_region
      %s169 = ssub.s32 %s11, 1
      %p170 = scmp.lt.s32.totalorder %s16, 1
      %s171 = scalar_select %p170, %s16, 1
      %s172 = smul.addr %s171, 2
      %s173 = scalar_lea.vmem %s0, %s172
      %p174 = pneg %p37
      %p175 = pneg %p34
      %p176 = pneg %p58
      %p177 = pneg %p55
      %p178 = pneg %p79
      %p179 = pneg %p76
      %p180 = pneg %p105
      %p181 = pneg %p102
      %p182 = scmp.lt.s32.totalorder %s16, 1
      %s183 = scalar_select %p182, %s16, 1
      %s184 = smul.addr %s183, 2
      %s185 = scalar_lea.vmem %s3, %s184
      %p186 = pneg %p131
      %p187 = pneg %p128
      %p188 = scmp.lt.s32.totalorder %s16, 1
      %s189 = scalar_select %p188, %s16, 1
      %s190 = smul.addr %s189, 2
      %s191 = scalar_lea.vmem %s4, %s190
      %p192 = scmp.lt.s32.totalorder %s16, 1
      %s193 = scalar_select %p192, %s16, 1
      %s194 = smul.addr %s193, 2
      %s195 = scalar_lea.vmem %s0, %s194
      %p196 = scmp.lt.s32.totalorder %s16, 1
      %s197 = scalar_select %p196, %s16, 1
      %s198 = smul.addr %s197, 2
      %s199 = scalar_lea.vmem %s3, %s198
      %p200 = scmp.lt.s32.totalorder %s16, 1
      %s201 = scalar_select %p200, %s16, 1
      %s202 = smul.addr %s201, 2
      %s203 = scalar_lea.vmem %s4, %s202
      %v204 = vld [vmem:[%s195] sm:$0x3]
      %v205 = vunpack.c.l.bf16 %v204
      %vm206 = vcmask 1043456
      %v207 = vsel %vm206, %v205, 0.0
      %v208 = vrot.slane %v207, 4
      %v209 = vadd.f32 %v207, %v208
      %v210 = vrot.slane %v209, 2
      %v211 = vadd.f32 %v209, %v210
      %v212 = vrot.slane %v211, 1
      %v213 = vadd.f32 %v211, %v212
      %v214 = vrcp.pop 4.0
      %v215 = vmul.f32 4.0, %v214
      %v216 = vsub.f32 1.0, %v215
      %v217 = vmul.f32 %v214, %v216
      %v218 = vadd.f32 %v214, %v217
      %vm219 = vweird.f32 %v214
      %v220 = vsel %vm219, %v214, %v218
      %v221 = vmul.f32 %v213, %v220
      %v222 = vsel %vm206, %v205, -inf
      %v223 = vrot.slane %v222, 4
      %v224 = vmax.f32 %v222, %v223
      %v225 = vrot.slane %v224, 2
      %v226 = vmax.f32 %v224, %v225
      %v227 = vrot.slane %v226, 1
      %v228 = vmax.f32 %v226, %v227
      %v229 = vld [vmem:[%s1] sm:$0xff]
      %v230 = vld [vmem:[%s1 + $0x8] sm:$0xff]
      %v231 = vld [vmem:[%s1 + $0x10] sm:$0xff]
      %v232 = vld [vmem:[%s1 + $0x18] sm:$0xff]
      %v233 = vld [vmem:[%s1 + $0x20] sm:$0xff]
      %v234 = vld [vmem:[%s1 + $0x28] sm:$0xff]
      %v235 = vld [vmem:[%s1 + $0x30] sm:$0xff]
      %v236 = vld [vmem:[%s1 + $0x38] sm:$0xff]
      %v237 = vld [vmem:[%s1 + $0x40] sm:$0xff]
      %v238 = vld [vmem:[%s1 + $0x48] sm:$0xff]
      %v239 = vld [vmem:[%s1 + $0x50] sm:$0xff]
      %v240 = vld [vmem:[%s1 + $0x58] sm:$0xff]
      %v241 = vld [vmem:[%s1 + $0x60] sm:$0xff]
      %v242 = vld [vmem:[%s1 + $0x68] sm:$0xff]
      %v243 = vld [vmem:[%s1 + $0x70] sm:$0xff]
      %v244 = vld [vmem:[%s1 + $0x78] sm:$0xff]
      %245 = vmatpush.msra.mxu0 %v244
      %246 = vmatpush.msra.mxu0 %v243
      %247 = vmatpush.msra.mxu0 %v242
      %248 = vmatpush.msra.mxu0 %v241
      %249 = vmatpush.msra.mxu0 %v240
      %250 = vmatpush.msra.mxu0 %v239
      %251 = vmatpush.msra.mxu0 %v238
      %252 = vmatpush.msra.mxu0 %v237
      %253 = vmatpush.msra.mxu0 %v236
      %254 = vmatpush.msra.mxu0 %v235
      %255 = vmatpush.msra.mxu0 %v234
      %256 = vmatpush.msra.mxu0 %v233
      %257 = vmatpush.msra.mxu0 %v232
      %258 = vmatpush.msra.mxu0 %v231
      %259 = vmatpush.msra.mxu0 %v230
      %260 = vmatpush.msra.mxu0 %v229
      %261 = vmatmul.f32.gmra.mxu0 %v221
      %v262 = vpop.f32.mrf.mxu0
      %v263 = vadd.f32 0.0, %v262
      %264 = vdwg.mxu0
      %v265 = vmax.f32 %v263, 0.0
      %v266 = vld [vmem:[%s2] sm:$0xff]
      %v267 = vld [vmem:[%s2 + $0x8] sm:$0xff]
      %v268 = vld [vmem:[%s2 + $0x10] sm:$0xff]
      %v269 = vld [vmem:[%s2 + $0x18] sm:$0xff]
      %v270 = vld [vmem:[%s2 + $0x20] sm:$0xff]
      %v271 = vld [vmem:[%s2 + $0x28] sm:$0xff]
      %v272 = vld [vmem:[%s2 + $0x30] sm:$0xff]
      %v273 = vld [vmem:[%s2 + $0x38] sm:$0xff]
      %v274 = vld [vmem:[%s2 + $0x40] sm:$0xff]
      %v275 = vld [vmem:[%s2 + $0x48] sm:$0xff]
      %v276 = vld [vmem:[%s2 + $0x50] sm:$0xff]
      %v277 = vld [vmem:[%s2 + $0x58] sm:$0xff]
      %v278 = vld [vmem:[%s2 + $0x60] sm:$0xff]
      %v279 = vld [vmem:[%s2 + $0x68] sm:$0xff]
      %v280 = vld [vmem:[%s2 + $0x70] sm:$0xff]
      %v281 = vld [vmem:[%s2 + $0x78] sm:$0xff]
      %282 = vmatpush.msra.mxu0 %v244
      %283 = vmatpush.msra.mxu0 %v243
      %284 = vmatpush.msra.mxu0 %v242
      %285 = vmatpush.msra.mxu0 %v241
      %286 = vmatpush.msra.mxu0 %v240
      %287 = vmatpush.msra.mxu0 %v239
      %288 = vmatpush.msra.mxu0 %v238
      %289 = vmatpush.msra.mxu0 %v237
      %290 = vmatpush.msra.mxu0 %v236
      %291 = vmatpush.msra.mxu0 %v235
      %292 = vmatpush.msra.mxu0 %v234
      %293 = vmatpush.msra.mxu0 %v233
      %294 = vmatpush.msra.mxu0 %v232
      %295 = vmatpush.msra.mxu0 %v231
      %296 = vmatpush.msra.mxu0 %v230
      %297 = vmatpush.msra.mxu0 %v229
      %298 = vmatmul.f32.gmra.mxu0 %v228
      %v299 = vpop.f32.mrf.mxu0
      %v300 = vadd.f32 0.0, %v299
      %301 = vdwg.mxu0
      %v302 = vmax.f32 %v300, 0.0
      %303 = vmatpush.msra.mxu0 %v281
      %304 = vmatpush.msra.mxu0 %v280
      %305 = vmatpush.msra.mxu0 %v279
      %306 = vmatpush.msra.mxu0 %v278
      %307 = vmatpush.msra.mxu0 %v277
      %308 = vmatpush.msra.mxu0 %v276
      %309 = vmatpush.msra.mxu0 %v275
      %310 = vmatpush.msra.mxu0 %v274
      %311 = vmatpush.msra.mxu0 %v273
      %312 = vmatpush.msra.mxu0 %v272
      %313 = vmatpush.msra.mxu0 %v271
      %314 = vmatpush.msra.mxu0 %v270
      %315 = vmatpush.msra.mxu0 %v269
      %316 = vmatpush.msra.mxu0 %v268
      %317 = vmatpush.msra.mxu0 %v267
      %318 = vmatpush.msra.mxu0 %v266
      %319 = vmatmul.f32.gmra.mxu0 %v302
      %v320 = vpop.f32.mrf.mxu0
      %v321 = vadd.f32 0.0, %v320
      %322 = vdwg.mxu0
      %323 = vmatpush.msra.mxu0 %v281
      %324 = vmatpush.msra.mxu0 %v280
      %325 = vmatpush.msra.mxu0 %v279
      %326 = vmatpush.msra.mxu0 %v278
      %327 = vmatpush.msra.mxu0 %v277
      %328 = vmatpush.msra.mxu0 %v276
      %329 = vmatpush.msra.mxu0 %v275
      %330 = vmatpush.msra.mxu0 %v274
      %331 = vmatpush.msra.mxu0 %v273
      %332 = vmatpush.msra.mxu0 %v272
      %333 = vmatpush.msra.mxu0 %v271
      %334 = vmatpush.msra.mxu0 %v270
      %335 = vmatpush.msra.mxu0 %v269
      %336 = vmatpush.msra.mxu0 %v268
      %337 = vmatpush.msra.mxu0 %v267
      %338 = vmatpush.msra.mxu0 %v266
      %339 = vmatmul.f32.gmra.mxu0 %v265
      %v340 = vpop.f32.mrf.mxu0
      %v341 = vadd.f32 %v321, %v340
      %342 = vdwg.mxu0
      %v343 = vsub.f32 0.0, %v341
      %v344 = vmul.f32 %v343, 1.442695
      %v345 = vpow.pop %v344
      %v346 = vadd.f32 %v345, 1.0
      %v347 = vrcp.pop %v346
      %v348 = vperm.slane %v347, 0
      %v349 = vmul.f32 %v205, %v348
      %v350 = vpack.c.bf16 %v349, %v349
      %351 = vst [vmem:[%s199] sm:$0x3] %v350
      %v352 = vsel %vm206, %v349, 0.0
      %353 = vadd.xlane.f32.xlu0 %v352
      %v354 = vpop.xlane.xlu0 %353
      %v355 = vrcp.pop 128.0
      %v356 = vmul.f32 128.0, %v355
      %v357 = vsub.f32 1.0, %v356
      %v358 = vmul.f32 %v355, %v357
      %v359 = vadd.f32 %v355, %v358
      %vm360 = vweird.f32 %v355
      %v361 = vsel %vm360, %v355, %v359
      %v362 = vmul.f32 %v354, %v361
      %v363 = vsel %vm206, %v349, -inf
      %364 = vmax.xlane.f32.xlu0 %v363
      %v365 = vpop.xlane.xlu0 %364
      %vm366 = vcmask 7168
      %v367 = vsel %vm366, %v362, %v365
      %v368 = vpack.c.bf16 %v367, %v367
      %vm369 = vcmask 9216
      %370 = vst.msk [vmem:[%s203] sm:$0x3] %vm369, %v368
      %p371 = scmp.lt.s32.totalorder %s16, 1
      %s372 = scalar_select %p371, %s16, 1
      %s373 = smul.addr %s372, 2
      %s374 = scalar_lea.vmem %s3, %s373
      %p375 = scmp.lt.s32.totalorder %s16, 1
      %s376 = scalar_select %p375, %s16, 1
      %s377 = smul.addr %s376, 2
      %s378 = scalar_lea.vmem %s4, %s377
      // Predicated region
      $region33: #{frame_encoder_forward.25} parent=31 // pred_check
        %p379 = pneg %p102
      $region34: #{frame_encoder_forward.25} parent=31 // pred_check_branch
        %381 = sbr.rel (%p379) target = $region36
      $region35: #{frame_encoder_forward.25} parent=31 // pred_region
        _
      $region36: #{frame_encoder_forward.25} parent=31 // pred_fallthru
        _
      // Predicated region
      $region37: #{frame_encoder_forward.25} parent=31 // pred_check
        %p382 = pneg %p128
      $region38: #{frame_encoder_forward.25} parent=31 // pred_check_branch
        %384 = sbr.rel (%p382) target = $region40
      $region39: #{frame_encoder_forward.25} parent=31 // pred_region
        _
      $region40: #{frame_encoder_forward.25} parent=31 // pred_fallthru
        _
    $region32: #{frame_encoder_forward.25} parent=5 // pred_fallthru
      _
    %p385 = scmp.le.s32.totalorder 2, %s11
    // Predicated region
    $region41: #{frame_encoder_forward.25} parent=5 // pred_check
      %p386 = pneg %p385
    $region42: #{frame_encoder_forward.25} parent=5 // pred_check_branch
      %388 = sbr.rel (%p386) target = $region44
    $region43: #{frame_encoder_forward.25} parent=5 // pred_region
      %s389 = ssub.s32 %s11, 2
      // Predicated region
      $region45: #{frame_encoder_forward.25} parent=43 // pred_check
        %p390 = pneg %p108
      $region46: #{frame_encoder_forward.25} parent=43 // pred_check_branch
        %392 = sbr.rel (%p390) target = $region48
      $region47: #{frame_encoder_forward.25} parent=43 // pred_region
        %p393 = scmp.lt.s32.totalorder %s17, 1
        %s394 = scalar_select %p393, %s17, 1
        %s395 = smul.addr %s394, 2
        %s396 = scalar_lea.vmem %s3, %s395
      $region48: #{frame_encoder_forward.25} parent=43 // pred_fallthru
        _
      // Predicated region
      $region49: #{frame_encoder_forward.25} parent=43 // pred_check
        %p397 = pneg %p134
      $region50: #{frame_encoder_forward.25} parent=43 // pred_check_branch
        %399 = sbr.rel (%p397) target = $region52
      $region51: #{frame_encoder_forward.25} parent=43 // pred_region
        %p400 = scmp.lt.s32.totalorder %s17, 1
        %s401 = scalar_select %p400, %s17, 1
        %s402 = smul.addr %s401, 2
        %s403 = scalar_lea.vmem %s4, %s402
      $region52: #{frame_encoder_forward.25} parent=43 // pred_fallthru
        _
    $region44: #{frame_encoder_forward.25} parent=5 // pred_fallthru
      _
  $region6: #{frame_encoder_forward.25} parent=0 // loop_footer
    %s15 = sadd.s32 1, %s11
  $region7: #{frame_encoder_forward.25} parent=0 // loop_footer_branch
    %10 = sbr.rel target = $region3
  $region8: #{frame_encoder_forward.25} parent=0 // loop_exit
    _

// kernel: frame_encoder_forward.26
$region0: #{frame_encoder_forward.26}
  #allocation0 [shape = 'u32[]', space=smem, size = 0x4, offset = 0x4, fixed_abs, tag = 'smem constant byte address 0x4 - core index']
  #allocation1 [shape = 'u32[72,128]{1,0:T(1,128)}', space=vmem, size = 0x9000, scoped, tag = 'internal scratch']
  %s0 = inlined_call_operand.vmem [shape: bf16[16,128], index: 0, kind: input, shape index: {}]
  %s1 = inlined_call_operand.vmem [shape: bf16[128,128], index: 1, kind: input, shape index: {}]
  %s2 = inlined_call_operand.vmem [shape: bf16[16,128], index: 2, kind: input, shape index: {}]
  %s3 = inlined_call_operand.vmem [shape: bf16[16,128], index: 3, kind: input, shape index: {}]
  %s4 = inlined_call_operand.vmem [shape: bf16[16,128], index: 4, kind: output, shape index: {}]
  %s5 = sld [smem:[#allocation0]]
  $region26: #{frame_encoder_forward.26} parent=0
    _
  %s7 = ssub.s32 1, %s5
  %s8 = scalar_select 0, %s7, %s5
  // Predicated region
  $region2: #{frame_encoder_forward.26} parent=0 // pred_check
    _
  $region3: #{frame_encoder_forward.26} parent=0 // pred_check_branch
    %10 = sbr.rel (0) target = $region5
  $region4: #{frame_encoder_forward.26} parent=0 // pred_region
    _
  $region5: #{frame_encoder_forward.26} parent=0 // pred_fallthru
    _
  // Predicated region
  $region6: #{frame_encoder_forward.26} parent=0 // pred_check
    _
  $region7: #{frame_encoder_forward.26} parent=0 // pred_check_branch
    %12 = sbr.rel (0) target = $region9
  $region8: #{frame_encoder_forward.26} parent=0 // pred_region
    _
  $region9: #{frame_encoder_forward.26} parent=0 // pred_fallthru
    _
  // Predicated region
  $region10: #{frame_encoder_forward.26} parent=0 // pred_check
    _
  $region11: #{frame_encoder_forward.26} parent=0 // pred_check_branch
    %14 = sbr.rel (0) target = $region13
  $region12: #{frame_encoder_forward.26} parent=0 // pred_region
    _
  $region13: #{frame_encoder_forward.26} parent=0 // pred_fallthru
    _
  // Predicated region
  $region14: #{frame_encoder_forward.26} parent=0 // pred_check
    _
  $region15: #{frame_encoder_forward.26} parent=0 // pred_check_branch
    %16 = sbr.rel (0) target = $region17
  $region16: #{frame_encoder_forward.26} parent=0 // pred_region
    _
  $region17: #{frame_encoder_forward.26} parent=0 // pred_fallthru
    _
  %v17 = vld [vmem:[%s0] sm:$0xf]
  %v18 = vld [vmem:[%s0 + $0x4] sm:$0xf]
  %v19 = vld [vmem:[%s1] sm:$0xf]
  %v20 = vld [vmem:[%s1 + $0x4] sm:$0xf]
  %v21 = vld [vmem:[%s1 + $0x8] sm:$0xf]
  %v22 = vld [vmem:[%s1 + $0xc] sm:$0xf]
  %v23 = vld [vmem:[%s1 + $0x10] sm:$0xf]
  %v24 = vld [vmem:[%s1 + $0x14] sm:$0xf]
  %v25 = vld [vmem:[%s1 + $0x18] sm:$0xf]
  %v26 = vld [vmem:[%s1 + $0x1c] sm:$0xf]
  %v27 = vld [vmem:[%s1 + $0x20] sm:$0xf]
  %v28 = vld [vmem:[%s1 + $0x24] sm:$0xf]
  %v29 = vld [vmem:[%s1 + $0x28] sm:$0xf]
  %v30 = vld [vmem:[%s1 + $0x2c] sm:$0xf]
  %v31 = vld [vmem:[%s1 + $0x30] sm:$0xf]
  %v32 = vld [vmem:[%s1 + $0x34] sm:$0xf]
  %v33 = vld [vmem:[%s1 + $0x38] sm:$0xf]
  %v34 = vld [vmem:[%s1 + $0x3c] sm:$0xf]
  %v37 = vunpack.c.l.b16 %v17
  %v38 = vunpack.c.l.b16 %v18
  %v39 = vpack.c.b16 %v38, %v37
  %v57 = vunpack.c.l.b16 %v19
  %v58 = vunpack.c.l.b16 %v20
  %v59 = vunpack.c.l.b16 %v21
  %v60 = vunpack.c.l.b16 %v22
  %v61 = vunpack.c.l.b16 %v23
  %v62 = vunpack.c.l.b16 %v24
  %v63 = vunpack.c.l.b16 %v25
  %v64 = vunpack.c.l.b16 %v26
  %v65 = vunpack.c.l.b16 %v27
  %v66 = vunpack.c.l.b16 %v28
  %v67 = vunpack.c.l.b16 %v29
  %v68 = vunpack.c.l.b16 %v30
  %v69 = vunpack.c.l.b16 %v31
  %v70 = vunpack.c.l.b16 %v32
  %v71 = vunpack.c.l.b16 %v33
  %v72 = vunpack.c.l.b16 %v34
  %v73 = vpack.c.b16 %v58, %v57
  %v74 = vpack.c.b16 %v60, %v59
  %v75 = vpack.c.b16 %v62, %v61
  %v76 = vpack.c.b16 %v64, %v63
  %v77 = vpack.c.b16 %v66, %v65
  %v78 = vpack.c.b16 %v68, %v67
  %v79 = vpack.c.b16 %v70, %v69
  %v80 = vpack.c.b16 %v72, %v71
  %89 = vmatpush.bf16.msra.mxu0 %v80
  %90 = vmatpush.bf16.msra.mxu0 %v79
  %91 = vmatpush.bf16.msra.mxu0 %v78
  %92 = vmatpush.bf16.msra.mxu0 %v77
  %93 = vmatpush.bf16.msra.mxu0 %v76
  %94 = vmatpush.bf16.msra.mxu0 %v75
  %95 = vmatpush.bf16.msra.mxu0 %v74
  %96 = vmatpush.bf16.msra.mxu0 %v73
  %97 = vmatmul.bf16.gmra.mxu0 %v39
  %v98 = vpop.f32.mrf.mxu0
  %v99 = vadd.f32 0.0, %v98
  %v100 = vpop.f32.mrf.mxu0
  %v101 = vadd.f32 0.0, %v100
  %102 = vdwg.mxu0
  %v103 = vsub.f32 0.0, %v99
  %v104 = vsub.f32 0.0, %v101
  %v105 = vmul.f32 %v103, 1.442695
  %v106 = vpow.pop %v105
  %v107 = vmul.f32 %v104, 1.442695
  %v108 = vpow.pop %v107
  %v109 = vadd.f32 %v106, 1.0
  %v110 = vadd.f32 %v108, 1.0
  %v111 = vrcp.pop %v109
  %v112 = vrcp.pop %v110
  %v113 = vld [vmem:[%s2] sm:$0xf]
  %v114 = vld [vmem:[%s2 + $0x4] sm:$0xf]
  %v115 = vunpack.c.l.bf16 %v113
  %v116 = vunpack.c.l.bf16 %v114
  %v117 = vmul.f32 %v115, %v111
  %v118 = vmul.f32 %v116, %v112
  %v119 = vld [vmem:[%s3] sm:$0xf]
  %v120 = vld [vmem:[%s3 + $0x4] sm:$0xf]
  %v121 = vunpack.c.l.bf16 %v119
  %v122 = vunpack.c.l.bf16 %v120
  %v123 = vadd.f32 %v117, %v121
  %v124 = vadd.f32 %v118, %v122
  %v125 = vmax.f32 %v123, 0.0
  %v126 = vmax.f32 %v124, 0.0
  %v127 = vpack.c.bf16 %v125, %v125
  %v128 = vpack.c.bf16 %v126, %v126
  %129 = vst [vmem:[%s4] sm:$0xf] %v127
  %130 = vst [vmem:[%s4 + $0x4] sm:$0xf] %v128
  // Predicated region
  $region18: #{frame_encoder_forward.26} parent=0 // pred_check
    _
  $region19: #{frame_encoder_forward.26} parent=0 // pred_check_branch
    %132 = sbr.rel (0) target = $region21
  $region20: #{frame_encoder_forward.26} parent=0 // pred_region
    _
  $region21: #{frame_encoder_forward.26} parent=0 // pred_fallthru
    _
  // Predicated region
  $region22: #{frame_encoder_forward.26} parent=0 // pred_check
    _
  $region23: #{frame_encoder_forward.26} parent=0 // pred_check_branch
    %134 = sbr.rel (0) target = $region25
  $region24: #{frame_encoder_forward.26} parent=0 // pred_region
    _
  $region25: #{frame_encoder_forward.26} parent=0 // pred_fallthru
    _

// kernel: frame_encoder_forward.22
$region0: #{frame_encoder_forward.22}
  #allocation0 [shape = 'u32[]', space=smem, size = 0x4, offset = 0x4, fixed_abs, tag = 'smem constant byte address 0x4 - core index']
  #allocation1 [shape = 'u32[72,128]{1,0:T(1,128)}', space=vmem, size = 0x9000, scoped, tag = 'internal scratch']
  #allocation2 [shape = 'f32[16,128]{1,0:T(8,128)}', space=vmem, size = 0x2000, scoped, tag = 'scratch operand']
  %s0 = inlined_call_operand.vmem [shape: bf16[16,64], index: 0, kind: input, shape index: {}]
  %s1 = inlined_call_operand.vmem [shape: bf16[64,128], index: 1, kind: input, shape index: {}]
  %s2 = inlined_call_operand.vmem [shape: f32[1,128], index: 2, kind: input, shape index: {}]
  %s3 = inlined_call_operand.vmem [shape: f32[1,128], index: 3, kind: input, shape index: {}]
  %s4 = inlined_call_operand.vmem [shape: bf16[16,128], index: 4, kind: output, shape index: {}]
  %s5 = sld [smem:[#allocation0]]
  $region34: #{frame_encoder_forward.22} parent=0
    _
  %s7 = ssub.s32 1, %s5
  %s8 = scalar_select 0, %s7, %s5
  // Predicated region
  $region2: #{frame_encoder_forward.22} parent=0 // pred_check
    _
  $region3: #{frame_encoder_forward.22} parent=0 // pred_check_branch
    %10 = sbr.rel (0) target = $region5
  $region4: #{frame_encoder_forward.22} parent=0 // pred_region
    _
  $region5: #{frame_encoder_forward.22} parent=0 // pred_fallthru
    _
  // Predicated region
  $region6: #{frame_encoder_forward.22} parent=0 // pred_check
    _
  $region7: #{frame_encoder_forward.22} parent=0 // pred_check_branch
    %12 = sbr.rel (0) target = $region9
  $region8: #{frame_encoder_forward.22} parent=0 // pred_region
    _
  $region9: #{frame_encoder_forward.22} parent=0 // pred_fallthru
    _
  // Predicated region
  $region10: #{frame_encoder_forward.22} parent=0 // pred_check
    _
  $region11: #{frame_encoder_forward.22} parent=0 // pred_check_branch
    %14 = sbr.rel (0) target = $region13
  $region12: #{frame_encoder_forward.22} parent=0 // pred_region
    _
  $region13: #{frame_encoder_forward.22} parent=0 // pred_fallthru
    _
  // Predicated region
  $region14: #{frame_encoder_forward.22} parent=0 // pred_check
    _
  $region15: #{frame_encoder_forward.22} parent=0 // pred_check_branch
    %16 = sbr.rel (0) target = $region17
  $region16: #{frame_encoder_forward.22} parent=0 // pred_region
    _
  $region17: #{frame_encoder_forward.22} parent=0 // pred_fallthru
    _
  %p18 = scmp.eq.s32.totalorder 0, 0
  // Predicated region
  $region18: #{frame_encoder_forward.22} parent=0 // pred_check
    %p19 = pneg %p18
  $region19: #{frame_encoder_forward.22} parent=0 // pred_check_branch
    %21 = sbr.rel (%p19) target = $region21
  $region20: #{frame_encoder_forward.22} parent=0 // pred_region
    %22 = vst [vmem:[#allocation2] sm:$0xff] 0.0
    %23 = vst [vmem:[#allocation2 + $0x8] sm:$0xff] 0.0
  $region21: #{frame_encoder_forward.22} parent=0 // pred_fallthru
    _
  %v24 = vld [vmem:[#allocation2] sm:$0xff]
  %v25 = vld [vmem:[#allocation2 + $0x8] sm:$0xff]
  %v26 = vld [vmem:[%s0] sm:$0xf]
  %v27 = vld [vmem:[%s0 + $0x4] sm:$0xf]
  %v28 = vld [vmem:[%s1] sm:$0xf]
  %v29 = vld [vmem:[%s1 + $0x4] sm:$0xf]
  %v30 = vld [vmem:[%s1 + $0x8] sm:$0xf]
  %v31 = vld [vmem:[%s1 + $0xc] sm:$0xf]
  %v32 = vld [vmem:[%s1 + $0x10] sm:$0xf]
  %v33 = vld [vmem:[%s1 + $0x14] sm:$0xf]
  %v34 = vld [vmem:[%s1 + $0x18] sm:$0xf]
  %v35 = vld [vmem:[%s1 + $0x1c] sm:$0xf]
  %v38 = vunpack.c.l.b16 %v26
  %v39 = vunpack.c.l.b16 %v27
  %v40 = vpack.c.b16 %v39, %v38
  %v49 = vunpack.c.l.b16 %v28
  %v50 = vunpack.c.l.b16 %v29
  %v51 = vunpack.c.l.b16 %v30
  %v52 = vunpack.c.l.b16 %v31
  %v53 = vunpack.c.l.b16 %v32
  %v54 = vunpack.c.l.b16 %v33
  %v55 = vunpack.c.l.b16 %v34
  %v56 = vunpack.c.l.b16 %v35
  %v57 = vpack.c.b16 %v50, %v49
  %v58 = vpack.c.b16 %v52, %v51
  %v59 = vpack.c.b16 %v54, %v53
  %v60 = vpack.c.b16 %v56, %v55
  %vm65 = vcmask 523264
  %v67 = vsel %vm65, %v40, 0
  %69 = vmatpush.bf16.msra.mxu0 0
  %70 = vmatpush.bf16.msra.mxu0 0
  %71 = vmatpush.bf16.msra.mxu0 0
  %72 = vmatpush.bf16.msra.mxu0 0
  %73 = vmatpush.bf16.msra.mxu0 %v60
  %74 = vmatpush.bf16.msra.mxu0 %v59
  %75 = vmatpush.bf16.msra.mxu0 %v58
  %76 = vmatpush.bf16.msra.mxu0 %v57
  %77 = vmatmul.bf16.gmra.mxu0 %v67
  %v78 = vpop.f32.mrf.mxu0
  %v79 = vadd.f32 0.0, %v78
  %v80 = vpop.f32.mrf.mxu0
  %v81 = vadd.f32 0.0, %v80
  %82 = vdwg.mxu0
  %v83 = vadd.f32 %v24, %v79
  %v84 = vadd.f32 %v25, %v81
  %85 = vst [vmem:[#allocation2] sm:$0xff] %v83
  %86 = vst [vmem:[#allocation2 + $0x8] sm:$0xff] %v84
  // Predicated region
  $region22: #{frame_encoder_forward.22} parent=0 // pred_check
    %p87 = pneg %p18
  $region23: #{frame_encoder_forward.22} parent=0 // pred_check_branch
    %89 = sbr.rel (%p87) target = $region25
  $region24: #{frame_encoder_forward.22} parent=0 // pred_region
    %v90 = vld [vmem:[#allocation2] sm:$0xff]
    %v91 = vld [vmem:[#allocation2 + $0x8] sm:$0xff]
    %v92 = vld [vmem:[%s2] sm:$0x1]
    %v94 = vperm.slane %v92, 0
    %v96 = vmul.f32 %v90, %v94
    %v97 = vmul.f32 %v91, %v94
    %v98 = vld [vmem:[%s3] sm:$0x1]
    %v100 = vperm.slane %v98, 0
    %v102 = vadd.f32 %v96, %v100
    %v103 = vadd.f32 %v97, %v100
    %v104 = vpack.c.bf16 %v102, %v102
    %v105 = vpack.c.bf16 %v103, %v103
    %106 = vst [vmem:[%s4] sm:$0xf] %v104
    %107 = vst [vmem:[%s4 + $0x4] sm:$0xf] %v105
  $region25: #{frame_encoder_forward.22} parent=0 // pred_fallthru
    _
  // Predicated region
  $region26: #{frame_encoder_forward.22} parent=0 // pred_check
    _
  $region27: #{frame_encoder_forward.22} parent=0 // pred_check_branch
    %109 = sbr.rel (0) target = $region29
  $region28: #{frame_encoder_forward.22} parent=0 // pred_region
    _
  $region29: #{frame_encoder_forward.22} parent=0 // pred_fallthru
    _
  // Predicated region
  $region30: #{frame_encoder_forward.22} parent=0 // pred_check
    _
  $region31: #{frame_encoder_forward.22} parent=0 // pred_check_branch
    %111 = sbr.rel (0) target = $region33
  $region32: #{frame_encoder_forward.22} parent=0 // pred_region
    _
  $region33: #{frame_encoder_forward.22} parent=0 // pred_fallthru
    _

// kernel: frame_encoder_forward.31
$region0: #{frame_encoder_forward.31}
  #allocation0 [shape = 'u32[]', space=smem, size = 0x4, offset = 0x4, fixed_abs, tag = 'smem constant byte address 0x4 - core index']
  #allocation1 [shape = 'u32[72,128]{1,0:T(1,128)}', space=vmem, size = 0x9000, scoped, tag = 'internal scratch']
  %s0 = inlined_call_operand.vmem [shape: bf16[2,4,128], index: 0, kind: input, shape index: {}]
  %s1 = inlined_call_operand.vmem [shape: f32[128,128], index: 1, kind: input, shape index: {}]
  %s2 = inlined_call_operand.vmem [shape: f32[1,128], index: 2, kind: input, shape index: {}]
  %s3 = inlined_call_operand.hbm [shape: f32[2,1,128], index: 3, kind: output, shape index: {}]
  %s4 = sld [smem:[#allocation0]]
  $region45: #{frame_encoder_forward.31} parent=0
    _
  %s6 = ssub.s32 1, %s4
  %s7 = scalar_select 0, %s6, %s4
  $region1: #{frame_encoder_forward.31} parent=0
    #allocation2 [shape = 'u8[1024]{0}', space=vmem, size = 0x400, scoped, tag = 'output window, operand 0']
    #allocation3 [shape = 's32[2]{0}', space=sflag, size = 0x8, scoped, tag = 'scoped memory for frame_encoder_forward.31']
    %8 = vsyncpa [#allocation3], 0
    %s9 = scalar_lea.sflag [#allocation3], 1
    %10 = vsyncpa %s9, 0
    loop: start=0, step=1, limit=4
    $region2: #{frame_encoder_forward.31} parent=1 // loop_pre_header
      _
    $region3: #{frame_encoder_forward.31} parent=1 // loop_header
      %s12 = sphi 0, %s16
      %p13 = scmp.ge.s32.totalorder %s12, 4
      %s22 = sphi 0, %s24
      %s25 = sphi 0, %s22
      %s26 = sphi 0, %s25
      %s42 = sphi 0, %s26
      %s46 = sphi 0, %s46
      %s48 = sphi 0, %s46
      %s49 = sphi 0, %s48
      %s63 = sphi 0, %s49
      %s67 = sphi 0, %s67
      %s69 = sphi 0, %s67
      %s70 = sphi 0, %s69
      %s84 = sphi 0, %s70
      %s90 = sphi 0, %s92
      %s93 = sphi 0, %s90
      %s94 = sphi 0, %s93
      %s110 = sphi 0, %s94
    $region4: #{frame_encoder_forward.31} parent=1 // loop_header_branch
      %15 = sbr.rel (%p13) target = $region8
    $region5: #{frame_encoder_forward.31} parent=1 // loop_body
      %s17 = ssub.s32 %s12, 1
      %s18 = ssub.s32 %s12, 2
      %s19 = sadd.s32 %s12, 1
      %s20 = ssub.s32 %s12, %s19
      %p21 = scmp.eq.s32.totalorder %s20, 0
      %s23 = sadd.s32 %s22, 1
      %s24 = scalar_select %p21, %s22, %s23
      %p27 = pneg %p21
      %p28 = scmp.eq.s32.totalorder %s12, 1
      %p29 = por %p27, %p28
      %p30 = scmp.ne.s32.totalorder %s22, %s25
      %p31 = scmp.eq.s32.totalorder %s12, 0
      %p32 = por %p30, %p31
      %p33 = scmp.ne.s32.totalorder %s22, %s25
      %p34 = scmp.eq.s32.totalorder %s17, 1
      %p35 = por %p33, %p34
      %p36 = scmp.ne.s32.totalorder %s25, %s26
      %p37 = scmp.eq.s32.totalorder %s17, 0
      %p38 = por %p36, %p37
      %p39 = scmp.ne.s32.totalorder %s25, %s26
      %p40 = scmp.eq.s32.totalorder %s18, 1
      %p41 = por %p39, %p40
      %p43 = scmp.ne.s32.totalorder %s26, %s42
      %p44 = scmp.eq.s32.totalorder %s18, 0
      %p45 = por %p43, %p44
      %s47 = sadd.s32 %s46, 1
      %p50 = scmp.eq.s32.totalorder %s12, 1
      %p51 = scmp.ne.s32.totalorder %s46, %s48
      %p52 = scmp.eq.s32.totalorder %s12, 0
      %p53 = por %p51, %p52
      %p54 = scmp.ne.s32.totalorder %s46, %s48
      %p55 = scmp.eq.s32.totalorder %s17, 1
      %p56 = por %p54, %p55
      %p57 = scmp.ne.s32.totalorder %s48, %s49
      %p58 = scmp.eq.s32.totalorder %s17, 0
      %p59 = por %p57, %p58
      %p60 = scmp.ne.s32.totalorder %s48, %s49
      %p61 = scmp.eq.s32.totalorder %s18, 1
      %p62 = por %p60, %p61
      %p64 = scmp.ne.s32.totalorder %s49, %s63
      %p65 = scmp.eq.s32.totalorder %s18, 0
      %p66 = por %p64, %p65
      %s68 = sadd.s32 %s67, 1
      %p71 = scmp.eq.s32.totalorder %s12, 1
      %p72 = scmp.ne.s32.totalorder %s67, %s69
      %p73 = scmp.eq.s32.totalorder %s12, 0
      %p74 = por %p72, %p73
      %p75 = scmp.ne.s32.totalorder %s67, %s69
      %p76 = scmp.eq.s32.totalorder %s17, 1
      %p77 = por %p75, %p76
      %p78 = scmp.ne.s32.totalorder %s69, %s70
      %p79 = scmp.eq.s32.totalorder %s17, 0
      %p80 = por %p78, %p79
      %p81 = scmp.ne.s32.totalorder %s69, %s70
      %p82 = scmp.eq.s32.totalorder %s18, 1
      %p83 = por %p81, %p82
      %p85 = scmp.ne.s32.totalorder %s70, %s84
      %p86 = scmp.eq.s32.totalorder %s18, 0
      %p87 = por %p85, %p86
      %s88 = ssub.s32 %s12, %s19
      %p89 = scmp.eq.s32.totalorder %s88, 0
      %s91 = sadd.s32 %s90, 1
      %s92 = scalar_select %p89, %s90, %s91
      %p95 = pneg %p89
      %p96 = scmp.eq.s32.totalorder %s12, 1
      %p97 = por %p95, %p96
      %p98 = scmp.ne.s32.totalorder %s90, %s93
      %p99 = scmp.eq.s32.totalorder %s12, 0
      %p100 = por %p98, %p99
      %p101 = scmp.ne.s32.totalorder %s90, %s93
      %p102 = scmp.eq.s32.totalorder %s17, 1
      %p103 = por %p101, %p102
      %p104 = scmp.ne.s32.totalorder %s93, %s94
      %p105 = scmp.eq.s32.totalorder %s17, 0
      %p106 = por %p104, %p105
      %p107 = scmp.ne.s32.totalorder %s93, %s94
      %p108 = scmp.eq.s32.totalorder %s18, 1
      %p109 = por %p107, %p108
      %p111 = scmp.ne.s32.totalorder %s94, %s110
      %p112 = scmp.eq.s32.totalorder %s18, 0
      %p113 = por %p111, %p112
      %p114 = scmp.le.s32.totalorder 1, %s12
      %p115 = scmp.lt.s32.totalorder %s12, 3
      %p116 = pnand %p114, %p115
      %p117 = pneg %p116
      // Predicated region
      $region9: #{frame_encoder_forward.31} parent=5 // pred_check
        _
      $region10: #{frame_encoder_forward.31} parent=5 // pred_check_branch
        %119 = sbr.rel (%p116) target = $region12
      $region11: #{frame_encoder_forward.31} parent=5 // pred_region
        %s120 = ssub.s32 %s12, 1
        // Predicated region
        $region13: #{frame_encoder_forward.31} parent=11 // pred_check
          %p121 = pneg %p59
        $region14: #{frame_encoder_forward.31} parent=11 // pred_check_branch
          %123 = sbr.rel (%p121) target = $region16
        $region15: #{frame_encoder_forward.31} parent=11 // pred_region
          _
        $region16: #{frame_encoder_forward.31} parent=11 // pred_fallthru
          _
        // Predicated region
        $region17: #{frame_encoder_forward.31} parent=11 // pred_check
          %p124 = pneg %p80
        $region18: #{frame_encoder_forward.31} parent=11 // pred_check_branch
          %126 = sbr.rel (%p124) target = $region20
        $region19: #{frame_encoder_forward.31} parent=11 // pred_region
          _
        $region20: #{frame_encoder_forward.31} parent=11 // pred_fallthru
          _
      $region12: #{frame_encoder_forward.31} parent=5 // pred_fallthru
        _
      %p127 = scmp.lt.s32.totalorder %s12, 2
      // Predicated region
      $region21: #{frame_encoder_forward.31} parent=5 // pred_check
        %p128 = pneg %p127
      $region22: #{frame_encoder_forward.31} parent=5 // pred_check_branch
        %130 = sbr.rel (%p128) target = $region24
      $region23: #{frame_encoder_forward.31} parent=5 // pred_region
        // Predicated region
        $region25: #{frame_encoder_forward.31} parent=23 // pred_check
          %p131 = pneg %p32
        $region26: #{frame_encoder_forward.31} parent=23 // pred_check_branch
          %133 = sbr.rel (%p131) target = $region28
        $region27: #{frame_encoder_forward.31} parent=23 // pred_region
          %p134 = scmp.lt.s32.totalorder %s12, 1
          %s135 = scalar_select %p134, %s12, 1
          %s136 = smul.addr %s135, 2
          %s137 = scalar_lea.vmem %s0, %s136
        $region28: #{frame_encoder_forward.31} parent=23 // pred_fallthru
          _
      $region24: #{frame_encoder_forward.31} parent=5 // pred_fallthru
        _
      %p138 = scmp.le.s32.totalorder 1, %s12
      %p139 = scmp.lt.s32.totalorder %s12, 3
      %p140 = pnand %p138, %p139
      %p141 = pneg %p140
      // Predicated region
      $region29: #{frame_encoder_forward.31} parent=5 // pred_check
        _
      $region30: #{frame_encoder_forward.31} parent=5 // pred_check_branch
        %143 = sbr.rel (%p140) target = $region32
      $region31: #{frame_encoder_forward.31} parent=5 // pred_region
        %s144 = ssub.s32 %s12, 1
        %p145 = scmp.lt.s32.totalorder %s17, 1
        %s146 = scalar_select %p145, %s17, 1
        %s147 = smul.addr %s146, 2
        %s148 = scalar_lea.vmem %s0, %s147
        %p149 = pneg %p38
        %p150 = pneg %p35
        %p151 = pneg %p59
        %p152 = pneg %p56
        %p153 = pneg %p80
        %p154 = pneg %p77
        %p155 = pneg %p106
        %p156 = pneg %p103
        %s157 = sand.u32 %s93, 1
        %s158 = scalar_lea.sflag [#allocation3], %s157
        %s159 = sand.u32 %s93, 1
        %s160 = scalar_lea.vmem [#allocation2], %s159
        %p161 = scmp.lt.s32.totalorder %s17, 1
        %s162 = scalar_select %p161, %s17, 1
        %s163 = smul.addr %s162, 2
        %s164 = scalar_lea.vmem %s0, %s163
        %v165 = vld [vmem:[%s164] sm:$0x3]
        %v166 = vunpack.c.l.bf16 %v165
        %vm167 = vcmask 1043456
        %v168 = vsel %vm167, %v166, 0.0
        %v169 = vrot.slane %v168, 4
        %v170 = vadd.f32 %v168, %v169
        %v171 = vrot.slane %v170, 2
        %v172 = vadd.f32 %v170, %v171
        %v173 = vrot.slane %v172, 1
        %v174 = vadd.f32 %v172, %v173
        %v175 = vrcp.pop 4.0
        %v176 = vmul.f32 4.0, %v175
        %v177 = vsub.f32 1.0, %v176
        %v178 = vmul.f32 %v175, %v177
        %v179 = vadd.f32 %v175, %v178
        %vm180 = vweird.f32 %v175
        %v181 = vsel %vm180, %v175, %v179
        %v182 = vmul.f32 %v174, %v181
        %v183 = vld [vmem:[%s1] sm:$0xff]
        %v184 = vld [vmem:[%s1 + $0x8] sm:$0xff]
        %v185 = vld [vmem:[%s1 + $0x10] sm:$0xff]
        %v186 = vld [vmem:[%s1 + $0x18] sm:$0xff]
        %v187 = vld [vmem:[%s1 + $0x20] sm:$0xff]
        %v188 = vld [vmem:[%s1 + $0x28] sm:$0xff]
        %v189 = vld [vmem:[%s1 + $0x30] sm:$0xff]
        %v190 = vld [vmem:[%s1 + $0x38] sm:$0xff]
        %v191 = vld [vmem:[%s1 + $0x40] sm:$0xff]
        %v192 = vld [vmem:[%s1 + $0x48] sm:$0xff]
        %v193 = vld [vmem:[%s1 + $0x50] sm:$0xff]
        %v194 = vld [vmem:[%s1 + $0x58] sm:$0xff]
        %v195 = vld [vmem:[%s1 + $0x60] sm:$0xff]
        %v196 = vld [vmem:[%s1 + $0x68] sm:$0xff]
        %v197 = vld [vmem:[%s1 + $0x70] sm:$0xff]
        %v198 = vld [vmem:[%s1 + $0x78] sm:$0xff]
        %v199 = vld [vmem:[%s2] sm:$0x1]
        %200 = vmatpush.msra.mxu0 %v198
        %201 = vmatpush.msra.mxu0 %v197
        %202 = vmatpush.msra.mxu0 %v196
        %203 = vmatpush.msra.mxu0 %v195
        %204 = vmatpush.msra.mxu0 %v194
        %205 = vmatpush.msra.mxu0 %v193
        %206 = vmatpush.msra.mxu0 %v192
        %207 = vmatpush.msra.mxu0 %v191
        %208 = vmatpush.msra.mxu0 %v190
        %209 = vmatpush.msra.mxu0 %v189
        %210 = vmatpush.msra.mxu0 %v188
        %211 = vmatpush.msra.mxu0 %v187
        %212 = vmatpush.msra.mxu0 %v186
        %213 = vmatpush.msra.mxu0 %v185
        %214 = vmatpush.msra.mxu0 %v184
        %215 = vmatpush.msra.mxu0 %v183
        %216 = vmatmul.f32.gmra.mxu0 %v182
        %v217 = vpop.f32.mrf.mxu0
        %v218 = vadd.f32 %v199, %v217
        %219 = vdwg.mxu0
        %220 = vst [vmem:[%s160] sm:$0x1] %v218
        %s221 = sand.u32 %s93, 1
        %s222 = scalar_lea.sflag [#allocation3], %s221
        %s223 = sand.u32 %s93, 1
        %s224 = scalar_lea.vmem [#allocation2], %s223
        // Predicated region
        $region33: #{frame_encoder_forward.31} parent=31 // pred_check
          %p225 = pneg %p103
        $region34: #{frame_encoder_forward.31} parent=31 // pred_check_branch
          %227 = sbr.rel (%p225) target = $region36
        $region35: #{frame_encoder_forward.31} parent=31 // pred_region
          %229 = vsyncadd %s222, 0
          %s230 = scalar_lea.hbm %s3, %s17
          %s232 = sshll.u32 %s224, 4
          %s233 = int_to_ptr.vmem [resolvable:$true] %s232
          %s234 = sshll.u32 %s230, 4
          %s235 = int_to_ptr.hbm [resolvable:$true] %s234
          %237 = dma.vmem_to_hbm [thread:$0]  %s233, 16, %s235, %s222
        $region36: #{frame_encoder_forward.31} parent=31 // pred_fallthru
          _
      $region32: #{frame_encoder_forward.31} parent=5 // pred_fallthru
        _
      %p238 = scmp.le.s32.totalorder 2, %s12
      // Predicated region
      $region37: #{frame_encoder_forward.31} parent=5 // pred_check
        %p239 = pneg %p238
      $region38: #{frame_encoder_forward.31} parent=5 // pred_check_branch
        %241 = sbr.rel (%p239) target = $region40
      $region39: #{frame_encoder_forward.31} parent=5 // pred_region
        %s242 = ssub.s32 %s12, 2
        // Predicated region
        $region41: #{frame_encoder_forward.31} parent=39 // pred_check
          %p243 = pneg %p109
        $region42: #{frame_encoder_forward.31} parent=39 // pred_check_branch
          %245 = sbr.rel (%p243) target = $region44
        $region43: #{frame_encoder_forward.31} parent=39 // pred_region
          %s246 = sand.u32 %s94, 1
          %s247 = scalar_lea.sflag [#allocation3], %s246
          %s248 = sand.u32 %s94, 1
          %s249 = scalar_lea.vmem [#allocation2], %s248
          %251 = dma.done %s247, 16
        $region44: #{frame_encoder_forward.31} parent=39 // pred_fallthru
          _
      $region40: #{frame_encoder_forward.31} parent=5 // pred_fallthru
        _
    $region6: #{frame_encoder_forward.31} parent=1 // loop_footer
      %s16 = sadd.s32 1, %s12
    $region7: #{frame_encoder_forward.31} parent=1 // loop_footer_branch
      %11 = sbr.rel target = $region3
    $region8: #{frame_encoder_forward.31} parent=1 // loop_exit
      _
    %252 = vsyncpa [#allocation3], 1
    %s253 = scalar_lea.sflag [#allocation3], 1
    %254 = vsyncpa %s253, 1

// kernel: frame_encoder_forward.27
$region0: #{frame_encoder_forward.27}
  #allocation0 [shape = 'u32[]', space=smem, size = 0x4, offset = 0x4, fixed_abs, tag = 'smem constant byte address 0x4 - core index']
  #allocation1 [shape = 'u32[72,128]{1,0:T(1,128)}', space=vmem, size = 0x9000, scoped, tag = 'internal scratch']
  #allocation2 [shape = 'f32[16,128]{1,0:T(8,128)}', space=vmem, size = 0x2000, scoped, tag = 'scratch operand']
  %s0 = inlined_call_operand.vmem [shape: bf16[16,1152], index: 0, kind: input, shape index: {}]
  %s1 = inlined_call_operand.vmem [shape: bf16[1152,128], index: 1, kind: input, shape index: {}]
  %s2 = inlined_call_operand.vmem [shape: f32[1,128], index: 2, kind: input, shape index: {}]
  %s3 = inlined_call_operand.vmem [shape: f32[1,128], index: 3, kind: input, shape index: {}]
  %s4 = inlined_call_operand.vmem [shape: bf16[16,128], index: 4, kind: output, shape index: {}]
  %s5 = sld [smem:[#allocation0]]
  $region83: #{frame_encoder_forward.27} parent=0
    _
  %s7 = ssub.s32 1, %s5
  %s8 = scalar_select 0, %s7, %s5
  $region1: #{frame_encoder_forward.27} parent=0
    #allocation3 [shape = 'u8[24576]{0}', space=vmem, size = 0x6000, scoped, tag = 'input window, operand 0']
    loop: start=0, step=1, limit=5
    $region2: #{frame_encoder_forward.27} parent=1 // loop_pre_header
      _
    $region3: #{frame_encoder_forward.27} parent=1 // loop_header
      %s10 = sphi 0, %s14
      %p11 = scmp.ge.s32.totalorder %s10, 5
      %s17 = sphi 0, %s36
      %s18 = sphi 0, %s32
      %s19 = sphi 0, %s28
      %s20 = sphi 0, %s17
      %s21 = sphi 0, %s18
      %s22 = sphi 0, %s19
      %s23 = sphi 0, %s20
      %s24 = sphi 0, %s21
      %s25 = sphi 0, %s22
      %s41 = sphi 0, %s43
      %s44 = sphi 0, %s41
      %s45 = sphi 0, %s44
      %s61 = sphi 0, %s45
      %s69 = sphi 0, %s71
      %s72 = sphi 0, %s69
      %s73 = sphi 0, %s72
      %s89 = sphi 0, %s73
      %s95 = sphi 0, %s97
      %s98 = sphi 0, %s95
      %s99 = sphi 0, %s98
      %s115 = sphi 0, %s99
      %s121 = sphi 0, %s123
      %s124 = sphi 0, %s121
      %s125 = sphi 0, %s124
      %s141 = sphi 0, %s125
      %s149 = sphi 0, %s151
      %s152 = sphi 0, %s149
      %s153 = sphi 0, %s152
      %s169 = sphi 0, %s153
    $region4: #{frame_encoder_forward.27} parent=1 // loop_header_branch
      %13 = sbr.rel (%p11) target = $region8
    $region5: #{frame_encoder_forward.27} parent=1 // loop_body
      %s15 = ssub.s32 %s10, 1
      %s16 = ssub.s32 %s10, 2
      %s26 = sadd.s32 1, %s19
      %p27 = scmp.ge.s32.totalorder %s26, 3
      %s28 = scalar_select %p27, 0, %s26
      %s29 = sadd.s32 1, %s18
      %s30 = scalar_select %p27, %s29, %s18
      %p31 = scmp.ge.s32.totalorder %s30, 1
      %s32 = scalar_select %p31, 0, %s30
      %s33 = sadd.s32 1, %s17
      %s34 = scalar_select %p31, %s33, %s17
      %p35 = scmp.ge.s32.totalorder %s34, 1
      %s36 = scalar_select %p35, 0, %s34
      %s37 = ssub.s32 %s17, %s36
      %s38 = ssub.s32 %s19, %s28
      %s39 = sor.u32 %s37, %s38
      %p40 = scmp.eq.s32.totalorder %s39, 0
      %s42 = sadd.s32 %s41, 1
      %s43 = scalar_select %p40, %s41, %s42
      %p46 = pneg %p40
      %p47 = scmp.eq.s32.totalorder %s10, 2
      %p48 = por %p46, %p47
      %p49 = scmp.ne.s32.totalorder %s41, %s44
      %p50 = scmp.eq.s32.totalorder %s10, 0
      %p51 = por %p49, %p50
      %p52 = scmp.ne.s32.totalorder %s41, %s44
      %p53 = scmp.eq.s32.totalorder %s15, 2
      %p54 = por %p52, %p53
      %p55 = scmp.ne.s32.totalorder %s44, %s45
      %p56 = scmp.eq.s32.totalorder %s15, 0
      %p57 = por %p55, %p56
      %p58 = scmp.ne.s32.totalorder %s44, %s45
      %p59 = scmp.eq.s32.totalorder %s16, 2
      %p60 = por %p58, %p59
      %p62 = scmp.ne.s32.totalorder %s45, %s61
      %p63 = scmp.eq.s32.totalorder %s16, 0
      %p64 = por %p62, %p63
      %s65 = ssub.s32 %s19, %s28
      %s66 = ssub.s32 %s18, %s32
      %s67 = sor.u32 %s65, %s66
      %p68 = scmp.eq.s32.totalorder %s67, 0
      %s70 = sadd.s32 %s69, 1
      %s71 = scalar_select %p68, %s69, %s70
      %p74 = pneg %p68
      %p75 = scmp.eq.s32.totalorder %s10, 2
      %p76 = por %p74, %p75
      %p77 = scmp.ne.s32.totalorder %s69, %s72
      %p78 = scmp.eq.s32.totalorder %s10, 0
      %p79 = por %p77, %p78
      %p80 = scmp.ne.s32.totalorder %s69, %s72
      %p81 = scmp.eq.s32.totalorder %s15, 2
      %p82 = por %p80, %p81
      %p83 = scmp.ne.s32.totalorder %s72, %s73
      %p84 = scmp.eq.s32.totalorder %s15, 0
      %p85 = por %p83, %p84
      %p86 = scmp.ne.s32.totalorder %s72, %s73
      %p87 = scmp.eq.s32.totalorder %s16, 2
      %p88 = por %p86, %p87
      %p90 = scmp.ne.s32.totalorder %s73, %s89
      %p91 = scmp.eq.s32.totalorder %s16, 0
      %p92 = por %p90, %p91
      %s93 = ssub.s32 %s18, %s32
      %p94 = scmp.eq.s32.totalorder %s93, 0
      %s96 = sadd.s32 %s95, 1
      %s97 = scalar_select %p94, %s95, %s96
      %p100 = pneg %p94
      %p101 = scmp.eq.s32.totalorder %s10, 2
      %p102 = por %p100, %p101
      %p103 = scmp.ne.s32.totalorder %s95, %s98
      %p104 = scmp.eq.s32.totalorder %s10, 0
      %p105 = por %p103, %p104
      %p106 = scmp.ne.s32.totalorder %s95, %s98
      %p107 = scmp.eq.s32.totalorder %s15, 2
      %p108 = por %p106, %p107
      %p109 = scmp.ne.s32.totalorder %s98, %s99
      %p110 = scmp.eq.s32.totalorder %s15, 0
      %p111 = por %p109, %p110
      %p112 = scmp.ne.s32.totalorder %s98, %s99
      %p113 = scmp.eq.s32.totalorder %s16, 2
      %p114 = por %p112, %p113
      %p116 = scmp.ne.s32.totalorder %s99, %s115
      %p117 = scmp.eq.s32.totalorder %s16, 0
      %p118 = por %p116, %p117
      %s119 = ssub.s32 %s18, %s32
      %p120 = scmp.eq.s32.totalorder %s119, 0
      %s122 = sadd.s32 %s121, 1
      %s123 = scalar_select %p120, %s121, %s122
      %p126 = pneg %p120
      %p127 = scmp.eq.s32.totalorder %s10, 2
      %p128 = por %p126, %p127
      %p129 = scmp.ne.s32.totalorder %s121, %s124
      %p130 = scmp.eq.s32.totalorder %s10, 0
      %p131 = por %p129, %p130
      %p132 = scmp.ne.s32.totalorder %s121, %s124
      %p133 = scmp.eq.s32.totalorder %s15, 2
      %p134 = por %p132, %p133
      %p135 = scmp.ne.s32.totalorder %s124, %s125
      %p136 = scmp.eq.s32.totalorder %s15, 0
      %p137 = por %p135, %p136
      %p138 = scmp.ne.s32.totalorder %s124, %s125
      %p139 = scmp.eq.s32.totalorder %s16, 2
      %p140 = por %p138, %p139
      %p142 = scmp.ne.s32.totalorder %s125, %s141
      %p143 = scmp.eq.s32.totalorder %s16, 0
      %p144 = por %p142, %p143
      %s145 = ssub.s32 %s17, %s36
      %s146 = ssub.s32 %s18, %s32
      %s147 = sor.u32 %s145, %s146
      %p148 = scmp.eq.s32.totalorder %s147, 0
      %s150 = sadd.s32 %s149, 1
      %s151 = scalar_select %p148, %s149, %s150
      %p154 = pneg %p148
      %p155 = scmp.eq.s32.totalorder %s10, 2
      %p156 = por %p154, %p155
      %p157 = scmp.ne.s32.totalorder %s149, %s152
      %p158 = scmp.eq.s32.totalorder %s10, 0
      %p159 = por %p157, %p158
      %p160 = scmp.ne.s32.totalorder %s149, %s152
      %p161 = scmp.eq.s32.totalorder %s15, 2
      %p162 = por %p160, %p161
      %p163 = scmp.ne.s32.totalorder %s152, %s153
      %p164 = scmp.eq.s32.totalorder %s15, 0
      %p165 = por %p163, %p164
      %p166 = scmp.ne.s32.totalorder %s152, %s153
      %p167 = scmp.eq.s32.totalorder %s16, 2
      %p168 = por %p166, %p167
      %p170 = scmp.ne.s32.totalorder %s153, %s169
      %p171 = scmp.eq.s32.totalorder %s16, 0
      %p172 = por %p170, %p171
      %p173 = scmp.le.s32.totalorder 1, %s10
      %p174 = scmp.lt.s32.totalorder %s10, 4
      %p175 = pnand %p173, %p174
      %p176 = pneg %p175
      // Predicated region
      $region9: #{frame_encoder_forward.27} parent=5 // pred_check
        _
      $region10: #{frame_encoder_forward.27} parent=5 // pred_check_branch
        %178 = sbr.rel (%p175) target = $region12
      $region11: #{frame_encoder_forward.27} parent=5 // pred_region
        %s179 = ssub.s32 %s10, 1
        // Predicated region
        $region13: #{frame_encoder_forward.27} parent=11 // pred_check
          %p180 = pneg %p111
        $region14: #{frame_encoder_forward.27} parent=11 // pred_check_branch
          %182 = sbr.rel (%p180) target = $region16
        $region15: #{frame_encoder_forward.27} parent=11 // pred_region
          %p183 = scmp.lt.s32.totalorder %s21, 0
          %s184 = scalar_select %p183, %s21, 0
          %s185 = scalar_lea.vmem %s2, %s184
        $region16: #{frame_encoder_forward.27} parent=11 // pred_fallthru
          _
        // Predicated region
        $region17: #{frame_encoder_forward.27} parent=11 // pred_check
          %p186 = pneg %p137
        $region18: #{frame_encoder_forward.27} parent=11 // pred_check_branch
          %188 = sbr.rel (%p186) target = $region20
        $region19: #{frame_encoder_forward.27} parent=11 // pred_region
          %p189 = scmp.lt.s32.totalorder %s21, 0
          %s190 = scalar_select %p189, %s21, 0
          %s191 = scalar_lea.vmem %s3, %s190
        $region20: #{frame_encoder_forward.27} parent=11 // pred_fallthru
          _
      $region12: #{frame_encoder_forward.27} parent=5 // pred_fallthru
        _
      %p192 = scmp.lt.s32.totalorder %s10, 3
      // Predicated region
      $region21: #{frame_encoder_forward.27} parent=5 // pred_check
        %p193 = pneg %p192
      $region22: #{frame_encoder_forward.27} parent=5 // pred_check_branch
        %195 = sbr.rel (%p193) target = $region24
      $region23: #{frame_encoder_forward.27} parent=5 // pred_region
        // Predicated region
        $region25: #{frame_encoder_forward.27} parent=23 // pred_check
          %p196 = pneg %p51
        $region26: #{frame_encoder_forward.27} parent=23 // pred_check_branch
          %198 = sbr.rel (%p196) target = $region28
        $region27: #{frame_encoder_forward.27} parent=23 // pred_region
          %s199 = sand.u32 %s41, 1
          %s200 = sand.u32 %s41, 1
          %s201 = smul.addr %s200, 24
          %s202 = scalar_lea.vmem [#allocation3], %s201
          %s203 = smul.u32 2, %s17
          %s204 = smul.u32 3, %s19
          %s205 = smul.addr %s203, 9
          %s206 = sadd.s32 %s204, %s205
          %s207 = smul.addr %s206, 4
          %s208 = scalar_lea.vmem %s0, %s207
          // Predicated region
          $region29: #{frame_encoder_forward.27} parent=27 // pred_check
            _
          $region30: #{frame_encoder_forward.27} parent=27 // pred_check_branch
            %210 = sbr.rel (0) target = $region32
          $region31: #{frame_encoder_forward.27} parent=27 // pred_region
            // Predicated region
            $region33: #{frame_encoder_forward.27} parent=31 // pred_check
              _
            $region34: #{frame_encoder_forward.27} parent=31 // pred_check_branch
              %212 = sbr.rel (0) target = $region36
            $region35: #{frame_encoder_forward.27} parent=31 // pred_region
              %s213 = scalar_lea.vmem %s208, 8
              %s214 = scalar_lea.vmem %s202, 8 [#allocation3]
              loop: start=0, step=1, limit=1
              $region37: #{frame_encoder_forward.27} parent=35 // loop_pre_header
                _
              $region38: #{frame_encoder_forward.27} parent=35 // loop_header
                %s216 = sphi 0, %s220
                %p217 = scmp.ge.s32.totalorder %s216, 1
                %s221 = sphi %s208, %s208
                %s222 = sphi %s202, %s202
              $region39: #{frame_encoder_forward.27} parent=35 // loop_header_branch
                %219 = sbr.rel (%p217) target = $region43
              $region40: #{frame_encoder_forward.27} parent=35 // loop_body
                %v223 = vld [vmem:[%s221] sm:$0xff]
                %224 = vst [vmem:[%s222] sm:$0xff] %v223
                %v225 = vld [vmem:[%s221 + $0x24] sm:$0xff]
                %226 = vst [vmem:[%s222 + $0xc] sm:$0xff] %v225
              $region41: #{frame_encoder_forward.27} parent=35 // loop_footer
                %s220 = sadd.s32 1, %s216
              $region42: #{frame_encoder_forward.27} parent=35 // loop_footer_branch
                %215 = sbr.rel target = $region38
              $region43: #{frame_encoder_forward.27} parent=35 // loop_exit
                _
              %s228 = ssub.s32 16, 1
              loop: start=0, step=1, limit=1
              $region44: #{frame_encoder_forward.27} parent=35 // loop_pre_header
                _
              $region45: #{frame_encoder_forward.27} parent=35 // loop_header
                %s230 = sphi 0, %s234
                %p231 = scmp.ge.s32.totalorder %s230, 1
                %s235 = sphi %s213, %s213
                %s236 = sphi %s214, %s214
              $region46: #{frame_encoder_forward.27} parent=35 // loop_header_branch
                %233 = sbr.rel (%p231) target = $region50
              $region47: #{frame_encoder_forward.27} parent=35 // loop_body
                %v237 = vld [vmem:[%s235] sm:%s228]
                %238 = vst [vmem:[%s236] sm:%s228] %v237
                %v239 = vld [vmem:[%s235 + $0x24] sm:%s228]
                %240 = vst [vmem:[%s236 + $0xc] sm:%s228] %v239
              $region48: #{frame_encoder_forward.27} parent=35 // loop_footer
                %s234 = sadd.s32 1, %s230
              $region49: #{frame_encoder_forward.27} parent=35 // loop_footer_branch
                %229 = sbr.rel target = $region45
              $region50: #{frame_encoder_forward.27} parent=35 // loop_exit
                _
            $region36: #{frame_encoder_forward.27} parent=31 // pred_fallthru
              _
          $region32: #{frame_encoder_forward.27} parent=27 // pred_fallthru
            _
          %241 = vnop
        $region28: #{frame_encoder_forward.27} parent=23 // pred_fallthru
          _
        // Predicated region
        $region51: #{frame_encoder_forward.27} parent=23 // pred_check
          %p242 = pneg %p79
        $region52: #{frame_encoder_forward.27} parent=23 // pred_check_branch
          %244 = sbr.rel (%p242) target = $region54
        $region53: #{frame_encoder_forward.27} parent=23 // pred_region
          %s245 = smul.u32 48, %s19
          %p246 = scmp.lt.s32.totalorder %s245, 143
          %s247 = scalar_select %p246, %s245, 143
          %p248 = scmp.lt.s32.totalorder %s18, 0
          %s249 = scalar_select %p248, %s18, 0
          %s250 = sadd.s32 %s249, %s247
          %s251 = smul.addr %s250, 4
          %s252 = scalar_lea.vmem %s1, %s251
          %s253 = smul.u32 48, %s19
        $region54: #{frame_encoder_forward.27} parent=23 // pred_fallthru
          _
      $region24: #{frame_encoder_forward.27} parent=5 // pred_fallthru
        _
      %p254 = scmp.le.s32.totalorder 1, %s10
      %p255 = scmp.lt.s32.totalorder %s10, 4
      %p256 = pnand %p254, %p255
      %p257 = pneg %p256
      // Predicated region
      $region55: #{frame_encoder_forward.27} parent=5 // pred_check
        _
      $region56: #{frame_encoder_forward.27} parent=5 // pred_check_branch
        %259 = sbr.rel (%p256) target = $region58
      $region57: #{frame_encoder_forward.27} parent=5 // pred_region
        %s260 = ssub.s32 %s10, 1
        %s261 = sand.u32 %s44, 1
        %s262 = sand.u32 %s44, 1
        %s263 = smul.addr %s262, 24
        %s264 = scalar_lea.vmem [#allocation3], %s263
        // Predicated region
        $region59: #{frame_encoder_forward.27} parent=57 // pred_check
          %p265 = pneg %p57
        $region60: #{frame_encoder_forward.27} parent=57 // pred_check_branch
          %267 = sbr.rel (%p265) target = $region62
        $region61: #{frame_encoder_forward.27} parent=57 // pred_region
          _
        $region62: #{frame_encoder_forward.27} parent=57 // pred_fallthru
          _
        %s268 = sand.u32 %s44, 1
        %s269 = sand.u32 %s44, 1
        %s270 = smul.addr %s269, 24
        %s271 = scalar_lea.vmem [#allocation3], %s270
        %p272 = pneg %p57
        %p273 = pneg %p54
        %s274 = smul.u32 48, %s22
        %p275 = scmp.lt.s32.totalorder %s274, 143
        %s276 = scalar_select %p275, %s274, 143
        %p277 = scmp.lt.s32.totalorder %s21, 0
        %s278 = scalar_select %p277, %s21, 0
        %s279 = sadd.s32 %s278, %s276
        %s280 = smul.addr %s279, 4
        %s281 = scalar_lea.vmem %s1, %s280
        %p282 = pneg %p85
        %p283 = pneg %p82
        %p284 = scmp.lt.s32.totalorder %s21, 0
        %s285 = scalar_select %p284, %s21, 0
        %s286 = scalar_lea.vmem %s2, %s285
        %p287 = pneg %p111
        %p288 = pneg %p108
        %p289 = scmp.lt.s32.totalorder %s21, 0
        %s290 = scalar_select %p289, %s21, 0
        %s291 = scalar_lea.vmem %s3, %s290
        %p292 = pneg %p137
        %p293 = pneg %p134
        %p294 = pneg %p165
        %p295 = pneg %p162
        %s296 = smul.u32 2, %s20
        %p297 = scmp.lt.s32.totalorder %s296, 1
        %s298 = scalar_select %p297, %s296, 1
        %p299 = scmp.lt.s32.totalorder %s21, 0
        %s300 = scalar_select %p299, %s21, 0
        %s301 = sadd.s32 %s300, %s298
        %s302 = smul.addr %s301, 4
        %s303 = scalar_lea.vmem %s4, %s302
        %s304 = smul.u32 2, %s20
        %s305 = smul.u32 3, %s22
        %s306 = smul.u32 48, %s22
        %p307 = scmp.lt.s32.totalorder %s306, 143
        %s308 = scalar_select %p307, %s306, 143
        %p309 = scmp.lt.s32.totalorder %s21, 0
        %s310 = scalar_select %p309, %s21, 0
        %s311 = sadd.s32 %s310, %s308
        %s312 = smul.addr %s311, 4
        %s313 = scalar_lea.vmem %s1, %s312
        %s314 = smul.u32 48, %s22
        %p315 = scmp.lt.s32.totalorder %s21, 0
        %s316 = scalar_select %p315, %s21, 0
        %s317 = scalar_lea.vmem %s2, %s316
        %p318 = scmp.lt.s32.totalorder %s21, 0
        %s319 = scalar_select %p318, %s21, 0
        %s320 = scalar_lea.vmem %s3, %s319
        %s321 = smul.u32 2, %s20
        %p322 = scmp.lt.s32.totalorder %s321, 1
        %s323 = scalar_select %p322, %s321, 1
        %p324 = scmp.lt.s32.totalorder %s21, 0
        %s325 = scalar_select %p324, %s21, 0
        %s326 = sadd.s32 %s325, %s323
        %s327 = smul.addr %s326, 4
        %s328 = scalar_lea.vmem %s4, %s327
        %s329 = smul.u32 2, %s20
        %p330 = scmp.eq.s32.totalorder %s22, 0
        // Predicated region
        $region63: #{frame_encoder_forward.27} parent=57 // pred_check
          %p331 = pneg %p330
        $region64: #{frame_encoder_forward.27} parent=57 // pred_check_branch
          %333 = sbr.rel (%p331) target = $region66
        $region65: #{frame_encoder_forward.27} parent=57 // pred_region
          %334 = vst [vmem:[#allocation2] sm:$0xff] 0.0
          %335 = vst [vmem:[#allocation2 + $0x8] sm:$0xff] 0.0
        $region66: #{frame_encoder_forward.27} parent=57 // pred_fallthru
          _
        %v336 = vld [vmem:[#allocation2] sm:$0xff]
        %v337 = vld [vmem:[#allocation2 + $0x8] sm:$0xff]
        %v338 = vld [vmem:[%s264] sm:$0xff]
        %v339 = vld [vmem:[%s264 + $0x8] sm:$0xf]
        %v340 = vld [vmem:[%s264 + $0xc] sm:$0xff]
        %v341 = vld [vmem:[%s264 + $0x14] sm:$0xf]
        %v342 = vld [vmem:[%s313] sm:$0xf]
        %v343 = vld [vmem:[%s313 + $0x4] sm:$0xf]
        %v344 = vld [vmem:[%s313 + $0x8] sm:$0xf]
        %v345 = vld [vmem:[%s313 + $0xc] sm:$0xf]
        %v346 = vld [vmem:[%s313 + $0x10] sm:$0xf]
        %v347 = vld [vmem:[%s313 + $0x14] sm:$0xf]
        %v348 = vld [vmem:[%s313 + $0x18] sm:$0xf]
        %v349 = vld [vmem:[%s313 + $0x1c] sm:$0xf]
        %v350 = vld [vmem:[%s313 + $0x20] sm:$0xf]
        %v351 = vld [vmem:[%s313 + $0x24] sm:$0xf]
        %v352 = vld [vmem:[%s313 + $0x28] sm:$0xf]
        %v353 = vld [vmem:[%s313 + $0x2c] sm:$0xf]
        %v354 = vld [vmem:[%s313 + $0x30] sm:$0xf]
        %v355 = vld [vmem:[%s313 + $0x34] sm:$0xf]
        %v356 = vld [vmem:[%s313 + $0x38] sm:$0xf]
        %v357 = vld [vmem:[%s313 + $0x3c] sm:$0xf]
        %v358 = vld [vmem:[%s313 + $0x40] sm:$0xf]
        %v359 = vld [vmem:[%s313 + $0x44] sm:$0xf]
        %v360 = vld [vmem:[%s313 + $0x48] sm:$0xf]
        %v361 = vld [vmem:[%s313 + $0x4c] sm:$0xf]
        %v362 = vld [vmem:[%s313 + $0x50] sm:$0xf]
        %v363 = vld [vmem:[%s313 + $0x54] sm:$0xf]
        %v364 = vld [vmem:[%s313 + $0x58] sm:$0xf]
        %v365 = vld [vmem:[%s313 + $0x5c] sm:$0xf]
        %v366 = vld [vmem:[%s313 + $0x60] sm:$0xf]
        %v367 = vld [vmem:[%s313 + $0x64] sm:$0xf]
        %v368 = vld [vmem:[%s313 + $0x68] sm:$0xf]
        %v369 = vld [vmem:[%s313 + $0x6c] sm:$0xf]
        %v370 = vld [vmem:[%s313 + $0x70] sm:$0xf]
        %v371 = vld [vmem:[%s313 + $0x74] sm:$0xf]
        %v372 = vld [vmem:[%s313 + $0x78] sm:$0xf]
        %v373 = vld [vmem:[%s313 + $0x7c] sm:$0xf]
        %v374 = vld [vmem:[%s313 + $0x80] sm:$0xf]
        %v375 = vld [vmem:[%s313 + $0x84] sm:$0xf]
        %v376 = vld [vmem:[%s313 + $0x88] sm:$0xf]
        %v377 = vld [vmem:[%s313 + $0x8c] sm:$0xf]
        %v378 = vld [vmem:[%s313 + $0x90] sm:$0xf]
        %v379 = vld [vmem:[%s313 + $0x94] sm:$0xf]
        %v380 = vld [vmem:[%s313 + $0x98] sm:$0xf]
        %v381 = vld [vmem:[%s313 + $0x9c] sm:$0xf]
        %v382 = vld [vmem:[%s313 + $0xa0] sm:$0xf]
        %v383 = vld [vmem:[%s313 + $0xa4] sm:$0xf]
        %v384 = vld [vmem:[%s313 + $0xa8] sm:$0xf]
        %v385 = vld [vmem:[%s313 + $0xac] sm:$0xf]
        %v386 = vld [vmem:[%s313 + $0xb0] sm:$0xf]
        %v387 = vld [vmem:[%s313 + $0xb4] sm:$0xf]
        %v388 = vld [vmem:[%s313 + $0xb8] sm:$0xf]
        %v389 = vld [vmem:[%s313 + $0xbc] sm:$0xf]
        %v394 = vunpack.c.l.b16 %v338
        %v395 = vunpack.c.h.b16 %v338
        %v396 = vunpack.c.l.b16 %v339
        %v397 = vunpack.c.l.b16 %v340
        %v398 = vunpack.c.h.b16 %v340
        %v399 = vunpack.c.l.b16 %v341
        %v400 = vpack.c.b16 %v397, %v394
        %v401 = vpack.c.b16 %v398, %v395
        %v402 = vpack.c.b16 %v399, %v396
        %v454 = vunpack.c.l.b16 %v342
        %v455 = vunpack.c.l.b16 %v343
        %v456 = vunpack.c.l.b16 %v344
        %v457 = vunpack.c.l.b16 %v345
        %v458 = vunpack.c.l.b16 %v346
        %v459 = vunpack.c.l.b16 %v347
        %v460 = vunpack.c.l.b16 %v348
        %v461 = vunpack.c.l.b16 %v349
        %v462 = vunpack.c.l.b16 %v350
        %v463 = vunpack.c.l.b16 %v351
        %v464 = vunpack.c.l.b16 %v352
        %v465 = vunpack.c.l.b16 %v353
        %v466 = vunpack.c.l.b16 %v354
        %v467 = vunpack.c.l.b16 %v355
        %v468 = vunpack.c.l.b16 %v356
        %v469 = vunpack.c.l.b16 %v357
        %v470 = vunpack.c.l.b16 %v358
        %v471 = vunpack.c.l.b16 %v359
        %v472 = vunpack.c.l.b16 %v360
        %v473 = vunpack.c.l.b16 %v361
        %v474 = vunpack.c.l.b16 %v362
        %v475 = vunpack.c.l.b16 %v363
        %v476 = vunpack.c.l.b16 %v364
        %v477 = vunpack.c.l.b16 %v365
        %v478 = vunpack.c.l.b16 %v366
        %v479 = vunpack.c.l.b16 %v367
        %v480 = vunpack.c.l.b16 %v368
        %v481 = vunpack.c.l.b16 %v369
        %v482 = vunpack.c.l.b16 %v370
        %v483 = vunpack.c.l.b16 %v371
        %v484 = vunpack.c.l.b16 %v372
        %v485 = vunpack.c.l.b16 %v373
        %v486 = vunpack.c.l.b16 %v374
        %v487 = vunpack.c.l.b16 %v375
        %v488 = vunpack.c.l.b16 %v376
        %v489 = vunpack.c.l.b16 %v377
        %v490 = vunpack.c.l.b16 %v378
        %v491 = vunpack.c.l.b16 %v379
        %v492 = vunpack.c.l.b16 %v380
        %v493 = vunpack.c.l.b16 %v381
        %v494 = vunpack.c.l.b16 %v382
        %v495 = vunpack.c.l.b16 %v383
        %v496 = vunpack.c.l.b16 %v384
        %v497 = vunpack.c.l.b16 %v385
        %v498 = vunpack.c.l.b16 %v386
        %v499 = vunpack.c.l.b16 %v387
        %v500 = vunpack.c.l.b16 %v388
        %v501 = vunpack.c.l.b16 %v389
        %v502 = vpack.c.b16 %v455, %v454
        %v503 = vpack.c.b16 %v457, %v456
        %v504 = vpack.c.b16 %v459, %v458
        %v505 = vpack.c.b16 %v461, %v460
        %v506 = vpack.c.b16 %v463, %v462
        %v507 = vpack.c.b16 %v465, %v464
        %v508 = vpack.c.b16 %v467, %v466
        %v509 = vpack.c.b16 %v469, %v468
        %v510 = vpack.c.b16 %v471, %v470
        %v511 = vpack.c.b16 %v473, %v472
        %v512 = vpack.c.b16 %v475, %v474
        %v513 = vpack.c.b16 %v477, %v476
        %v514 = vpack.c.b16 %v479, %v478
        %v515 = vpack.c.b16 %v481, %v480
        %v516 = vpack.c.b16 %v483, %v482
        %v517 = vpack.c.b16 %v485, %v484
        %v518 = vpack.c.b16 %v487, %v486
        %v519 = vpack.c.b16 %v489, %v488
        %v520 = vpack.c.b16 %v491, %v490
        %v521 = vpack.c.b16 %v493, %v492
        %v522 = vpack.c.b16 %v495, %v494
        %v523 = vpack.c.b16 %v497, %v496
        %v524 = vpack.c.b16 %v499, %v498
        %v525 = vpack.c.b16 %v501, %v500
        %550 = vmatpush.bf16.msra.mxu0 %v509
        %551 = vmatpush.bf16.msra.mxu0 %v508
        %552 = vmatpush.bf16.msra.mxu0 %v507
        %553 = vmatpush.bf16.msra.mxu0 %v506
        %554 = vmatpush.bf16.msra.mxu0 %v505
        %555 = vmatpush.bf16.msra.mxu0 %v504
        %556 = vmatpush.bf16.msra.mxu0 %v503
        %557 = vmatpush.bf16.msra.mxu0 %v502
        %558 = vmatmul.bf16.gmra.mxu0 %v400
        %v559 = vpop.f32.mrf.mxu0
        %v560 = vadd.f32 0.0, %v559
        %v561 = vpop.f32.mrf.mxu0
        %v562 = vadd.f32 0.0, %v561
        %563 = vdwg.mxu0
        %564 = vmatpush.bf16.msra.mxu0 %v517
        %565 = vmatpush.bf16.msra.mxu0 %v516
        %566 = vmatpush.bf16.msra.mxu0 %v515
        %567 = vmatpush.bf16.msra.mxu0 %v514
        %568 = vmatpush.bf16.msra.mxu0 %v513
        %569 = vmatpush.bf16.msra.mxu0 %v512
        %570 = vmatpush.bf16.msra.mxu0 %v511
        %571 = vmatpush.bf16.msra.mxu0 %v510
        %572 = vmatmul.bf16.gmra.mxu0 %v401
        %v573 = vpop.f32.mrf.mxu0
        %v574 = vadd.f32 %v560, %v573
        %v575 = vpop.f32.mrf.mxu0
        %v576 = vadd.f32 %v562, %v575
        %577 = vdwg.mxu0
        %578 = vmatpush.bf16.msra.mxu0 %v525
        %579 = vmatpush.bf16.msra.mxu0 %v524
        %580 = vmatpush.bf16.msra.mxu0 %v523
        %581 = vmatpush.bf16.msra.mxu0 %v522
        %582 = vmatpush.bf16.msra.mxu0 %v521
        %583 = vmatpush.bf16.msra.mxu0 %v520
        %584 = vmatpush.bf16.msra.mxu0 %v519
        %585 = vmatpush.bf16.msra.mxu0 %v518
        %586 = vmatmul.bf16.gmra.mxu0 %v402
        %v587 = vpop.f32.mrf.mxu0
        %v588 = vadd.f32 %v574, %v587
        %v589 = vpop.f32.mrf.mxu0
        %v590 = vadd.f32 %v576, %v589
        %591 = vdwg.mxu0
        %v592 = vadd.f32 %v336, %v588
        %v593 = vadd.f32 %v337, %v590
        %594 = vst [vmem:[#allocation2] sm:$0xff] %v592
        %595 = vst [vmem:[#allocation2 + $0x8] sm:$0xff] %v593
        %p596 = scmp.eq.s32.totalorder %s22, 2
        // Predicated region
        $region67: #{frame_encoder_forward.27} parent=57 // pred_check
          %p597 = pneg %p596
        $region68: #{frame_encoder_forward.27} parent=57 // pred_check_branch
          %599 = sbr.rel (%p597) target = $region70
        $region69: #{frame_encoder_forward.27} parent=57 // pred_region
          %v600 = vld [vmem:[#allocation2] sm:$0xff]
          %v601 = vld [vmem:[#allocation2 + $0x8] sm:$0xff]
          %v602 = vld [vmem:[%s317] sm:$0x1]
          %v604 = vperm.slane %v602, 0
          %v606 = vmul.f32 %v600, %v604
          %v607 = vmul.f32 %v601, %v604
          %v608 = vld [vmem:[%s320] sm:$0x1]
          %v610 = vperm.slane %v608, 0
          %v612 = vadd.f32 %v606, %v610
          %v613 = vadd.f32 %v607, %v610
          %v614 = vmax.f32 %v612, 0.0
          %v615 = vmax.f32 %v613, 0.0
          %v616 = vpack.c.bf16 %v614, %v614
          %v617 = vpack.c.bf16 %v615, %v615
          %618 = vst [vmem:[%s328] sm:$0xf] %v616
          %619 = vst [vmem:[%s328 + $0x4] sm:$0xf] %v617
        $region70: #{frame_encoder_forward.27} parent=57 // pred_fallthru
          _
        %s620 = smul.u32 2, %s20
        %p621 = scmp.lt.s32.totalorder %s620, 1
        %s622 = scalar_select %p621, %s620, 1
        %p623 = scmp.lt.s32.totalorder %s21, 0
        %s624 = scalar_select %p623, %s21, 0
        %s625 = sadd.s32 %s624, %s622
        %s626 = smul.addr %s625, 4
        %s627 = scalar_lea.vmem %s4, %s626
        // Predicated region
        $region71: #{frame_encoder_forward.27} parent=57 // pred_check
          %p628 = pneg %p162
        $region72: #{frame_encoder_forward.27} parent=57 // pred_check_branch
          %630 = sbr.rel (%p628) target = $region74
        $region73: #{frame_encoder_forward.27} parent=57 // pred_region
          %s631 = smul.u32 2, %s20
        $region74: #{frame_encoder_forward.27} parent=57 // pred_fallthru
          _
        // Predicated region
        $region75: #{frame_encoder_forward.27} parent=57 // pred_check
          %p632 = pneg %p162
        $region76: #{frame_encoder_forward.27} parent=57 // pred_check_branch
          %634 = sbr.rel (%p632) target = $region78
        $region77: #{frame_encoder_forward.27} parent=57 // pred_region
          %s635 = smul.u32 2, %s20
          %p636 = scmp.lt.s32.totalorder %s635, 1
          %s637 = scalar_select %p636, %s635, 1
          %p638 = scmp.lt.s32.totalorder %s21, 0
          %s639 = scalar_select %p638, %s21, 0
          %s640 = sadd.s32 %s639, %s637
          %s641 = smul.addr %s640, 4
          %s642 = scalar_lea.vmem %s4, %s641
        $region78: #{frame_encoder_forward.27} parent=57 // pred_fallthru
          _
      $region58: #{frame_encoder_forward.27} parent=5 // pred_fallthru
        _
      %p643 = scmp.le.s32.totalorder 2, %s10
      // Predicated region
      $region79: #{frame_encoder_forward.27} parent=5 // pred_check
        %p644 = pneg %p643
      $region80: #{frame_encoder_forward.27} parent=5 // pred_check_branch
        %646 = sbr.rel (%p644) target = $region82
      $region81: #{frame_encoder_forward.27} parent=5 // pred_region
        %s647 = ssub.s32 %s10, 2
      $region82: #{frame_encoder_forward.27} parent=5 // pred_fallthru
        _
    $region6: #{frame_encoder_forward.27} parent=1 // loop_footer
      %s14 = sadd.s32 1, %s10
    $region7: #{frame_encoder_forward.27} parent=1 // loop_footer_branch
      %9 = sbr.rel target = $region3
    $region8: #{frame_encoder_forward.27} parent=1 // loop_exit
      _

</llo_original>
